<compile_context>
chip_gen: v5e
topology: v5e:2x2
jax: 0.10.0
libtpu: 0.0.40
codegen_flags: <defaults>
</compile_context>

<pallas_src>
import functools

import jax
import jax.numpy as jnp
from jax.experimental import pallas as pl
from jax.experimental.pallas import tpu as pltpu


_VMEM_BUDGET_BYTES = 40 * 1024 * 1024   # block-sizing budget (safe on v7x)
_VMEM_LIMIT_BYTES = 56 * 1024 * 1024    # scoped VMEM limit passed to Mosaic
_MAX_T_CHUNK = 256


def _round_up(x, m):
    return ((x + m - 1) // m) * m


def _largest_divisor_le(n, cap):
    cap = max(1, min(n, cap))
    for d in range(cap, 0, -1):
        if n % d == 0:
            return d
    return 1


def _pick_b_tile(Bp, max_tile=128):
    """Batch tile: multiple of 8 dividing Bp; prefer >=2 tiles (v7x megacore)."""
    if Bp > max_tile:
        return max_tile                      # Bp is a multiple of 128 here
    if Bp >= 16:
        cand = (Bp // 2) - ((Bp // 2) % 8)
        while cand >= 8:
            if Bp % cand == 0:
                return cand
            cand -= 8
    return Bp


def _pick_time_chunk(T, per_step_bytes, fixed_bytes):
    """Largest divisor of T such that the per-chunk blocks fit the VMEM budget."""
    avail = max(_VMEM_BUDGET_BYTES - fixed_bytes, per_step_bytes)
    return _largest_divisor_le(T, min(_MAX_T_CHUNK, max(1, avail // per_step_bytes)))


# ----------------------------------------------------------------------------
# In-kernel recurrence.  gx (= x @ W_ih^T + bias, bf16) is precomputed outside,
# so the sequential loop only does h @ W_hh^T on the MXU plus the gate math.
# ----------------------------------------------------------------------------
def _sigmoid(x):
    # One EUP transcendental (tanh) instead of exp + reciprocal.
    return 0.5 * jnp.tanh(0.5 * x) + 0.5


def _lstm_chunk(gx_ref, w_hh, h0, c0, out_ref=None):
    """Run t_chunk LSTM steps. gx_ref: (t_chunk, B, 4Hp) bf16 VMEM block.

    h0: (B, Hp) bf16, c0: (B, Hp) f32.  If out_ref is given, stores h per step
    (time-major (t_chunk, B, Hp) bf16).  Returns final (h, c).
    """
    Hp = h0.shape[-1]
    t_chunk = gx_ref.shape[0]

    def step(t, carry):
        h, c = carry
        # (B, Hp) bf16 x (Hp, 4Hp) bf16 -> f32; gx_ref[t] is a dense 2-D view.
        gates = jnp.dot(h, w_hh, preferred_element_type=jnp.float32) + gx_ref[t]
        i_g = _sigmoid(gates[:, 0 * Hp:1 * Hp])
        f_g = _sigmoid(gates[:, 1 * Hp:2 * Hp])
        g_g = jnp.tanh(gates[:, 2 * Hp:3 * Hp])
        o_g = _sigmoid(gates[:, 3 * Hp:4 * Hp])
        c = f_g * c + i_g * g_g
        h = (o_g * jnp.tanh(c)).astype(jnp.bfloat16)
        if out_ref is not None:
            out_ref[t] = h
        return h, c

    return jax.lax.fori_loop(0, t_chunk, step, (h0, c0),
                             unroll=min(8, t_chunk))


def _lstm_seq_kernel(gx_ref, whh_ref, out_ref, h_sc, c_sc):
    """Intermediate layer: emits the full hidden sequence (time-major, bf16)."""
    @pl.when(pl.program_id(1) == 0)
    def _():
        h_sc[...] = jnp.zeros_like(h_sc)
        c_sc[...] = jnp.zeros_like(c_sc)

    w_hh = whh_ref[...]                     # hoisted, resident for the chunk
    h, c = _lstm_chunk(gx_ref, w_hh, h_sc[...], c_sc[...], out_ref)
    h_sc[...] = h
    c_sc[...] = c


def _lstm_last_fc_kernel(gx_ref, whh_ref, wfc_ref, bfc_ref, y_ref, h_sc, c_sc):
    """Last LSTM layer fused with the FC head: only y = h_T @ W_fc^T + b is emitted."""
    @pl.when(pl.program_id(1) == 0)
    def _():
        h_sc[...] = jnp.zeros_like(h_sc)
        c_sc[...] = jnp.zeros_like(c_sc)

    w_hh = whh_ref[...]
    h, c = _lstm_chunk(gx_ref, w_hh, h_sc[...], c_sc[...], None)
    h_sc[...] = h
    c_sc[...] = c

    @pl.when(pl.program_id(1) == pl.num_programs(1) - 1)
    def _():
        y = jnp.dot(h, wfc_ref[...], preferred_element_type=jnp.float32) + bfc_ref[...]
        y_ref[...] = y.astype(y_ref.dtype)


# ----------------------------------------------------------------------------
# pallas_call wrappers (time-major blocks, VMEM-budget-driven t_chunk)
# ----------------------------------------------------------------------------
def lstm_seq_layer(gx, w_hh_t):
    """gx: (T, Bp, 4Hp) bf16; w_hh_t: (Hp, 4Hp) bf16 -> (T, Bp, Hp) bf16."""
    T, Bp, G = gx.shape
    Hp = w_hh_t.shape[0]
    B_tile = _pick_b_tile(Bp)
    # Fixed VMEM: double-buffered bf16 W_hh + bf16 h scratch + f32 c scratch.
    fixed = 2 * w_hh_t.size * 2 + B_tile * Hp * (2 + 4)
    # Per-timestep block bytes: double-buffered bf16 gx + bf16 out.
    per_t = 2 * 2 * B_tile * (G + Hp)
    t_chunk = _pick_time_chunk(T, per_t, fixed)
    grid = (Bp // B_tile, T // t_chunk)
    return pl.pallas_call(
        _lstm_seq_kernel,
        out_shape=jax.ShapeDtypeStruct((T, Bp, Hp), jnp.bfloat16),
        grid_spec=pltpu.PrefetchScalarGridSpec(
            num_scalar_prefetch=0,
            grid=grid,
            in_specs=[
                pl.BlockSpec((t_chunk, B_tile, G), lambda b, c: (c, b, 0)),
                pl.BlockSpec((Hp, G), lambda b, c: (0, 0)),
            ],
            out_specs=pl.BlockSpec((t_chunk, B_tile, Hp), lambda b, c: (c, b, 0)),
            scratch_shapes=[
                pltpu.VMEM((B_tile, Hp), jnp.bfloat16),   # h state (bf16)
                pltpu.VMEM((B_tile, Hp), jnp.float32),    # c state (f32)
            ],
        ),
        compiler_params=pltpu.CompilerParams(
            dimension_semantics=("parallel", "arbitrary"),
            vmem_limit_bytes=_VMEM_LIMIT_BYTES),
    )(gx, w_hh_t)


def lstm_last_fc_layer(gx, w_hh_t, w_fc_t, b_fc):
    """Last layer + fused FC.  gx: (T, Bp, 4Hp) bf16 -> (Bp, Op) f32 (padded)."""
    T, Bp, G = gx.shape
    Hp = w_hh_t.shape[0]
    Op = w_fc_t.shape[1]
    B_tile = _pick_b_tile(Bp)
    fixed = (2 * w_hh_t.size * 2 + 2 * w_fc_t.size * 2 + 2 * b_fc.size * 4
             + 2 * B_tile * Op * 4 + B_tile * Hp * (2 + 4))
    per_t = 2 * 2 * B_tile * G            # double-buffered bf16 gx only
    t_chunk = _pick_time_chunk(T, per_t, fixed)
    grid = (Bp // B_tile, T // t_chunk)
    return pl.pallas_call(
        _lstm_last_fc_kernel,
        out_shape=jax.ShapeDtypeStruct((Bp, Op), jnp.float32),
        grid_spec=pltpu.PrefetchScalarGridSpec(
            num_scalar_prefetch=0,
            grid=grid,
            in_specs=[
                pl.BlockSpec((t_chunk, B_tile, G), lambda b, c: (c, b, 0)),
                pl.BlockSpec((Hp, G), lambda b, c: (0, 0)),
                pl.BlockSpec((Hp, Op), lambda b, c: (0, 0)),
                pl.BlockSpec((1, Op), lambda b, c: (0, 0)),
            ],
            out_specs=pl.BlockSpec((B_tile, Op), lambda b, c: (b, 0)),
            scratch_shapes=[
                pltpu.VMEM((B_tile, Hp), jnp.bfloat16),
                pltpu.VMEM((B_tile, Hp), jnp.float32),
            ],
        ),
        compiler_params=pltpu.CompilerParams(
            dimension_semantics=("parallel", "arbitrary"),
            vmem_limit_bytes=_VMEM_LIMIT_BYTES),
    )(gx, w_hh_t, w_fc_t, b_fc)


# ----------------------------------------------------------------------------
# Parameters: raw (PyTorch layout, f32) + padded/transposed kernel params.
# ----------------------------------------------------------------------------
def init_raw_params(key, input_size, hidden_size, output_size, num_layers):
    bound = 1.0 / float(hidden_size) ** 0.5
    raw = {"lstm": []}
    for layer in range(num_layers):
        d_in = input_size if layer == 0 else hidden_size
        key, k1, k2, k3, k4 = jax.random.split(key, 5)
        raw["lstm"].append({
            "w_ih": jax.random.uniform(k1, (4 * hidden_size, d_in),
                                       minval=-bound, maxval=bound),
            "w_hh": jax.random.uniform(k2, (4 * hidden_size, hidden_size),
                                       minval=-bound, maxval=bound),
            "b_ih": jax.random.uniform(k3, (4 * hidden_size,),
                                       minval=-bound, maxval=bound),
            "b_hh": jax.random.uniform(k4, (4 * hidden_size,),
                                       minval=-bound, maxval=bound),
        })
    key, k5, k6 = jax.random.split(key, 3)
    raw["fc_w"] = jax.random.uniform(k5, (output_size, hidden_size),
                                     minval=-bound, maxval=bound)
    raw["fc_b"] = jax.random.uniform(k6, (output_size,),
                                     minval=-bound, maxval=bound)
    return raw


def _pad_gatewise(w_t, d_in_p, H, Hp):
    """(d_in, 4H) -> (d_in_p, 4Hp); each gate block lane-aligned at k*Hp."""
    d_in = w_t.shape[0]
    out = jnp.zeros((d_in_p, 4 * Hp), jnp.float32)
    for g in range(4):
        out = out.at[:d_in, g * Hp:g * Hp + H].set(w_t[:, g * H:(g + 1) * H])
    return out


def _pad_bias_gatewise(b, H, Hp):
    out = jnp.zeros((4 * Hp,), jnp.float32)
    for g in range(4):
        out = out.at[g * Hp:g * Hp + H].set(b[g * H:(g + 1) * H])
    return out


def build_kernel_params(raw, input_size, hidden_size, output_size):
    H = hidden_size
    Hp = _round_up(H, 128)
    Op = _round_up(output_size, 128)
    params = {"lstm": []}
    for layer, lp in enumerate(raw["lstm"]):
        d_in_p = input_size if layer == 0 else Hp
        params["lstm"].append({
            "w_ih_t": _pad_gatewise(lp["w_ih"].T, d_in_p, H, Hp).astype(jnp.bfloat16),
            "w_hh_t": _pad_gatewise(lp["w_hh"].T, Hp, H, Hp).astype(jnp.bfloat16),
            "bias": _pad_bias_gatewise(lp["b_ih"] + lp["b_hh"], H, Hp),   # f32 (4Hp,)
        })
    w_fc_t = jnp.zeros((Hp, Op), jnp.float32).at[:H, :output_size].set(raw["fc_w"].T)
    b_fc = jnp.zeros((1, Op), jnp.float32).at[0, :output_size].set(raw["fc_b"])
    params["fc_w_t"] = w_fc_t.astype(jnp.bfloat16)
    params["fc_b"] = b_fc
    return params


# ----------------------------------------------------------------------------
# Forward pass (== RNN.forward: zero-initialized multi-layer LSTM, FC on last step)
# ----------------------------------------------------------------------------
def _input_projection(seq_tm, w_ih_t_bf16, bias_f32):
    """One big MXU-friendly GEMM, hoisted off the sequential critical path.

    seq_tm: (T, Bp, D) -> gx: (T, Bp, 4Hp) bf16 (bias added in f32, then cast).
    """
    gx = jnp.einsum("tbd,dg->tbg", seq_tm.astype(jnp.bfloat16), w_ih_t_bf16,
                    preferred_element_type=jnp.float32)
    return (gx + bias_f32[None, None, :]).astype(jnp.bfloat16)


@functools.partial(jax.jit, static_argnames=("output_size",))
def rnn_forward(params, x, output_size):
    B, T, _ = x.shape
    Bp = _round_up(max(B, 8), 8)
    if Bp > 128:
        Bp = _round_up(Bp, 128)
    seq = jnp.transpose(x, (1, 0, 2))                       # time-major (T, B, D)
    seq = jnp.pad(seq, ((0, 0), (0, Bp - B), (0, 0)))       # pad batch to sublanes
    n_layers = len(params["lstm"])
    y_p = None
    for li, lp in enumerate(params["lstm"]):
        gx = _input_projection(seq, lp["w_ih_t"], lp["bias"])   # (T, Bp, 4Hp) bf16
        if li < n_layers - 1:
            seq = lstm_seq_layer(gx, lp["w_hh_t"])              # (T, Bp, Hp) bf16
        else:
            y_p = lstm_last_fc_layer(gx, lp["w_hh_t"],
                                     params["fc_w_t"], params["fc_b"])
    return y_p[:B, :output_size]


# ----------------------------------------------------------------------------
# Pure-JAX reference (f32, PyTorch semantics) for a correctness check.
# ----------------------------------------------------------------------------
def rnn_reference(raw, x):
    B, T, _ = x.shape
    seq = x
    for lp in raw["lstm"]:
        H = lp["w_hh"].shape[1]
        h = jnp.zeros((B, H), jnp.float32)
        c = jnp.zeros((B, H), jnp.float32)
        outs = []
        for t in range(T):
            g = seq[:, t, :] @ lp["w_ih"].T + h @ lp["w_hh"].T + lp["b_ih"] + lp["b_hh"]
            i = jax.nn.sigmoid(g[:, 0 * H:1 * H])
            f = jax.nn.sigmoid(g[:, 1 * H:2 * H])
            gg = jnp.tanh(g[:, 2 * H:3 * H])
            o = jax.nn.sigmoid(g[:, 3 * H:4 * H])
            c = f * c + i * gg
            h = o * jnp.tanh(c)
            outs.append(h)
        seq = jnp.stack(outs, axis=1)
    return seq[:, -1, :] @ raw["fc_w"].T + raw["fc_b"]


if __name__ == "__main__":
    # Small shapes consistent with the module.
    B, T = 2, 8
    input_size, hidden_size, output_size, num_layers = 4, 32, 4, 2

    key = jax.random.PRNGKey(0)
    key, pkey, xkey = jax.random.split(key, 3)
    raw = init_raw_params(pkey, input_size, hidden_size, output_size, num_layers)
    params = build_kernel_params(raw, input_size, hidden_size, output_size)
    x = jax.random.normal(xkey, (B, T, input_size), dtype=jnp.float32)

    out = rnn_forward(params, x, output_size=output_size)
    jax.block_until_ready(out)
    assert out.shape == (B, output_size)

    ref = rnn_reference(raw, x)
    err = float(jnp.max(jnp.abs(out - ref)))
    assert err < 5e-2, f"kernel vs reference mismatch: max abs err = {err}"

    print("KERNEL_OK")
</pallas_src>

<mosaic_0001>
module attributes {stable_mosaic.version = 11 : i64} {
  func.func @_lstm_seq_kernel(%arg0: i32, %arg1: i32, %arg2: memref<8x8x512xbf16, #tpu.memory_space<vmem>>, %arg3: memref<128x512xbf16, #tpu.memory_space<vmem>>, %arg4: memref<8x8x128xbf16, #tpu.memory_space<vmem>>, %arg5: memref<8x128xbf16, #tpu.memory_space<vmem>>, %arg6: memref<8x128xf32, #tpu.memory_space<vmem>>) attributes {dimension_semantics = [#tpu.dimension_semantics<parallel>, #tpu.dimension_semantics<arbitrary>], iteration_bounds = array<i64: 1, 1>, scalar_prefetch = 0 : i64, scratch_operands = 2 : i64, tpu.core_type = #tpu.core_type<tc>, window_params = [{transform_indices = @transform_0, window_bounds = array<i64: 8, 8, 512>}, {pipeline_mode = #tpu.pipeline_mode<synchronous>, transform_indices = @transform_1, window_bounds = array<i64: 128, 512>}, {transform_indices = @transform_2, window_bounds = array<i64: 8, 8, 128>}]} {
    %c0_i32 = arith.constant 0 : i32
    %0 = arith.cmpi eq, %arg1, %c0_i32 : i32
    %1 = arith.extui %0 : i1 to i32
    %c0_i32_0 = arith.constant 0 : i32
    %2 = arith.cmpi ne, %1, %c0_i32_0 : i32
    scf.if %2 {
      %cst_122 = arith.constant 0.000000e+00 : bf16
      %344 = vector.broadcast %cst_122 : bf16 to vector<8x128xbf16>
      %c0_123 = arith.constant 0 : index
      %c0_124 = arith.constant 0 : index
      %345 = vector.load %arg5[%c0_123, %c0_124] : memref<8x128xbf16, #tpu.memory_space<vmem>>, vector<8x128xbf16>
      tpu.vector_store %arg5[%c0_123, %c0_124], %344 {strides = array<i32>} : memref<8x128xbf16, #tpu.memory_space<vmem>>, vector<8x128xbf16>,
      %cst_125 = arith.constant 0.000000e+00 : f32
      %346 = vector.broadcast %cst_125 : f32 to vector<8x128xf32>
      %c0_126 = arith.constant 0 : index
      %c0_127 = arith.constant 0 : index
      %347 = vector.load %arg6[%c0_126, %c0_127] : memref<8x128xf32, #tpu.memory_space<vmem>>, vector<8x128xf32>
      tpu.vector_store %arg6[%c0_126, %c0_127], %346 {strides = array<i32>} : memref<8x128xf32, #tpu.memory_space<vmem>>, vector<8x128xf32>,
    } else {
    }
    %c0 = arith.constant 0 : index
    %c0_1 = arith.constant 0 : index
    %3 = vector.load %arg3[%c0, %c0_1] : memref<128x512xbf16, #tpu.memory_space<vmem>>, vector<128x512xbf16>
    %c0_2 = arith.constant 0 : index
    %c0_3 = arith.constant 0 : index
    %4 = vector.load %arg5[%c0_2, %c0_3] : memref<8x128xbf16, #tpu.memory_space<vmem>>, vector<8x128xbf16>
    %c0_4 = arith.constant 0 : index
    %c0_5 = arith.constant 0 : index
    %5 = vector.load %arg6[%c0_4, %c0_5] : memref<8x128xf32, #tpu.memory_space<vmem>>, vector<8x128xf32>
    %c0_i32_6 = arith.constant 0 : i32
    %cst = arith.constant dense<0.000000e+00> : vector<8x512xf32>
    %6 = tpu.matmul %4, %3, %cst {dimension_numbers = #tpu.dot_dimension_numbers<[1], [0], [0], [1], [0, 0, 1, 1], [], []>} : vector<8x128xbf16>, vector<128x512xbf16>, vector<8x512xf32> -> vector<8x512xf32>
    %7 = arith.index_cast %c0_i32_6 : i32 to index
    %c0_7 = arith.constant 0 : index
    %c0_8 = arith.constant 0 : index
    %8 = vector.load %arg2[%7, %c0_7, %c0_8] : memref<8x8x512xbf16, #tpu.memory_space<vmem>>, vector<1x8x512xbf16>
    %9 = vector.shape_cast %8 : vector<1x8x512xbf16> to vector<8x512xbf16>
    %10 = arith.extf %9 : vector<8x512xbf16> to vector<8x512xf32>
    %11 = arith.addf %6, %10 : vector<8x512xf32>
    %12 = vector.extract_strided_slice %11 {offsets = [0, 0], sizes = [8, 128], strides = [1, 1]} : vector<8x512xf32> to vector<8x128xf32>
    %cst_9 = arith.constant 5.000000e-01 : f32
    %13 = vector.broadcast %cst_9 : f32 to vector<8x128xf32>
    %14 = arith.mulf %13, %12 : vector<8x128xf32>
    %15 = math.tanh %14 : vector<8x128xf32>
    %cst_10 = arith.constant 5.000000e-01 : f32
    %16 = vector.broadcast %cst_10 : f32 to vector<8x128xf32>
    %17 = arith.mulf %16, %15 : vector<8x128xf32>
    %cst_11 = arith.constant 5.000000e-01 : f32
    %18 = vector.broadcast %cst_11 : f32 to vector<8x128xf32>
    %19 = arith.addf %17, %18 : vector<8x128xf32>
    %20 = vector.extract_strided_slice %11 {offsets = [0, 128], sizes = [8, 128], strides = [1, 1]} : vector<8x512xf32> to vector<8x128xf32>
    %cst_12 = arith.constant 5.000000e-01 : f32
    %21 = vector.broadcast %cst_12 : f32 to vector<8x128xf32>
    %22 = arith.mulf %21, %20 : vector<8x128xf32>
    %23 = math.tanh %22 : vector<8x128xf32>
    %cst_13 = arith.constant 5.000000e-01 : f32
    %24 = vector.broadcast %cst_13 : f32 to vector<8x128xf32>
    %25 = arith.mulf %24, %23 : vector<8x128xf32>
    %cst_14 = arith.constant 5.000000e-01 : f32
    %26 = vector.broadcast %cst_14 : f32 to vector<8x128xf32>
    %27 = arith.addf %25, %26 : vector<8x128xf32>
    %28 = vector.extract_strided_slice %11 {offsets = [0, 256], sizes = [8, 128], strides = [1, 1]} : vector<8x512xf32> to vector<8x128xf32>
    %29 = math.tanh %28 : vector<8x128xf32>
    %30 = vector.extract_strided_slice %11 {offsets = [0, 384], sizes = [8, 128], strides = [1, 1]} : vector<8x512xf32> to vector<8x128xf32>
    %cst_15 = arith.constant 5.000000e-01 : f32
    %31 = vector.broadcast %cst_15 : f32 to vector<8x128xf32>
    %32 = arith.mulf %31, %30 : vector<8x128xf32>
    %33 = math.tanh %32 : vector<8x128xf32>
    %cst_16 = arith.constant 5.000000e-01 : f32
    %34 = vector.broadcast %cst_16 : f32 to vector<8x128xf32>
    %35 = arith.mulf %34, %33 : vector<8x128xf32>
    %cst_17 = arith.constant 5.000000e-01 : f32
    %36 = vector.broadcast %cst_17 : f32 to vector<8x128xf32>
    %37 = arith.addf %35, %36 : vector<8x128xf32>
    %38 = arith.mulf %27, %5 : vector<8x128xf32>
    %39 = arith.mulf %19, %29 : vector<8x128xf32>
    %40 = arith.addf %38, %39 : vector<8x128xf32>
    %41 = math.tanh %40 : vector<8x128xf32>
    %42 = arith.mulf %37, %41 : vector<8x128xf32>
    %43 = arith.truncf %42 : vector<8x128xf32> to vector<8x128xbf16>
    %44 = arith.index_cast %c0_i32_6 : i32 to index
    %c0_18 = arith.constant 0 : index
    %c0_19 = arith.constant 0 : index
    %45 = vector.load %arg4[%44, %c0_18, %c0_19] : memref<8x8x128xbf16, #tpu.memory_space<vmem>>, vector<1x8x128xbf16>
    %46 = vector.shape_cast %45 : vector<1x8x128xbf16> to vector<8x128xbf16>
    %47 = vector.shape_cast %43 : vector<8x128xbf16> to vector<1x8x128xbf16>
    tpu.vector_store %arg4[%44, %c0_18, %c0_19], %47 {strides = array<i32>} : memref<8x8x128xbf16, #tpu.memory_space<vmem>>, vector<1x8x128xbf16>,
    %c1_i32 = arith.constant 1 : i32
    %cst_20 = arith.constant dense<0.000000e+00> : vector<8x512xf32>
    %48 = tpu.matmul %43, %3, %cst_20 {dimension_numbers = #tpu.dot_dimension_numbers<[1], [0], [0], [1], [0, 0, 1, 1], [], []>} : vector<8x128xbf16>, vector<128x512xbf16>, vector<8x512xf32> -> vector<8x512xf32>
    %49 = arith.index_cast %c1_i32 : i32 to index
    %c0_21 = arith.constant 0 : index
    %c0_22 = arith.constant 0 : index
    %50 = vector.load %arg2[%49, %c0_21, %c0_22] : memref<8x8x512xbf16, #tpu.memory_space<vmem>>, vector<1x8x512xbf16>
    %51 = vector.shape_cast %50 : vector<1x8x512xbf16> to vector<8x512xbf16>
    %52 = arith.extf %51 : vector<8x512xbf16> to vector<8x512xf32>
    %53 = arith.addf %48, %52 : vector<8x512xf32>
    %54 = vector.extract_strided_slice %53 {offsets = [0, 0], sizes = [8, 128], strides = [1, 1]} : vector<8x512xf32> to vector<8x128xf32>
    %cst_23 = arith.constant 5.000000e-01 : f32
    %55 = vector.broadcast %cst_23 : f32 to vector<8x128xf32>
    %56 = arith.mulf %55, %54 : vector<8x128xf32>
    %57 = math.tanh %56 : vector<8x128xf32>
    %cst_24 = arith.constant 5.000000e-01 : f32
    %58 = vector.broadcast %cst_24 : f32 to vector<8x128xf32>
    %59 = arith.mulf %58, %57 : vector<8x128xf32>
    %cst_25 = arith.constant 5.000000e-01 : f32
    %60 = vector.broadcast %cst_25 : f32 to vector<8x128xf32>
    %61 = arith.addf %59, %60 : vector<8x128xf32>
    %62 = vector.extract_strided_slice %53 {offsets = [0, 128], sizes = [8, 128], strides = [1, 1]} : vector<8x512xf32> to vector<8x128xf32>
    %cst_26 = arith.constant 5.000000e-01 : f32
    %63 = vector.broadcast %cst_26 : f32 to vector<8x128xf32>
    %64 = arith.mulf %63, %62 : vector<8x128xf32>
    %65 = math.tanh %64 : vector<8x128xf32>
    %cst_27 = arith.constant 5.000000e-01 : f32
    %66 = vector.broadcast %cst_27 : f32 to vector<8x128xf32>
    %67 = arith.mulf %66, %65 : vector<8x128xf32>
    %cst_28 = arith.constant 5.000000e-01 : f32
    %68 = vector.broadcast %cst_28 : f32 to vector<8x128xf32>
    %69 = arith.addf %67, %68 : vector<8x128xf32>
    %70 = vector.extract_strided_slice %53 {offsets = [0, 256], sizes = [8, 128], strides = [1, 1]} : vector<8x512xf32> to vector<8x128xf32>
    %71 = math.tanh %70 : vector<8x128xf32>
    %72 = vector.extract_strided_slice %53 {offsets = [0, 384], sizes = [8, 128], strides = [1, 1]} : vector<8x512xf32> to vector<8x128xf32>
    %cst_29 = arith.constant 5.000000e-01 : f32
    %73 = vector.broadcast %cst_29 : f32 to vector<8x128xf32>
    %74 = arith.mulf %73, %72 : vector<8x128xf32>
    %75 = math.tanh %74 : vector<8x128xf32>
    %cst_30 = arith.constant 5.000000e-01 : f32
    %76 = vector.broadcast %cst_30 : f32 to vector<8x128xf32>
    %77 = arith.mulf %76, %75 : vector<8x128xf32>
    %cst_31 = arith.constant 5.000000e-01 : f32
    %78 = vector.broadcast %cst_31 : f32 to vector<8x128xf32>
    %79 = arith.addf %77, %78 : vector<8x128xf32>
    %80 = arith.mulf %69, %40 : vector<8x128xf32>
    %81 = arith.mulf %61, %71 : vector<8x128xf32>
    %82 = arith.addf %80, %81 : vector<8x128xf32>
    %83 = math.tanh %82 : vector<8x128xf32>
    %84 = arith.mulf %79, %83 : vector<8x128xf32>
    %85 = arith.truncf %84 : vector<8x128xf32> to vector<8x128xbf16>
    %86 = arith.index_cast %c1_i32 : i32 to index
    %c0_32 = arith.constant 0 : index
    %c0_33 = arith.constant 0 : index
    %87 = vector.load %arg4[%86, %c0_32, %c0_33] : memref<8x8x128xbf16, #tpu.memory_space<vmem>>, vector<1x8x128xbf16>
    %88 = vector.shape_cast %87 : vector<1x8x128xbf16> to vector<8x128xbf16>
    %89 = vector.shape_cast %85 : vector<8x128xbf16> to vector<1x8x128xbf16>
    tpu.vector_store %arg4[%86, %c0_32, %c0_33], %89 {strides = array<i32>} : memref<8x8x128xbf16, #tpu.memory_space<vmem>>, vector<1x8x128xbf16>,
    %c2_i32 = arith.constant 2 : i32
    %cst_34 = arith.constant dense<0.000000e+00> : vector<8x512xf32>
    %90 = tpu.matmul %85, %3, %cst_34 {dimension_numbers = #tpu.dot_dimension_numbers<[1], [0], [0], [1], [0, 0, 1, 1], [], []>} : vector<8x128xbf16>, vector<128x512xbf16>, vector<8x512xf32> -> vector<8x512xf32>
    %91 = arith.index_cast %c2_i32 : i32 to index
    %c0_35 = arith.constant 0 : index
    %c0_36 = arith.constant 0 : index
    %92 = vector.load %arg2[%91, %c0_35, %c0_36] : memref<8x8x512xbf16, #tpu.memory_space<vmem>>, vector<1x8x512xbf16>
    %93 = vector.shape_cast %92 : vector<1x8x512xbf16> to vector<8x512xbf16>
    %94 = arith.extf %93 : vector<8x512xbf16> to vector<8x512xf32>
    %95 = arith.addf %90, %94 : vector<8x512xf32>
    %96 = vector.extract_strided_slice %95 {offsets = [0, 0], sizes = [8, 128], strides = [1, 1]} : vector<8x512xf32> to vector<8x128xf32>
    %cst_37 = arith.constant 5.000000e-01 : f32
    %97 = vector.broadcast %cst_37 : f32 to vector<8x128xf32>
    %98 = arith.mulf %97, %96 : vector<8x128xf32>
    %99 = math.tanh %98 : vector<8x128xf32>
    %cst_38 = arith.constant 5.000000e-01 : f32
    %100 = vector.broadcast %cst_38 : f32 to vector<8x128xf32>
    %101 = arith.mulf %100, %99 : vector<8x128xf32>
    %cst_39 = arith.constant 5.000000e-01 : f32
    %102 = vector.broadcast %cst_39 : f32 to vector<8x128xf32>
    %103 = arith.addf %101, %102 : vector<8x128xf32>
    %104 = vector.extract_strided_slice %95 {offsets = [0, 128], sizes = [8, 128], strides = [1, 1]} : vector<8x512xf32> to vector<8x128xf32>
    %cst_40 = arith.constant 5.000000e-01 : f32
    %105 = vector.broadcast %cst_40 : f32 to vector<8x128xf32>
    %106 = arith.mulf %105, %104 : vector<8x128xf32>
    %107 = math.tanh %106 : vector<8x128xf32>
    %cst_41 = arith.constant 5.000000e-01 : f32
    %108 = vector.broadcast %cst_41 : f32 to vector<8x128xf32>
    %109 = arith.mulf %108, %107 : vector<8x128xf32>
    %cst_42 = arith.constant 5.000000e-01 : f32
    %110 = vector.broadcast %cst_42 : f32 to vector<8x128xf32>
    %111 = arith.addf %109, %110 : vector<8x128xf32>
    %112 = vector.extract_strided_slice %95 {offsets = [0, 256], sizes = [8, 128], strides = [1, 1]} : vector<8x512xf32> to vector<8x128xf32>
    %113 = math.tanh %112 : vector<8x128xf32>
    %114 = vector.extract_strided_slice %95 {offsets = [0, 384], sizes = [8, 128], strides = [1, 1]} : vector<8x512xf32> to vector<8x128xf32>
    %cst_43 = arith.constant 5.000000e-01 : f32
    %115 = vector.broadcast %cst_43 : f32 to vector<8x128xf32>
    %116 = arith.mulf %115, %114 : vector<8x128xf32>
    %117 = math.tanh %116 : vector<8x128xf32>
    %cst_44 = arith.constant 5.000000e-01 : f32
    %118 = vector.broadcast %cst_44 : f32 to vector<8x128xf32>
    %119 = arith.mulf %118, %117 : vector<8x128xf32>
    %cst_45 = arith.constant 5.000000e-01 : f32
    %120 = vector.broadcast %cst_45 : f32 to vector<8x128xf32>
    %121 = arith.addf %119, %120 : vector<8x128xf32>
    %122 = arith.mulf %111, %82 : vector<8x128xf32>
    %123 = arith.mulf %103, %113 : vector<8x128xf32>
    %124 = arith.addf %122, %123 : vector<8x128xf32>
    %125 = math.tanh %124 : vector<8x128xf32>
    %126 = arith.mulf %121, %125 : vector<8x128xf32>
    %127 = arith.truncf %126 : vector<8x128xf32> to vector<8x128xbf16>
    %128 = arith.index_cast %c2_i32 : i32 to index
    %c0_46 = arith.constant 0 : index
    %c0_47 = arith.constant 0 : index
    %129 = vector.load %arg4[%128, %c0_46, %c0_47] : memref<8x8x128xbf16, #tpu.memory_space<vmem>>, vector<1x8x128xbf16>
    %130 = vector.shape_cast %129 : vector<1x8x128xbf16> to vector<8x128xbf16>
    %131 = vector.shape_cast %127 : vector<8x128xbf16> to vector<1x8x128xbf16>
    tpu.vector_store %arg4[%128, %c0_46, %c0_47], %131 {strides = array<i32>} : memref<8x8x128xbf16, #tpu.memory_space<vmem>>, vector<1x8x128xbf16>,
    %c3_i32 = arith.constant 3 : i32
    %cst_48 = arith.constant dense<0.000000e+00> : vector<8x512xf32>
    %132 = tpu.matmul %127, %3, %cst_48 {dimension_numbers = #tpu.dot_dimension_numbers<[1], [0], [0], [1], [0, 0, 1, 1], [], []>} : vector<8x128xbf16>, vector<128x512xbf16>, vector<8x512xf32> -> vector<8x512xf32>
    %133 = arith.index_cast %c3_i32 : i32 to index
    %c0_49 = arith.constant 0 : index
    %c0_50 = arith.constant 0 : index
    %134 = vector.load %arg2[%133, %c0_49, %c0_50] : memref<8x8x512xbf16, #tpu.memory_space<vmem>>, vector<1x8x512xbf16>
    %135 = vector.shape_cast %134 : vector<1x8x512xbf16> to vector<8x512xbf16>
    %136 = arith.extf %135 : vector<8x512xbf16> to vector<8x512xf32>
    %137 = arith.addf %132, %136 : vector<8x512xf32>
    %138 = vector.extract_strided_slice %137 {offsets = [0, 0], sizes = [8, 128], strides = [1, 1]} : vector<8x512xf32> to vector<8x128xf32>
    %cst_51 = arith.constant 5.000000e-01 : f32
    %139 = vector.broadcast %cst_51 : f32 to vector<8x128xf32>
    %140 = arith.mulf %139, %138 : vector<8x128xf32>
    %141 = math.tanh %140 : vector<8x128xf32>
    %cst_52 = arith.constant 5.000000e-01 : f32
    %142 = vector.broadcast %cst_52 : f32 to vector<8x128xf32>
    %143 = arith.mulf %142, %141 : vector<8x128xf32>
    %cst_53 = arith.constant 5.000000e-01 : f32
    %144 = vector.broadcast %cst_53 : f32 to vector<8x128xf32>
    %145 = arith.addf %143, %144 : vector<8x128xf32>
    %146 = vector.extract_strided_slice %137 {offsets = [0, 128], sizes = [8, 128], strides = [1, 1]} : vector<8x512xf32> to vector<8x128xf32>
    %cst_54 = arith.constant 5.000000e-01 : f32
    %147 = vector.broadcast %cst_54 : f32 to vector<8x128xf32>
    %148 = arith.mulf %147, %146 : vector<8x128xf32>
    %149 = math.tanh %148 : vector<8x128xf32>
    %cst_55 = arith.constant 5.000000e-01 : f32
    %150 = vector.broadcast %cst_55 : f32 to vector<8x128xf32>
    %151 = arith.mulf %150, %149 : vector<8x128xf32>
    %cst_56 = arith.constant 5.000000e-01 : f32
    %152 = vector.broadcast %cst_56 : f32 to vector<8x128xf32>
    %153 = arith.addf %151, %152 : vector<8x128xf32>
    %154 = vector.extract_strided_slice %137 {offsets = [0, 256], sizes = [8, 128], strides = [1, 1]} : vector<8x512xf32> to vector<8x128xf32>
    %155 = math.tanh %154 : vector<8x128xf32>
    %156 = vector.extract_strided_slice %137 {offsets = [0, 384], sizes = [8, 128], strides = [1, 1]} : vector<8x512xf32> to vector<8x128xf32>
    %cst_57 = arith.constant 5.000000e-01 : f32
    %157 = vector.broadcast %cst_57 : f32 to vector<8x128xf32>
    %158 = arith.mulf %157, %156 : vector<8x128xf32>
    %159 = math.tanh %158 : vector<8x128xf32>
    %cst_58 = arith.constant 5.000000e-01 : f32
    %160 = vector.broadcast %cst_58 : f32 to vector<8x128xf32>
    %161 = arith.mulf %160, %159 : vector<8x128xf32>
    %cst_59 = arith.constant 5.000000e-01 : f32
    %162 = vector.broadcast %cst_59 : f32 to vector<8x128xf32>
    %163 = arith.addf %161, %162 : vector<8x128xf32>
    %164 = arith.mulf %153, %124 : vector<8x128xf32>
    %165 = arith.mulf %145, %155 : vector<8x128xf32>
    %166 = arith.addf %164, %165 : vector<8x128xf32>
    %167 = math.tanh %166 : vector<8x128xf32>
    %168 = arith.mulf %163, %167 : vector<8x128xf32>
    %169 = arith.truncf %168 : vector<8x128xf32> to vector<8x128xbf16>
    %170 = arith.index_cast %c3_i32 : i32 to index
    %c0_60 = arith.constant 0 : index
    %c0_61 = arith.constant 0 : index
    %171 = vector.load %arg4[%170, %c0_60, %c0_61] : memref<8x8x128xbf16, #tpu.memory_space<vmem>>, vector<1x8x128xbf16>
    %172 = vector.shape_cast %171 : vector<1x8x128xbf16> to vector<8x128xbf16>
    %173 = vector.shape_cast %169 : vector<8x128xbf16> to vector<1x8x128xbf16>
    tpu.vector_store %arg4[%170, %c0_60, %c0_61], %173 {strides = array<i32>} : memref<8x8x128xbf16, #tpu.memory_space<vmem>>, vector<1x8x128xbf16>,
    %c4_i32 = arith.constant 4 : i32
    %cst_62 = arith.constant dense<0.000000e+00> : vector<8x512xf32>
    %174 = tpu.matmul %169, %3, %cst_62 {dimension_numbers = #tpu.dot_dimension_numbers<[1], [0], [0], [1], [0, 0, 1, 1], [], []>} : vector<8x128xbf16>, vector<128x512xbf16>, vector<8x512xf32> -> vector<8x512xf32>
    %175 = arith.index_cast %c4_i32 : i32 to index
    %c0_63 = arith.constant 0 : index
    %c0_64 = arith.constant 0 : index
    %176 = vector.load %arg2[%175, %c0_63, %c0_64] : memref<8x8x512xbf16, #tpu.memory_space<vmem>>, vector<1x8x512xbf16>
    %177 = vector.shape_cast %176 : vector<1x8x512xbf16> to vector<8x512xbf16>
    %178 = arith.extf %177 : vector<8x512xbf16> to vector<8x512xf32>
    %179 = arith.addf %174, %178 : vector<8x512xf32>
    %180 = vector.extract_strided_slice %179 {offsets = [0, 0], sizes = [8, 128], strides = [1, 1]} : vector<8x512xf32> to vector<8x128xf32>
    %cst_65 = arith.constant 5.000000e-01 : f32
    %181 = vector.broadcast %cst_65 : f32 to vector<8x128xf32>
    %182 = arith.mulf %181, %180 : vector<8x128xf32>
    %183 = math.tanh %182 : vector<8x128xf32>
    %cst_66 = arith.constant 5.000000e-01 : f32
    %184 = vector.broadcast %cst_66 : f32 to vector<8x128xf32>
    %185 = arith.mulf %184, %183 : vector<8x128xf32>
    %cst_67 = arith.constant 5.000000e-01 : f32
    %186 = vector.broadcast %cst_67 : f32 to vector<8x128xf32>
    %187 = arith.addf %185, %186 : vector<8x128xf32>
    %188 = vector.extract_strided_slice %179 {offsets = [0, 128], sizes = [8, 128], strides = [1, 1]} : vector<8x512xf32> to vector<8x128xf32>
    %cst_68 = arith.constant 5.000000e-01 : f32
    %189 = vector.broadcast %cst_68 : f32 to vector<8x128xf32>
    %190 = arith.mulf %189, %188 : vector<8x128xf32>
    %191 = math.tanh %190 : vector<8x128xf32>
    %cst_69 = arith.constant 5.000000e-01 : f32
    %192 = vector.broadcast %cst_69 : f32 to vector<8x128xf32>
    %193 = arith.mulf %192, %191 : vector<8x128xf32>
    %cst_70 = arith.constant 5.000000e-01 : f32
    %194 = vector.broadcast %cst_70 : f32 to vector<8x128xf32>
    %195 = arith.addf %193, %194 : vector<8x128xf32>
    %196 = vector.extract_strided_slice %179 {offsets = [0, 256], sizes = [8, 128], strides = [1, 1]} : vector<8x512xf32> to vector<8x128xf32>
    %197 = math.tanh %196 : vector<8x128xf32>
    %198 = vector.extract_strided_slice %179 {offsets = [0, 384], sizes = [8, 128], strides = [1, 1]} : vector<8x512xf32> to vector<8x128xf32>
    %cst_71 = arith.constant 5.000000e-01 : f32
    %199 = vector.broadcast %cst_71 : f32 to vector<8x128xf32>
    %200 = arith.mulf %199, %198 : vector<8x128xf32>
    %201 = math.tanh %200 : vector<8x128xf32>
    %cst_72 = arith.constant 5.000000e-01 : f32
    %202 = vector.broadcast %cst_72 : f32 to vector<8x128xf32>
    %203 = arith.mulf %202, %201 : vector<8x128xf32>
    %cst_73 = arith.constant 5.000000e-01 : f32
    %204 = vector.broadcast %cst_73 : f32 to vector<8x128xf32>
    %205 = arith.addf %203, %204 : vector<8x128xf32>
    %206 = arith.mulf %195, %166 : vector<8x128xf32>
    %207 = arith.mulf %187, %197 : vector<8x128xf32>
    %208 = arith.addf %206, %207 : vector<8x128xf32>
    %209 = math.tanh %208 : vector<8x128xf32>
    %210 = arith.mulf %205, %209 : vector<8x128xf32>
    %211 = arith.truncf %210 : vector<8x128xf32> to vector<8x128xbf16>
    %212 = arith.index_cast %c4_i32 : i32 to index
    %c0_74 = arith.constant 0 : index
    %c0_75 = arith.constant 0 : index
    %213 = vector.load %arg4[%212, %c0_74, %c0_75] : memref<8x8x128xbf16, #tpu.memory_space<vmem>>, vector<1x8x128xbf16>
    %214 = vector.shape_cast %213 : vector<1x8x128xbf16> to vector<8x128xbf16>
    %215 = vector.shape_cast %211 : vector<8x128xbf16> to vector<1x8x128xbf16>
    tpu.vector_store %arg4[%212, %c0_74, %c0_75], %215 {strides = array<i32>} : memref<8x8x128xbf16, #tpu.memory_space<vmem>>, vector<1x8x128xbf16>,
    %c5_i32 = arith.constant 5 : i32
    %cst_76 = arith.constant dense<0.000000e+00> : vector<8x512xf32>
    %216 = tpu.matmul %211, %3, %cst_76 {dimension_numbers = #tpu.dot_dimension_numbers<[1], [0], [0], [1], [0, 0, 1, 1], [], []>} : vector<8x128xbf16>, vector<128x512xbf16>, vector<8x512xf32> -> vector<8x512xf32>
    %217 = arith.index_cast %c5_i32 : i32 to index
    %c0_77 = arith.constant 0 : index
    %c0_78 = arith.constant 0 : index
    %218 = vector.load %arg2[%217, %c0_77, %c0_78] : memref<8x8x512xbf16, #tpu.memory_space<vmem>>, vector<1x8x512xbf16>
    %219 = vector.shape_cast %218 : vector<1x8x512xbf16> to vector<8x512xbf16>
    %220 = arith.extf %219 : vector<8x512xbf16> to vector<8x512xf32>
    %221 = arith.addf %216, %220 : vector<8x512xf32>
    %222 = vector.extract_strided_slice %221 {offsets = [0, 0], sizes = [8, 128], strides = [1, 1]} : vector<8x512xf32> to vector<8x128xf32>
    %cst_79 = arith.constant 5.000000e-01 : f32
    %223 = vector.broadcast %cst_79 : f32 to vector<8x128xf32>
    %224 = arith.mulf %223, %222 : vector<8x128xf32>
    %225 = math.tanh %224 : vector<8x128xf32>
    %cst_80 = arith.constant 5.000000e-01 : f32
    %226 = vector.broadcast %cst_80 : f32 to vector<8x128xf32>
    %227 = arith.mulf %226, %225 : vector<8x128xf32>
    %cst_81 = arith.constant 5.000000e-01 : f32
    %228 = vector.broadcast %cst_81 : f32 to vector<8x128xf32>
    %229 = arith.addf %227, %228 : vector<8x128xf32>
    %230 = vector.extract_strided_slice %221 {offsets = [0, 128], sizes = [8, 128], strides = [1, 1]} : vector<8x512xf32> to vector<8x128xf32>
    %cst_82 = arith.constant 5.000000e-01 : f32
    %231 = vector.broadcast %cst_82 : f32 to vector<8x128xf32>
    %232 = arith.mulf %231, %230 : vector<8x128xf32>
    %233 = math.tanh %232 : vector<8x128xf32>
    %cst_83 = arith.constant 5.000000e-01 : f32
    %234 = vector.broadcast %cst_83 : f32 to vector<8x128xf32>
    %235 = arith.mulf %234, %233 : vector<8x128xf32>
    %cst_84 = arith.constant 5.000000e-01 : f32
    %236 = vector.broadcast %cst_84 : f32 to vector<8x128xf32>
    %237 = arith.addf %235, %236 : vector<8x128xf32>
    %238 = vector.extract_strided_slice %221 {offsets = [0, 256], sizes = [8, 128], strides = [1, 1]} : vector<8x512xf32> to vector<8x128xf32>
    %239 = math.tanh %238 : vector<8x128xf32>
    %240 = vector.extract_strided_slice %221 {offsets = [0, 384], sizes = [8, 128], strides = [1, 1]} : vector<8x512xf32> to vector<8x128xf32>
    %cst_85 = arith.constant 5.000000e-01 : f32
    %241 = vector.broadcast %cst_85 : f32 to vector<8x128xf32>
    %242 = arith.mulf %241, %240 : vector<8x128xf32>
    %243 = math.tanh %242 : vector<8x128xf32>
    %cst_86 = arith.constant 5.000000e-01 : f32
    %244 = vector.broadcast %cst_86 : f32 to vector<8x128xf32>
    %245 = arith.mulf %244, %243 : vector<8x128xf32>
    %cst_87 = arith.constant 5.000000e-01 : f32
    %246 = vector.broadcast %cst_87 : f32 to vector<8x128xf32>
    %247 = arith.addf %245, %246 : vector<8x128xf32>
    %248 = arith.mulf %237, %208 : vector<8x128xf32>
    %249 = arith.mulf %229, %239 : vector<8x128xf32>
    %250 = arith.addf %248, %249 : vector<8x128xf32>
    %251 = math.tanh %250 : vector<8x128xf32>
    %252 = arith.mulf %247, %251 : vector<8x128xf32>
    %253 = arith.truncf %252 : vector<8x128xf32> to vector<8x128xbf16>
    %254 = arith.index_cast %c5_i32 : i32 to index
    %c0_88 = arith.constant 0 : index
    %c0_89 = arith.constant 0 : index
    %255 = vector.load %arg4[%254, %c0_88, %c0_89] : memref<8x8x128xbf16, #tpu.memory_space<vmem>>, vector<1x8x128xbf16>
    %256 = vector.shape_cast %255 : vector<1x8x128xbf16> to vector<8x128xbf16>
    %257 = vector.shape_cast %253 : vector<8x128xbf16> to vector<1x8x128xbf16>
    tpu.vector_store %arg4[%254, %c0_88, %c0_89], %257 {strides = array<i32>} : memref<8x8x128xbf16, #tpu.memory_space<vmem>>, vector<1x8x128xbf16>,
    %c6_i32 = arith.constant 6 : i32
    %cst_90 = arith.constant dense<0.000000e+00> : vector<8x512xf32>
    %258 = tpu.matmul %253, %3, %cst_90 {dimension_numbers = #tpu.dot_dimension_numbers<[1], [0], [0], [1], [0, 0, 1, 1], [], []>} : vector<8x128xbf16>, vector<128x512xbf16>, vector<8x512xf32> -> vector<8x512xf32>
    %259 = arith.index_cast %c6_i32 : i32 to index
    %c0_91 = arith.constant 0 : index
    %c0_92 = arith.constant 0 : index
    %260 = vector.load %arg2[%259, %c0_91, %c0_92] : memref<8x8x512xbf16, #tpu.memory_space<vmem>>, vector<1x8x512xbf16>
    %261 = vector.shape_cast %260 : vector<1x8x512xbf16> to vector<8x512xbf16>
    %262 = arith.extf %261 : vector<8x512xbf16> to vector<8x512xf32>
    %263 = arith.addf %258, %262 : vector<8x512xf32>
    %264 = vector.extract_strided_slice %263 {offsets = [0, 0], sizes = [8, 128], strides = [1, 1]} : vector<8x512xf32> to vector<8x128xf32>
    %cst_93 = arith.constant 5.000000e-01 : f32
    %265 = vector.broadcast %cst_93 : f32 to vector<8x128xf32>
    %266 = arith.mulf %265, %264 : vector<8x128xf32>
    %267 = math.tanh %266 : vector<8x128xf32>
    %cst_94 = arith.constant 5.000000e-01 : f32
    %268 = vector.broadcast %cst_94 : f32 to vector<8x128xf32>
    %269 = arith.mulf %268, %267 : vector<8x128xf32>
    %cst_95 = arith.constant 5.000000e-01 : f32
    %270 = vector.broadcast %cst_95 : f32 to vector<8x128xf32>
    %271 = arith.addf %269, %270 : vector<8x128xf32>
    %272 = vector.extract_strided_slice %263 {offsets = [0, 128], sizes = [8, 128], strides = [1, 1]} : vector<8x512xf32> to vector<8x128xf32>
    %cst_96 = arith.constant 5.000000e-01 : f32
    %273 = vector.broadcast %cst_96 : f32 to vector<8x128xf32>
    %274 = arith.mulf %273, %272 : vector<8x128xf32>
    %275 = math.tanh %274 : vector<8x128xf32>
    %cst_97 = arith.constant 5.000000e-01 : f32
    %276 = vector.broadcast %cst_97 : f32 to vector<8x128xf32>
    %277 = arith.mulf %276, %275 : vector<8x128xf32>
    %cst_98 = arith.constant 5.000000e-01 : f32
    %278 = vector.broadcast %cst_98 : f32 to vector<8x128xf32>
    %279 = arith.addf %277, %278 : vector<8x128xf32>
    %280 = vector.extract_strided_slice %263 {offsets = [0, 256], sizes = [8, 128], strides = [1, 1]} : vector<8x512xf32> to vector<8x128xf32>
    %281 = math.tanh %280 : vector<8x128xf32>
    %282 = vector.extract_strided_slice %263 {offsets = [0, 384], sizes = [8, 128], strides = [1, 1]} : vector<8x512xf32> to vector<8x128xf32>
    %cst_99 = arith.constant 5.000000e-01 : f32
    %283 = vector.broadcast %cst_99 : f32 to vector<8x128xf32>
    %284 = arith.mulf %283, %282 : vector<8x128xf32>
    %285 = math.tanh %284 : vector<8x128xf32>
    %cst_100 = arith.constant 5.000000e-01 : f32
    %286 = vector.broadcast %cst_100 : f32 to vector<8x128xf32>
    %287 = arith.mulf %286, %285 : vector<8x128xf32>
    %cst_101 = arith.constant 5.000000e-01 : f32
    %288 = vector.broadcast %cst_101 : f32 to vector<8x128xf32>
    %289 = arith.addf %287, %288 : vector<8x128xf32>
    %290 = arith.mulf %279, %250 : vector<8x128xf32>
    %291 = arith.mulf %271, %281 : vector<8x128xf32>
    %292 = arith.addf %290, %291 : vector<8x128xf32>
    %293 = math.tanh %292 : vector<8x128xf32>
    %294 = arith.mulf %289, %293 : vector<8x128xf32>
    %295 = arith.truncf %294 : vector<8x128xf32> to vector<8x128xbf16>
    %296 = arith.index_cast %c6_i32 : i32 to index
    %c0_102 = arith.constant 0 : index
    %c0_103 = arith.constant 0 : index
    %297 = vector.load %arg4[%296, %c0_102, %c0_103] : memref<8x8x128xbf16, #tpu.memory_space<vmem>>, vector<1x8x128xbf16>
    %298 = vector.shape_cast %297 : vector<1x8x128xbf16> to vector<8x128xbf16>
    %299 = vector.shape_cast %295 : vector<8x128xbf16> to vector<1x8x128xbf16>
    tpu.vector_store %arg4[%296, %c0_102, %c0_103], %299 {strides = array<i32>} : memref<8x8x128xbf16, #tpu.memory_space<vmem>>, vector<1x8x128xbf16>,
    %c7_i32 = arith.constant 7 : i32
    %cst_104 = arith.constant dense<0.000000e+00> : vector<8x512xf32>
    %300 = tpu.matmul %295, %3, %cst_104 {dimension_numbers = #tpu.dot_dimension_numbers<[1], [0], [0], [1], [0, 0, 1, 1], [], []>} : vector<8x128xbf16>, vector<128x512xbf16>, vector<8x512xf32> -> vector<8x512xf32>
    %301 = arith.index_cast %c7_i32 : i32 to index
    %c0_105 = arith.constant 0 : index
    %c0_106 = arith.constant 0 : index
    %302 = vector.load %arg2[%301, %c0_105, %c0_106] : memref<8x8x512xbf16, #tpu.memory_space<vmem>>, vector<1x8x512xbf16>
    %303 = vector.shape_cast %302 : vector<1x8x512xbf16> to vector<8x512xbf16>
    %304 = arith.extf %303 : vector<8x512xbf16> to vector<8x512xf32>
    %305 = arith.addf %300, %304 : vector<8x512xf32>
    %306 = vector.extract_strided_slice %305 {offsets = [0, 0], sizes = [8, 128], strides = [1, 1]} : vector<8x512xf32> to vector<8x128xf32>
    %cst_107 = arith.constant 5.000000e-01 : f32
    %307 = vector.broadcast %cst_107 : f32 to vector<8x128xf32>
    %308 = arith.mulf %307, %306 : vector<8x128xf32>
    %309 = math.tanh %308 : vector<8x128xf32>
    %cst_108 = arith.constant 5.000000e-01 : f32
    %310 = vector.broadcast %cst_108 : f32 to vector<8x128xf32>
    %311 = arith.mulf %310, %309 : vector<8x128xf32>
    %cst_109 = arith.constant 5.000000e-01 : f32
    %312 = vector.broadcast %cst_109 : f32 to vector<8x128xf32>
    %313 = arith.addf %311, %312 : vector<8x128xf32>
    %314 = vector.extract_strided_slice %305 {offsets = [0, 128], sizes = [8, 128], strides = [1, 1]} : vector<8x512xf32> to vector<8x128xf32>
    %cst_110 = arith.constant 5.000000e-01 : f32
    %315 = vector.broadcast %cst_110 : f32 to vector<8x128xf32>
    %316 = arith.mulf %315, %314 : vector<8x128xf32>
    %317 = math.tanh %316 : vector<8x128xf32>
    %cst_111 = arith.constant 5.000000e-01 : f32
    %318 = vector.broadcast %cst_111 : f32 to vector<8x128xf32>
    %319 = arith.mulf %318, %317 : vector<8x128xf32>
    %cst_112 = arith.constant 5.000000e-01 : f32
    %320 = vector.broadcast %cst_112 : f32 to vector<8x128xf32>
    %321 = arith.addf %319, %320 : vector<8x128xf32>
    %322 = vector.extract_strided_slice %305 {offsets = [0, 256], sizes = [8, 128], strides = [1, 1]} : vector<8x512xf32> to vector<8x128xf32>
    %323 = math.tanh %322 : vector<8x128xf32>
    %324 = vector.extract_strided_slice %305 {offsets = [0, 384], sizes = [8, 128], strides = [1, 1]} : vector<8x512xf32> to vector<8x128xf32>
    %cst_113 = arith.constant 5.000000e-01 : f32
    %325 = vector.broadcast %cst_113 : f32 to vector<8x128xf32>
    %326 = arith.mulf %325, %324 : vector<8x128xf32>
    %327 = math.tanh %326 : vector<8x128xf32>
    %cst_114 = arith.constant 5.000000e-01 : f32
    %328 = vector.broadcast %cst_114 : f32 to vector<8x128xf32>
    %329 = arith.mulf %328, %327 : vector<8x128xf32>
    %cst_115 = arith.constant 5.000000e-01 : f32
    %330 = vector.broadcast %cst_115 : f32 to vector<8x128xf32>
    %331 = arith.addf %329, %330 : vector<8x128xf32>
    %332 = arith.mulf %321, %292 : vector<8x128xf32>
    %333 = arith.mulf %313, %323 : vector<8x128xf32>
    %334 = arith.addf %332, %333 : vector<8x128xf32>
    %335 = math.tanh %334 : vector<8x128xf32>
    %336 = arith.mulf %331, %335 : vector<8x128xf32>
    %337 = arith.truncf %336 : vector<8x128xf32> to vector<8x128xbf16>
    %338 = arith.index_cast %c7_i32 : i32 to index
    %c0_116 = arith.constant 0 : index
    %c0_117 = arith.constant 0 : index
    %339 = vector.load %arg4[%338, %c0_116, %c0_117] : memref<8x8x128xbf16, #tpu.memory_space<vmem>>, vector<1x8x128xbf16>
    %340 = vector.shape_cast %339 : vector<1x8x128xbf16> to vector<8x128xbf16>
    %341 = vector.shape_cast %337 : vector<8x128xbf16> to vector<1x8x128xbf16>
    tpu.vector_store %arg4[%338, %c0_116, %c0_117], %341 {strides = array<i32>} : memref<8x8x128xbf16, #tpu.memory_space<vmem>>, vector<1x8x128xbf16>,
    %c8_i32 = arith.constant 8 : i32
    %c0_118 = arith.constant 0 : index
    %c0_119 = arith.constant 0 : index
    %342 = vector.load %arg5[%c0_118, %c0_119] : memref<8x128xbf16, #tpu.memory_space<vmem>>, vector<8x128xbf16>
    tpu.vector_store %arg5[%c0_118, %c0_119], %337 {strides = array<i32>} : memref<8x128xbf16, #tpu.memory_space<vmem>>, vector<8x128xbf16>,
    %c0_120 = arith.constant 0 : index
    %c0_121 = arith.constant 0 : index
    %343 = vector.load %arg6[%c0_120, %c0_121] : memref<8x128xf32, #tpu.memory_space<vmem>>, vector<8x128xf32>
    tpu.vector_store %arg6[%c0_120, %c0_121], %334 {strides = array<i32>} : memref<8x128xf32, #tpu.memory_space<vmem>>, vector<8x128xf32>,
    return
  }
  func.func @transform_0(%arg0: i32, %arg1: i32) -> (i32, i32, i32) {
    %c0_i32 = arith.constant 0 : i32
    %c0_i32_0 = arith.constant 0 : i32
    return %arg1, %arg0, %c0_i32 : i32, i32, i32
  }
  func.func @transform_1(%arg0: i32, %arg1: i32) -> (i32, i32) {
    %c0_i32 = arith.constant 0 : i32
    %c0_i32_0 = arith.constant 0 : i32
    %c0_i32_1 = arith.constant 0 : i32
    return %c0_i32, %c0_i32_0 : i32, i32
  }
  func.func @transform_2(%arg0: i32, %arg1: i32) -> (i32, i32, i32) {
    %c0_i32 = arith.constant 0 : i32
    %c0_i32_0 = arith.constant 0 : i32
    return %arg1, %arg0, %c0_i32 : i32, i32, i32
  }
}

module attributes {stable_mosaic.version = 11 : i64} {
  func.func @_lstm_last_fc_kernel(%arg0: i32, %arg1: i32, %arg2: memref<8x8x512xbf16, #tpu.memory_space<vmem>>, %arg3: memref<128x512xbf16, #tpu.memory_space<vmem>>, %arg4: memref<128x128xbf16, #tpu.memory_space<vmem>>, %arg5: memref<1x128xf32, #tpu.memory_space<vmem>>, %arg6: memref<8x128xf32, #tpu.memory_space<vmem>>, %arg7: memref<8x128xbf16, #tpu.memory_space<vmem>>, %arg8: memref<8x128xf32, #tpu.memory_space<vmem>>) attributes {dimension_semantics = [#tpu.dimension_semantics<parallel>, #tpu.dimension_semantics<arbitrary>], iteration_bounds = array<i64: 1, 1>, scalar_prefetch = 0 : i64, scratch_operands = 2 : i64, tpu.core_type = #tpu.core_type<tc>, window_params = [{transform_indices = @transform_0, window_bounds = array<i64: 8, 8, 512>}, {pipeline_mode = #tpu.pipeline_mode<synchronous>, transform_indices = @transform_1, window_bounds = array<i64: 128, 512>}, {pipeline_mode = #tpu.pipeline_mode<synchronous>, transform_indices = @transform_2, window_bounds = array<i64: 128, 128>}, {pipeline_mode = #tpu.pipeline_mode<synchronous>, transform_indices = @transform_3, window_bounds = array<i64: 1, 128>}, {transform_indices = @transform_4, window_bounds = array<i64: 8, 128>}]} {
    %c0_i32 = arith.constant 0 : i32
    %0 = arith.cmpi eq, %arg1, %c0_i32 : i32
    %1 = arith.extui %0 : i1 to i32
    %c0_i32_0 = arith.constant 0 : i32
    %2 = arith.cmpi ne, %1, %c0_i32_0 : i32
    scf.if %2 {
      %cst_108 = arith.constant 0.000000e+00 : bf16
      %315 = vector.broadcast %cst_108 : bf16 to vector<8x128xbf16>
      %c0_109 = arith.constant 0 : index
      %c0_110 = arith.constant 0 : index
      %316 = vector.load %arg7[%c0_109, %c0_110] : memref<8x128xbf16, #tpu.memory_space<vmem>>, vector<8x128xbf16>
      tpu.vector_store %arg7[%c0_109, %c0_110], %315 {strides = array<i32>} : memref<8x128xbf16, #tpu.memory_space<vmem>>, vector<8x128xbf16>,
      %cst_111 = arith.constant 0.000000e+00 : f32
      %317 = vector.broadcast %cst_111 : f32 to vector<8x128xf32>
      %c0_112 = arith.constant 0 : index
      %c0_113 = arith.constant 0 : index
      %318 = vector.load %arg8[%c0_112, %c0_113] : memref<8x128xf32, #tpu.memory_space<vmem>>, vector<8x128xf32>
      tpu.vector_store %arg8[%c0_112, %c0_113], %317 {strides = array<i32>} : memref<8x128xf32, #tpu.memory_space<vmem>>, vector<8x128xf32>,
    } else {
    }
    %c0 = arith.constant 0 : index
    %c0_1 = arith.constant 0 : index
    %3 = vector.load %arg3[%c0, %c0_1] : memref<128x512xbf16, #tpu.memory_space<vmem>>, vector<128x512xbf16>
    %c0_2 = arith.constant 0 : index
    %c0_3 = arith.constant 0 : index
    %4 = vector.load %arg7[%c0_2, %c0_3] : memref<8x128xbf16, #tpu.memory_space<vmem>>, vector<8x128xbf16>
    %c0_4 = arith.constant 0 : index
    %c0_5 = arith.constant 0 : index
    %5 = vector.load %arg8[%c0_4, %c0_5] : memref<8x128xf32, #tpu.memory_space<vmem>>, vector<8x128xf32>
    %c0_i32_6 = arith.constant 0 : i32
    %cst = arith.constant dense<0.000000e+00> : vector<8x512xf32>
    %6 = tpu.matmul %4, %3, %cst {dimension_numbers = #tpu.dot_dimension_numbers<[1], [0], [0], [1], [0, 0, 1, 1], [], []>} : vector<8x128xbf16>, vector<128x512xbf16>, vector<8x512xf32> -> vector<8x512xf32>
    %7 = arith.index_cast %c0_i32_6 : i32 to index
    %c0_7 = arith.constant 0 : index
    %c0_8 = arith.constant 0 : index
    %8 = vector.load %arg2[%7, %c0_7, %c0_8] : memref<8x8x512xbf16, #tpu.memory_space<vmem>>, vector<1x8x512xbf16>
    %9 = vector.shape_cast %8 : vector<1x8x512xbf16> to vector<8x512xbf16>
    %10 = arith.extf %9 : vector<8x512xbf16> to vector<8x512xf32>
    %11 = arith.addf %6, %10 : vector<8x512xf32>
    %12 = vector.extract_strided_slice %11 {offsets = [0, 0], sizes = [8, 128], strides = [1, 1]} : vector<8x512xf32> to vector<8x128xf32>
    %cst_9 = arith.constant 5.000000e-01 : f32
    %13 = vector.broadcast %cst_9 : f32 to vector<8x128xf32>
    %14 = arith.mulf %13, %12 : vector<8x128xf32>
    %15 = math.tanh %14 : vector<8x128xf32>
    %cst_10 = arith.constant 5.000000e-01 : f32
    %16 = vector.broadcast %cst_10 : f32 to vector<8x128xf32>
    %17 = arith.mulf %16, %15 : vector<8x128xf32>
    %cst_11 = arith.constant 5.000000e-01 : f32
    %18 = vector.broadcast %cst_11 : f32 to vector<8x128xf32>
    %19 = arith.addf %17, %18 : vector<8x128xf32>
    %20 = vector.extract_strided_slice %11 {offsets = [0, 128], sizes = [8, 128], strides = [1, 1]} : vector<8x512xf32> to vector<8x128xf32>
    %cst_12 = arith.constant 5.000000e-01 : f32
    %21 = vector.broadcast %cst_12 : f32 to vector<8x128xf32>
    %22 = arith.mulf %21, %20 : vector<8x128xf32>
    %23 = math.tanh %22 : vector<8x128xf32>
    %cst_13 = arith.constant 5.000000e-01 : f32
    %24 = vector.broadcast %cst_13 : f32 to vector<8x128xf32>
    %25 = arith.mulf %24, %23 : vector<8x128xf32>
    %cst_14 = arith.constant 5.000000e-01 : f32
    %26 = vector.broadcast %cst_14 : f32 to vector<8x128xf32>
    %27 = arith.addf %25, %26 : vector<8x128xf32>
    %28 = vector.extract_strided_slice %11 {offsets = [0, 256], sizes = [8, 128], strides = [1, 1]} : vector<8x512xf32> to vector<8x128xf32>
    %29 = math.tanh %28 : vector<8x128xf32>
    %30 = vector.extract_strided_slice %11 {offsets = [0, 384], sizes = [8, 128], strides = [1, 1]} : vector<8x512xf32> to vector<8x128xf32>
    %cst_15 = arith.constant 5.000000e-01 : f32
    %31 = vector.broadcast %cst_15 : f32 to vector<8x128xf32>
    %32 = arith.mulf %31, %30 : vector<8x128xf32>
    %33 = math.tanh %32 : vector<8x128xf32>
    %cst_16 = arith.constant 5.000000e-01 : f32
    %34 = vector.broadcast %cst_16 : f32 to vector<8x128xf32>
    %35 = arith.mulf %34, %33 : vector<8x128xf32>
    %cst_17 = arith.constant 5.000000e-01 : f32
    %36 = vector.broadcast %cst_17 : f32 to vector<8x128xf32>
    %37 = arith.addf %35, %36 : vector<8x128xf32>
    %38 = arith.mulf %27, %5 : vector<8x128xf32>
    %39 = arith.mulf %19, %29 : vector<8x128xf32>
    %40 = arith.addf %38, %39 : vector<8x128xf32>
    %41 = math.tanh %40 : vector<8x128xf32>
    %42 = arith.mulf %37, %41 : vector<8x128xf32>
    %43 = arith.truncf %42 : vector<8x128xf32> to vector<8x128xbf16>
    %c1_i32 = arith.constant 1 : i32
    %cst_18 = arith.constant dense<0.000000e+00> : vector<8x512xf32>
    %44 = tpu.matmul %43, %3, %cst_18 {dimension_numbers = #tpu.dot_dimension_numbers<[1], [0], [0], [1], [0, 0, 1, 1], [], []>} : vector<8x128xbf16>, vector<128x512xbf16>, vector<8x512xf32> -> vector<8x512xf32>
    %45 = arith.index_cast %c1_i32 : i32 to index
    %c0_19 = arith.constant 0 : index
    %c0_20 = arith.constant 0 : index
    %46 = vector.load %arg2[%45, %c0_19, %c0_20] : memref<8x8x512xbf16, #tpu.memory_space<vmem>>, vector<1x8x512xbf16>
    %47 = vector.shape_cast %46 : vector<1x8x512xbf16> to vector<8x512xbf16>
    %48 = arith.extf %47 : vector<8x512xbf16> to vector<8x512xf32>
    %49 = arith.addf %44, %48 : vector<8x512xf32>
    %50 = vector.extract_strided_slice %49 {offsets = [0, 0], sizes = [8, 128], strides = [1, 1]} : vector<8x512xf32> to vector<8x128xf32>
    %cst_21 = arith.constant 5.000000e-01 : f32
    %51 = vector.broadcast %cst_21 : f32 to vector<8x128xf32>
    %52 = arith.mulf %51, %50 : vector<8x128xf32>
    %53 = math.tanh %52 : vector<8x128xf32>
    %cst_22 = arith.constant 5.000000e-01 : f32
    %54 = vector.broadcast %cst_22 : f32 to vector<8x128xf32>
    %55 = arith.mulf %54, %53 : vector<8x128xf32>
    %cst_23 = arith.constant 5.000000e-01 : f32
    %56 = vector.broadcast %cst_23 : f32 to vector<8x128xf32>
    %57 = arith.addf %55, %56 : vector<8x128xf32>
    %58 = vector.extract_strided_slice %49 {offsets = [0, 128], sizes = [8, 128], strides = [1, 1]} : vector<8x512xf32> to vector<8x128xf32>
    %cst_24 = arith.constant 5.000000e-01 : f32
    %59 = vector.broadcast %cst_24 : f32 to vector<8x128xf32>
    %60 = arith.mulf %59, %58 : vector<8x128xf32>
    %61 = math.tanh %60 : vector<8x128xf32>
    %cst_25 = arith.constant 5.000000e-01 : f32
    %62 = vector.broadcast %cst_25 : f32 to vector<8x128xf32>
    %63 = arith.mulf %62, %61 : vector<8x128xf32>
    %cst_26 = arith.constant 5.000000e-01 : f32
    %64 = vector.broadcast %cst_26 : f32 to vector<8x128xf32>
    %65 = arith.addf %63, %64 : vector<8x128xf32>
    %66 = vector.extract_strided_slice %49 {offsets = [0, 256], sizes = [8, 128], strides = [1, 1]} : vector<8x512xf32> to vector<8x128xf32>
    %67 = math.tanh %66 : vector<8x128xf32>
    %68 = vector.extract_strided_slice %49 {offsets = [0, 384], sizes = [8, 128], strides = [1, 1]} : vector<8x512xf32> to vector<8x128xf32>
    %cst_27 = arith.constant 5.000000e-01 : f32
    %69 = vector.broadcast %cst_27 : f32 to vector<8x128xf32>
    %70 = arith.mulf %69, %68 : vector<8x128xf32>
    %71 = math.tanh %70 : vector<8x128xf32>
    %cst_28 = arith.constant 5.000000e-01 : f32
    %72 = vector.broadcast %cst_28 : f32 to vector<8x128xf32>
    %73 = arith.mulf %72, %71 : vector<8x128xf32>
    %cst_29 = arith.constant 5.000000e-01 : f32
    %74 = vector.broadcast %cst_29 : f32 to vector<8x128xf32>
    %75 = arith.addf %73, %74 : vector<8x128xf32>
    %76 = arith.mulf %65, %40 : vector<8x128xf32>
    %77 = arith.mulf %57, %67 : vector<8x128xf32>
    %78 = arith.addf %76, %77 : vector<8x128xf32>
    %79 = math.tanh %78 : vector<8x128xf32>
    %80 = arith.mulf %75, %79 : vector<8x128xf32>
    %81 = arith.truncf %80 : vector<8x128xf32> to vector<8x128xbf16>
    %c2_i32 = arith.constant 2 : i32
    %cst_30 = arith.constant dense<0.000000e+00> : vector<8x512xf32>
    %82 = tpu.matmul %81, %3, %cst_30 {dimension_numbers = #tpu.dot_dimension_numbers<[1], [0], [0], [1], [0, 0, 1, 1], [], []>} : vector<8x128xbf16>, vector<128x512xbf16>, vector<8x512xf32> -> vector<8x512xf32>
    %83 = arith.index_cast %c2_i32 : i32 to index
    %c0_31 = arith.constant 0 : index
    %c0_32 = arith.constant 0 : index
    %84 = vector.load %arg2[%83, %c0_31, %c0_32] : memref<8x8x512xbf16, #tpu.memory_space<vmem>>, vector<1x8x512xbf16>
    %85 = vector.shape_cast %84 : vector<1x8x512xbf16> to vector<8x512xbf16>
    %86 = arith.extf %85 : vector<8x512xbf16> to vector<8x512xf32>
    %87 = arith.addf %82, %86 : vector<8x512xf32>
    %88 = vector.extract_strided_slice %87 {offsets = [0, 0], sizes = [8, 128], strides = [1, 1]} : vector<8x512xf32> to vector<8x128xf32>
    %cst_33 = arith.constant 5.000000e-01 : f32
    %89 = vector.broadcast %cst_33 : f32 to vector<8x128xf32>
    %90 = arith.mulf %89, %88 : vector<8x128xf32>
    %91 = math.tanh %90 : vector<8x128xf32>
    %cst_34 = arith.constant 5.000000e-01 : f32
    %92 = vector.broadcast %cst_34 : f32 to vector<8x128xf32>
    %93 = arith.mulf %92, %91 : vector<8x128xf32>
    %cst_35 = arith.constant 5.000000e-01 : f32
    %94 = vector.broadcast %cst_35 : f32 to vector<8x128xf32>
    %95 = arith.addf %93, %94 : vector<8x128xf32>
    %96 = vector.extract_strided_slice %87 {offsets = [0, 128], sizes = [8, 128], strides = [1, 1]} : vector<8x512xf32> to vector<8x128xf32>
    %cst_36 = arith.constant 5.000000e-01 : f32
    %97 = vector.broadcast %cst_36 : f32 to vector<8x128xf32>
    %98 = arith.mulf %97, %96 : vector<8x128xf32>
    %99 = math.tanh %98 : vector<8x128xf32>
    %cst_37 = arith.constant 5.000000e-01 : f32
    %100 = vector.broadcast %cst_37 : f32 to vector<8x128xf32>
    %101 = arith.mulf %100, %99 : vector<8x128xf32>
    %cst_38 = arith.constant 5.000000e-01 : f32
    %102 = vector.broadcast %cst_38 : f32 to vector<8x128xf32>
    %103 = arith.addf %101, %102 : vector<8x128xf32>
    %104 = vector.extract_strided_slice %87 {offsets = [0, 256], sizes = [8, 128], strides = [1, 1]} : vector<8x512xf32> to vector<8x128xf32>
    %105 = math.tanh %104 : vector<8x128xf32>
    %106 = vector.extract_strided_slice %87 {offsets = [0, 384], sizes = [8, 128], strides = [1, 1]} : vector<8x512xf32> to vector<8x128xf32>
    %cst_39 = arith.constant 5.000000e-01 : f32
    %107 = vector.broadcast %cst_39 : f32 to vector<8x128xf32>
    %108 = arith.mulf %107, %106 : vector<8x128xf32>
    %109 = math.tanh %108 : vector<8x128xf32>
    %cst_40 = arith.constant 5.000000e-01 : f32
    %110 = vector.broadcast %cst_40 : f32 to vector<8x128xf32>
    %111 = arith.mulf %110, %109 : vector<8x128xf32>
    %cst_41 = arith.constant 5.000000e-01 : f32
    %112 = vector.broadcast %cst_41 : f32 to vector<8x128xf32>
    %113 = arith.addf %111, %112 : vector<8x128xf32>
    %114 = arith.mulf %103, %78 : vector<8x128xf32>
    %115 = arith.mulf %95, %105 : vector<8x128xf32>
    %116 = arith.addf %114, %115 : vector<8x128xf32>
    %117 = math.tanh %116 : vector<8x128xf32>
    %118 = arith.mulf %113, %117 : vector<8x128xf32>
    %119 = arith.truncf %118 : vector<8x128xf32> to vector<8x128xbf16>
    %c3_i32 = arith.constant 3 : i32
    %cst_42 = arith.constant dense<0.000000e+00> : vector<8x512xf32>
    %120 = tpu.matmul %119, %3, %cst_42 {dimension_numbers = #tpu.dot_dimension_numbers<[1], [0], [0], [1], [0, 0, 1, 1], [], []>} : vector<8x128xbf16>, vector<128x512xbf16>, vector<8x512xf32> -> vector<8x512xf32>
    %121 = arith.index_cast %c3_i32 : i32 to index
    %c0_43 = arith.constant 0 : index
    %c0_44 = arith.constant 0 : index
    %122 = vector.load %arg2[%121, %c0_43, %c0_44] : memref<8x8x512xbf16, #tpu.memory_space<vmem>>, vector<1x8x512xbf16>
    %123 = vector.shape_cast %122 : vector<1x8x512xbf16> to vector<8x512xbf16>
    %124 = arith.extf %123 : vector<8x512xbf16> to vector<8x512xf32>
    %125 = arith.addf %120, %124 : vector<8x512xf32>
    %126 = vector.extract_strided_slice %125 {offsets = [0, 0], sizes = [8, 128], strides = [1, 1]} : vector<8x512xf32> to vector<8x128xf32>
    %cst_45 = arith.constant 5.000000e-01 : f32
    %127 = vector.broadcast %cst_45 : f32 to vector<8x128xf32>
    %128 = arith.mulf %127, %126 : vector<8x128xf32>
    %129 = math.tanh %128 : vector<8x128xf32>
    %cst_46 = arith.constant 5.000000e-01 : f32
    %130 = vector.broadcast %cst_46 : f32 to vector<8x128xf32>
    %131 = arith.mulf %130, %129 : vector<8x128xf32>
    %cst_47 = arith.constant 5.000000e-01 : f32
    %132 = vector.broadcast %cst_47 : f32 to vector<8x128xf32>
    %133 = arith.addf %131, %132 : vector<8x128xf32>
    %134 = vector.extract_strided_slice %125 {offsets = [0, 128], sizes = [8, 128], strides = [1, 1]} : vector<8x512xf32> to vector<8x128xf32>
    %cst_48 = arith.constant 5.000000e-01 : f32
    %135 = vector.broadcast %cst_48 : f32 to vector<8x128xf32>
    %136 = arith.mulf %135, %134 : vector<8x128xf32>
    %137 = math.tanh %136 : vector<8x128xf32>
    %cst_49 = arith.constant 5.000000e-01 : f32
    %138 = vector.broadcast %cst_49 : f32 to vector<8x128xf32>
    %139 = arith.mulf %138, %137 : vector<8x128xf32>
    %cst_50 = arith.constant 5.000000e-01 : f32
    %140 = vector.broadcast %cst_50 : f32 to vector<8x128xf32>
    %141 = arith.addf %139, %140 : vector<8x128xf32>
    %142 = vector.extract_strided_slice %125 {offsets = [0, 256], sizes = [8, 128], strides = [1, 1]} : vector<8x512xf32> to vector<8x128xf32>
    %143 = math.tanh %142 : vector<8x128xf32>
    %144 = vector.extract_strided_slice %125 {offsets = [0, 384], sizes = [8, 128], strides = [1, 1]} : vector<8x512xf32> to vector<8x128xf32>
    %cst_51 = arith.constant 5.000000e-01 : f32
    %145 = vector.broadcast %cst_51 : f32 to vector<8x128xf32>
    %146 = arith.mulf %145, %144 : vector<8x128xf32>
    %147 = math.tanh %146 : vector<8x128xf32>
    %cst_52 = arith.constant 5.000000e-01 : f32
    %148 = vector.broadcast %cst_52 : f32 to vector<8x128xf32>
    %149 = arith.mulf %148, %147 : vector<8x128xf32>
    %cst_53 = arith.constant 5.000000e-01 : f32
    %150 = vector.broadcast %cst_53 : f32 to vector<8x128xf32>
    %151 = arith.addf %149, %150 : vector<8x128xf32>
    %152 = arith.mulf %141, %116 : vector<8x128xf32>
    %153 = arith.mulf %133, %143 : vector<8x128xf32>
    %154 = arith.addf %152, %153 : vector<8x128xf32>
    %155 = math.tanh %154 : vector<8x128xf32>
    %156 = arith.mulf %151, %155 : vector<8x128xf32>
    %157 = arith.truncf %156 : vector<8x128xf32> to vector<8x128xbf16>
    %c4_i32 = arith.constant 4 : i32
    %cst_54 = arith.constant dense<0.000000e+00> : vector<8x512xf32>
    %158 = tpu.matmul %157, %3, %cst_54 {dimension_numbers = #tpu.dot_dimension_numbers<[1], [0], [0], [1], [0, 0, 1, 1], [], []>} : vector<8x128xbf16>, vector<128x512xbf16>, vector<8x512xf32> -> vector<8x512xf32>
    %159 = arith.index_cast %c4_i32 : i32 to index
    %c0_55 = arith.constant 0 : index
    %c0_56 = arith.constant 0 : index
    %160 = vector.load %arg2[%159, %c0_55, %c0_56] : memref<8x8x512xbf16, #tpu.memory_space<vmem>>, vector<1x8x512xbf16>
    %161 = vector.shape_cast %160 : vector<1x8x512xbf16> to vector<8x512xbf16>
    %162 = arith.extf %161 : vector<8x512xbf16> to vector<8x512xf32>
    %163 = arith.addf %158, %162 : vector<8x512xf32>
    %164 = vector.extract_strided_slice %163 {offsets = [0, 0], sizes = [8, 128], strides = [1, 1]} : vector<8x512xf32> to vector<8x128xf32>
    %cst_57 = arith.constant 5.000000e-01 : f32
    %165 = vector.broadcast %cst_57 : f32 to vector<8x128xf32>
    %166 = arith.mulf %165, %164 : vector<8x128xf32>
    %167 = math.tanh %166 : vector<8x128xf32>
    %cst_58 = arith.constant 5.000000e-01 : f32
    %168 = vector.broadcast %cst_58 : f32 to vector<8x128xf32>
    %169 = arith.mulf %168, %167 : vector<8x128xf32>
    %cst_59 = arith.constant 5.000000e-01 : f32
    %170 = vector.broadcast %cst_59 : f32 to vector<8x128xf32>
    %171 = arith.addf %169, %170 : vector<8x128xf32>
    %172 = vector.extract_strided_slice %163 {offsets = [0, 128], sizes = [8, 128], strides = [1, 1]} : vector<8x512xf32> to vector<8x128xf32>
    %cst_60 = arith.constant 5.000000e-01 : f32
    %173 = vector.broadcast %cst_60 : f32 to vector<8x128xf32>
    %174 = arith.mulf %173, %172 : vector<8x128xf32>
    %175 = math.tanh %174 : vector<8x128xf32>
    %cst_61 = arith.constant 5.000000e-01 : f32
    %176 = vector.broadcast %cst_61 : f32 to vector<8x128xf32>
    %177 = arith.mulf %176, %175 : vector<8x128xf32>
    %cst_62 = arith.constant 5.000000e-01 : f32
    %178 = vector.broadcast %cst_62 : f32 to vector<8x128xf32>
    %179 = arith.addf %177, %178 : vector<8x128xf32>
    %180 = vector.extract_strided_slice %163 {offsets = [0, 256], sizes = [8, 128], strides = [1, 1]} : vector<8x512xf32> to vector<8x128xf32>
    %181 = math.tanh %180 : vector<8x128xf32>
    %182 = vector.extract_strided_slice %163 {offsets = [0, 384], sizes = [8, 128], strides = [1, 1]} : vector<8x512xf32> to vector<8x128xf32>
    %cst_63 = arith.constant 5.000000e-01 : f32
    %183 = vector.broadcast %cst_63 : f32 to vector<8x128xf32>
    %184 = arith.mulf %183, %182 : vector<8x128xf32>
    %185 = math.tanh %184 : vector<8x128xf32>
    %cst_64 = arith.constant 5.000000e-01 : f32
    %186 = vector.broadcast %cst_64 : f32 to vector<8x128xf32>
    %187 = arith.mulf %186, %185 : vector<8x128xf32>
    %cst_65 = arith.constant 5.000000e-01 : f32
    %188 = vector.broadcast %cst_65 : f32 to vector<8x128xf32>
    %189 = arith.addf %187, %188 : vector<8x128xf32>
    %190 = arith.mulf %179, %154 : vector<8x128xf32>
    %191 = arith.mulf %171, %181 : vector<8x128xf32>
    %192 = arith.addf %190, %191 : vector<8x128xf32>
    %193 = math.tanh %192 : vector<8x128xf32>
    %194 = arith.mulf %189, %193 : vector<8x128xf32>
    %195 = arith.truncf %194 : vector<8x128xf32> to vector<8x128xbf16>
    %c5_i32 = arith.constant 5 : i32
    %cst_66 = arith.constant dense<0.000000e+00> : vector<8x512xf32>
    %196 = tpu.matmul %195, %3, %cst_66 {dimension_numbers = #tpu.dot_dimension_numbers<[1], [0], [0], [1], [0, 0, 1, 1], [], []>} : vector<8x128xbf16>, vector<128x512xbf16>, vector<8x512xf32> -> vector<8x512xf32>
    %197 = arith.index_cast %c5_i32 : i32 to index
    %c0_67 = arith.constant 0 : index
    %c0_68 = arith.constant 0 : index
    %198 = vector.load %arg2[%197, %c0_67, %c0_68] : memref<8x8x512xbf16, #tpu.memory_space<vmem>>, vector<1x8x512xbf16>
    %199 = vector.shape_cast %198 : vector<1x8x512xbf16> to vector<8x512xbf16>
    %200 = arith.extf %199 : vector<8x512xbf16> to vector<8x512xf32>
    %201 = arith.addf %196, %200 : vector<8x512xf32>
    %202 = vector.extract_strided_slice %201 {offsets = [0, 0], sizes = [8, 128], strides = [1, 1]} : vector<8x512xf32> to vector<8x128xf32>
    %cst_69 = arith.constant 5.000000e-01 : f32
    %203 = vector.broadcast %cst_69 : f32 to vector<8x128xf32>
    %204 = arith.mulf %203, %202 : vector<8x128xf32>
    %205 = math.tanh %204 : vector<8x128xf32>
    %cst_70 = arith.constant 5.000000e-01 : f32
    %206 = vector.broadcast %cst_70 : f32 to vector<8x128xf32>
    %207 = arith.mulf %206, %205 : vector<8x128xf32>
    %cst_71 = arith.constant 5.000000e-01 : f32
    %208 = vector.broadcast %cst_71 : f32 to vector<8x128xf32>
    %209 = arith.addf %207, %208 : vector<8x128xf32>
    %210 = vector.extract_strided_slice %201 {offsets = [0, 128], sizes = [8, 128], strides = [1, 1]} : vector<8x512xf32> to vector<8x128xf32>
    %cst_72 = arith.constant 5.000000e-01 : f32
    %211 = vector.broadcast %cst_72 : f32 to vector<8x128xf32>
    %212 = arith.mulf %211, %210 : vector<8x128xf32>
    %213 = math.tanh %212 : vector<8x128xf32>
    %cst_73 = arith.constant 5.000000e-01 : f32
    %214 = vector.broadcast %cst_73 : f32 to vector<8x128xf32>
    %215 = arith.mulf %214, %213 : vector<8x128xf32>
    %cst_74 = arith.constant 5.000000e-01 : f32
    %216 = vector.broadcast %cst_74 : f32 to vector<8x128xf32>
    %217 = arith.addf %215, %216 : vector<8x128xf32>
    %218 = vector.extract_strided_slice %201 {offsets = [0, 256], sizes = [8, 128], strides = [1, 1]} : vector<8x512xf32> to vector<8x128xf32>
    %219 = math.tanh %218 : vector<8x128xf32>
    %220 = vector.extract_strided_slice %201 {offsets = [0, 384], sizes = [8, 128], strides = [1, 1]} : vector<8x512xf32> to vector<8x128xf32>
    %cst_75 = arith.constant 5.000000e-01 : f32
    %221 = vector.broadcast %cst_75 : f32 to vector<8x128xf32>
    %222 = arith.mulf %221, %220 : vector<8x128xf32>
    %223 = math.tanh %222 : vector<8x128xf32>
    %cst_76 = arith.constant 5.000000e-01 : f32
    %224 = vector.broadcast %cst_76 : f32 to vector<8x128xf32>
    %225 = arith.mulf %224, %223 : vector<8x128xf32>
    %cst_77 = arith.constant 5.000000e-01 : f32
    %226 = vector.broadcast %cst_77 : f32 to vector<8x128xf32>
    %227 = arith.addf %225, %226 : vector<8x128xf32>
    %228 = arith.mulf %217, %192 : vector<8x128xf32>
    %229 = arith.mulf %209, %219 : vector<8x128xf32>
    %230 = arith.addf %228, %229 : vector<8x128xf32>
    %231 = math.tanh %230 : vector<8x128xf32>
    %232 = arith.mulf %227, %231 : vector<8x128xf32>
    %233 = arith.truncf %232 : vector<8x128xf32> to vector<8x128xbf16>
    %c6_i32 = arith.constant 6 : i32
    %cst_78 = arith.constant dense<0.000000e+00> : vector<8x512xf32>
    %234 = tpu.matmul %233, %3, %cst_78 {dimension_numbers = #tpu.dot_dimension_numbers<[1], [0], [0], [1], [0, 0, 1, 1], [], []>} : vector<8x128xbf16>, vector<128x512xbf16>, vector<8x512xf32> -> vector<8x512xf32>
    %235 = arith.index_cast %c6_i32 : i32 to index
    %c0_79 = arith.constant 0 : index
    %c0_80 = arith.constant 0 : index
    %236 = vector.load %arg2[%235, %c0_79, %c0_80] : memref<8x8x512xbf16, #tpu.memory_space<vmem>>, vector<1x8x512xbf16>
    %237 = vector.shape_cast %236 : vector<1x8x512xbf16> to vector<8x512xbf16>
    %238 = arith.extf %237 : vector<8x512xbf16> to vector<8x512xf32>
    %239 = arith.addf %234, %238 : vector<8x512xf32>
    %240 = vector.extract_strided_slice %239 {offsets = [0, 0], sizes = [8, 128], strides = [1, 1]} : vector<8x512xf32> to vector<8x128xf32>
    %cst_81 = arith.constant 5.000000e-01 : f32
    %241 = vector.broadcast %cst_81 : f32 to vector<8x128xf32>
    %242 = arith.mulf %241, %240 : vector<8x128xf32>
    %243 = math.tanh %242 : vector<8x128xf32>
    %cst_82 = arith.constant 5.000000e-01 : f32
    %244 = vector.broadcast %cst_82 : f32 to vector<8x128xf32>
    %245 = arith.mulf %244, %243 : vector<8x128xf32>
    %cst_83 = arith.constant 5.000000e-01 : f32
    %246 = vector.broadcast %cst_83 : f32 to vector<8x128xf32>
    %247 = arith.addf %245, %246 : vector<8x128xf32>
    %248 = vector.extract_strided_slice %239 {offsets = [0, 128], sizes = [8, 128], strides = [1, 1]} : vector<8x512xf32> to vector<8x128xf32>
    %cst_84 = arith.constant 5.000000e-01 : f32
    %249 = vector.broadcast %cst_84 : f32 to vector<8x128xf32>
    %250 = arith.mulf %249, %248 : vector<8x128xf32>
    %251 = math.tanh %250 : vector<8x128xf32>
    %cst_85 = arith.constant 5.000000e-01 : f32
    %252 = vector.broadcast %cst_85 : f32 to vector<8x128xf32>
    %253 = arith.mulf %252, %251 : vector<8x128xf32>
    %cst_86 = arith.constant 5.000000e-01 : f32
    %254 = vector.broadcast %cst_86 : f32 to vector<8x128xf32>
    %255 = arith.addf %253, %254 : vector<8x128xf32>
    %256 = vector.extract_strided_slice %239 {offsets = [0, 256], sizes = [8, 128], strides = [1, 1]} : vector<8x512xf32> to vector<8x128xf32>
    %257 = math.tanh %256 : vector<8x128xf32>
    %258 = vector.extract_strided_slice %239 {offsets = [0, 384], sizes = [8, 128], strides = [1, 1]} : vector<8x512xf32> to vector<8x128xf32>
    %cst_87 = arith.constant 5.000000e-01 : f32
    %259 = vector.broadcast %cst_87 : f32 to vector<8x128xf32>
    %260 = arith.mulf %259, %258 : vector<8x128xf32>
    %261 = math.tanh %260 : vector<8x128xf32>
    %cst_88 = arith.constant 5.000000e-01 : f32
    %262 = vector.broadcast %cst_88 : f32 to vector<8x128xf32>
    %263 = arith.mulf %262, %261 : vector<8x128xf32>
    %cst_89 = arith.constant 5.000000e-01 : f32
    %264 = vector.broadcast %cst_89 : f32 to vector<8x128xf32>
    %265 = arith.addf %263, %264 : vector<8x128xf32>
    %266 = arith.mulf %255, %230 : vector<8x128xf32>
    %267 = arith.mulf %247, %257 : vector<8x128xf32>
    %268 = arith.addf %266, %267 : vector<8x128xf32>
    %269 = math.tanh %268 : vector<8x128xf32>
    %270 = arith.mulf %265, %269 : vector<8x128xf32>
    %271 = arith.truncf %270 : vector<8x128xf32> to vector<8x128xbf16>
    %c7_i32 = arith.constant 7 : i32
    %cst_90 = arith.constant dense<0.000000e+00> : vector<8x512xf32>
    %272 = tpu.matmul %271, %3, %cst_90 {dimension_numbers = #tpu.dot_dimension_numbers<[1], [0], [0], [1], [0, 0, 1, 1], [], []>} : vector<8x128xbf16>, vector<128x512xbf16>, vector<8x512xf32> -> vector<8x512xf32>
    %273 = arith.index_cast %c7_i32 : i32 to index
    %c0_91 = arith.constant 0 : index
    %c0_92 = arith.constant 0 : index
    %274 = vector.load %arg2[%273, %c0_91, %c0_92] : memref<8x8x512xbf16, #tpu.memory_space<vmem>>, vector<1x8x512xbf16>
    %275 = vector.shape_cast %274 : vector<1x8x512xbf16> to vector<8x512xbf16>
    %276 = arith.extf %275 : vector<8x512xbf16> to vector<8x512xf32>
    %277 = arith.addf %272, %276 : vector<8x512xf32>
    %278 = vector.extract_strided_slice %277 {offsets = [0, 0], sizes = [8, 128], strides = [1, 1]} : vector<8x512xf32> to vector<8x128xf32>
    %cst_93 = arith.constant 5.000000e-01 : f32
    %279 = vector.broadcast %cst_93 : f32 to vector<8x128xf32>
    %280 = arith.mulf %279, %278 : vector<8x128xf32>
    %281 = math.tanh %280 : vector<8x128xf32>
    %cst_94 = arith.constant 5.000000e-01 : f32
    %282 = vector.broadcast %cst_94 : f32 to vector<8x128xf32>
    %283 = arith.mulf %282, %281 : vector<8x128xf32>
    %cst_95 = arith.constant 5.000000e-01 : f32
    %284 = vector.broadcast %cst_95 : f32 to vector<8x128xf32>
    %285 = arith.addf %283, %284 : vector<8x128xf32>
    %286 = vector.extract_strided_slice %277 {offsets = [0, 128], sizes = [8, 128], strides = [1, 1]} : vector<8x512xf32> to vector<8x128xf32>
    %cst_96 = arith.constant 5.000000e-01 : f32
    %287 = vector.broadcast %cst_96 : f32 to vector<8x128xf32>
    %288 = arith.mulf %287, %286 : vector<8x128xf32>
    %289 = math.tanh %288 : vector<8x128xf32>
    %cst_97 = arith.constant 5.000000e-01 : f32
    %290 = vector.broadcast %cst_97 : f32 to vector<8x128xf32>
    %291 = arith.mulf %290, %289 : vector<8x128xf32>
    %cst_98 = arith.constant 5.000000e-01 : f32
    %292 = vector.broadcast %cst_98 : f32 to vector<8x128xf32>
    %293 = arith.addf %291, %292 : vector<8x128xf32>
    %294 = vector.extract_strided_slice %277 {offsets = [0, 256], sizes = [8, 128], strides = [1, 1]} : vector<8x512xf32> to vector<8x128xf32>
    %295 = math.tanh %294 : vector<8x128xf32>
    %296 = vector.extract_strided_slice %277 {offsets = [0, 384], sizes = [8, 128], strides = [1, 1]} : vector<8x512xf32> to vector<8x128xf32>
    %cst_99 = arith.constant 5.000000e-01 : f32
    %297 = vector.broadcast %cst_99 : f32 to vector<8x128xf32>
    %298 = arith.mulf %297, %296 : vector<8x128xf32>
    %299 = math.tanh %298 : vector<8x128xf32>
    %cst_100 = arith.constant 5.000000e-01 : f32
    %300 = vector.broadcast %cst_100 : f32 to vector<8x128xf32>
    %301 = arith.mulf %300, %299 : vector<8x128xf32>
    %cst_101 = arith.constant 5.000000e-01 : f32
    %302 = vector.broadcast %cst_101 : f32 to vector<8x128xf32>
    %303 = arith.addf %301, %302 : vector<8x128xf32>
    %304 = arith.mulf %293, %268 : vector<8x128xf32>
    %305 = arith.mulf %285, %295 : vector<8x128xf32>
    %306 = arith.addf %304, %305 : vector<8x128xf32>
    %307 = math.tanh %306 : vector<8x128xf32>
    %308 = arith.mulf %303, %307 : vector<8x128xf32>
    %309 = arith.truncf %308 : vector<8x128xf32> to vector<8x128xbf16>
    %c8_i32 = arith.constant 8 : i32
    %c0_102 = arith.constant 0 : index
    %c0_103 = arith.constant 0 : index
    %310 = vector.load %arg7[%c0_102, %c0_103] : memref<8x128xbf16, #tpu.memory_space<vmem>>, vector<8x128xbf16>
    tpu.vector_store %arg7[%c0_102, %c0_103], %309 {strides = array<i32>} : memref<8x128xbf16, #tpu.memory_space<vmem>>, vector<8x128xbf16>,
    %c0_104 = arith.constant 0 : index
    %c0_105 = arith.constant 0 : index
    %311 = vector.load %arg8[%c0_104, %c0_105] : memref<8x128xf32, #tpu.memory_space<vmem>>, vector<8x128xf32>
    tpu.vector_store %arg8[%c0_104, %c0_105], %306 {strides = array<i32>} : memref<8x128xf32, #tpu.memory_space<vmem>>, vector<8x128xf32>,
    %c0_i32_106 = arith.constant 0 : i32
    %312 = arith.cmpi eq, %arg1, %c0_i32_106 : i32
    %313 = arith.extui %312 : i1 to i32
    %c0_i32_107 = arith.constant 0 : i32
    %314 = arith.cmpi ne, %313, %c0_i32_107 : i32
    scf.if %314 {
      %c0_108 = arith.constant 0 : index
      %c0_109 = arith.constant 0 : index
      %315 = vector.load %arg4[%c0_108, %c0_109] : memref<128x128xbf16, #tpu.memory_space<vmem>>, vector<128x128xbf16>
      %cst_110 = arith.constant dense<0.000000e+00> : vector<8x128xf32>
      %316 = tpu.matmul %309, %315, %cst_110 {dimension_numbers = #tpu.dot_dimension_numbers<[1], [0], [0], [1], [0, 0, 1, 1], [], []>} : vector<8x128xbf16>, vector<128x128xbf16>, vector<8x128xf32> -> vector<8x128xf32>
      %c0_111 = arith.constant 0 : index
      %c0_112 = arith.constant 0 : index
      %317 = vector.load %arg5[%c0_111, %c0_112] : memref<1x128xf32, #tpu.memory_space<vmem>>, vector<1x128xf32>
      %318 = vector.broadcast %317 : vector<1x128xf32> to vector<8x128xf32>
      %319 = arith.addf %316, %318 : vector<8x128xf32>
      %c0_113 = arith.constant 0 : index
      %c0_114 = arith.constant 0 : index
      %320 = vector.load %arg6[%c0_113, %c0_114] : memref<8x128xf32, #tpu.memory_space<vmem>>, vector<8x128xf32>
      tpu.vector_store %arg6[%c0_113, %c0_114], %319 {strides = array<i32>} : memref<8x128xf32, #tpu.memory_space<vmem>>, vector<8x128xf32>,
    } else {
    }
    return
  }
  func.func @transform_0(%arg0: i32, %arg1: i32) -> (i32, i32, i32) {
    %c0_i32 = arith.constant 0 : i32
    %c0_i32_0 = arith.constant 0 : i32
    return %arg1, %arg0, %c0_i32 : i32, i32, i32
  }
  func.func @transform_1(%arg0: i32, %arg1: i32) -> (i32, i32) {
    %c0_i32 = arith.constant 0 : i32
    %c0_i32_0 = arith.constant 0 : i32
    %c0_i32_1 = arith.constant 0 : i32
    return %c0_i32, %c0_i32_0 : i32, i32
  }
  func.func @transform_2(%arg0: i32, %arg1: i32) -> (i32, i32) {
    %c0_i32 = arith.constant 0 : i32
    %c0_i32_0 = arith.constant 0 : i32
    %c0_i32_1 = arith.constant 0 : i32
    return %c0_i32, %c0_i32_0 : i32, i32
  }
  func.func @transform_3(%arg0: i32, %arg1: i32) -> (i32, i32) {
    %c0_i32 = arith.constant 0 : i32
    %c0_i32_0 = arith.constant 0 : i32
    %c0_i32_1 = arith.constant 0 : i32
    return %c0_i32, %c0_i32_0 : i32, i32
  }
  func.func @transform_4(%arg0: i32, %arg1: i32) -> (i32, i32) {
    %c0_i32 = arith.constant 0 : i32
    %c0_i32_0 = arith.constant 0 : i32
    return %arg0, %c0_i32 : i32, i32
  }
}

</mosaic_0001>

<llo_original>
// kernel: rnn_forward.2
$region0: #{rnn_forward.2}
  #allocation0 [shape = 'u32[]', space=smem, size = 0x4, offset = 0x4, fixed_abs, tag = 'smem constant byte address 0x4 - core index']
  #allocation1 [shape = 'u32[72,128]{1,0:T(1,128)}', space=vmem, size = 0x9000, scoped, tag = 'internal scratch']
  #allocation2 [shape = 'bf16[8,128]{1,0:T(8,128)(2,1)}', space=vmem, size = 0x800, scoped, tag = 'scratch operand']
  #allocation3 [shape = 'f32[8,128]{1,0:T(8,128)}', space=vmem, size = 0x1000, scoped, tag = 'scratch operand']
  %s0 = inlined_call_operand.vmem [shape: bf16[8,8,512], index: 0, kind: input, shape index: {}]
  %s1 = inlined_call_operand.hbm [shape: bf16[128,512], index: 1, kind: input, shape index: {}]
  %s2 = inlined_call_operand.vmem [shape: bf16[8,8,128], index: 2, kind: output, shape index: {}]
  %s3 = sld [smem:[#allocation0]]
  $region26: #{rnn_forward.2} parent=0
    _
  %s5 = ssub.s32 1, %s3
  %s6 = scalar_select 0, %s5, %s3
  $region1: #{rnn_forward.2} parent=0
    #allocation4 [shape = 'u8[131072]{0}', space=vmem, size = 0x20000, scoped, tag = 'input window, operand 1, single buffered']
    #allocation5 [shape = 's32[1]{0}', space=sflag, size = 0x4, scoped, tag = 'scoped memory for rnn_forward.2']
    %7 = vsyncpa [#allocation5], 0
    // Predicated region
    $region2: #{rnn_forward.2} parent=1 // pred_check
      _
    $region3: #{rnn_forward.2} parent=1 // pred_check_branch
      %9 = sbr.rel (0) target = $region5
    $region4: #{rnn_forward.2} parent=1 // pred_region
      _
    $region5: #{rnn_forward.2} parent=1 // pred_fallthru
      _
    // Predicated region
    $region6: #{rnn_forward.2} parent=1 // pred_check
      _
    $region7: #{rnn_forward.2} parent=1 // pred_check_branch
      %11 = sbr.rel (0) target = $region9
    $region8: #{rnn_forward.2} parent=1 // pred_region
      %13 = vsyncadd [#allocation5], 0
      %s14 = sshll.u32 %s1, 4
      %s15 = int_to_ptr.hbm [resolvable:$true] %s14
      %s16 = sshll.u32 [#allocation4], 4
      %s17 = int_to_ptr.vmem [resolvable:$true] %s16
      %22 = dma.hbm_to_vmem [thread:$0]  %s15, 4096, %s17, [#allocation5], 256, 256, 16
    $region9: #{rnn_forward.2} parent=1 // pred_fallthru
      _
    // Predicated region
    $region10: #{rnn_forward.2} parent=1 // pred_check
      _
    $region11: #{rnn_forward.2} parent=1 // pred_check_branch
      %24 = sbr.rel (0) target = $region13
    $region12: #{rnn_forward.2} parent=1 // pred_region
      %26 = dma.done [#allocation5], 4096
    $region13: #{rnn_forward.2} parent=1 // pred_fallthru
      _
    %p28 = scmp.eq.s32.totalorder 0, 0
    // Predicated region
    $region14: #{rnn_forward.2} parent=1 // pred_check
      %p29 = pneg %p28
    $region15: #{rnn_forward.2} parent=1 // pred_check_branch
      %31 = sbr.rel (%p29) target = $region17
    $region16: #{rnn_forward.2} parent=1 // pred_region
      %32 = vst [vmem:[#allocation2] sm:$0xf] 0
      %33 = vst [vmem:[#allocation3] sm:$0xff] 0.0
    $region17: #{rnn_forward.2} parent=1 // pred_fallthru
      _
    %v34 = vld [vmem:[#allocation4] sm:$0xff]
    %v35 = vld [vmem:[#allocation4 + $0x8] sm:$0xff]
    %v36 = vld [vmem:[#allocation4 + $0x10] sm:$0xff]
    %v37 = vld [vmem:[#allocation4 + $0x18] sm:$0xff]
    %v38 = vld [vmem:[#allocation4 + $0x20] sm:$0xff]
    %v39 = vld [vmem:[#allocation4 + $0x28] sm:$0xff]
    %v40 = vld [vmem:[#allocation4 + $0x30] sm:$0xff]
    %v41 = vld [vmem:[#allocation4 + $0x38] sm:$0xff]
    %v42 = vld [vmem:[#allocation4 + $0x40] sm:$0xff]
    %v43 = vld [vmem:[#allocation4 + $0x48] sm:$0xff]
    %v44 = vld [vmem:[#allocation4 + $0x50] sm:$0xff]
    %v45 = vld [vmem:[#allocation4 + $0x58] sm:$0xff]
    %v46 = vld [vmem:[#allocation4 + $0x60] sm:$0xff]
    %v47 = vld [vmem:[#allocation4 + $0x68] sm:$0xff]
    %v48 = vld [vmem:[#allocation4 + $0x70] sm:$0xff]
    %v49 = vld [vmem:[#allocation4 + $0x78] sm:$0xff]
    %v50 = vld [vmem:[#allocation4 + $0x80] sm:$0xff]
    %v51 = vld [vmem:[#allocation4 + $0x88] sm:$0xff]
    %v52 = vld [vmem:[#allocation4 + $0x90] sm:$0xff]
    %v53 = vld [vmem:[#allocation4 + $0x98] sm:$0xff]
    %v54 = vld [vmem:[#allocation4 + $0xa0] sm:$0xff]
    %v55 = vld [vmem:[#allocation4 + $0xa8] sm:$0xff]
    %v56 = vld [vmem:[#allocation4 + $0xb0] sm:$0xff]
    %v57 = vld [vmem:[#allocation4 + $0xb8] sm:$0xff]
    %v58 = vld [vmem:[#allocation4 + $0xc0] sm:$0xff]
    %v59 = vld [vmem:[#allocation4 + $0xc8] sm:$0xff]
    %v60 = vld [vmem:[#allocation4 + $0xd0] sm:$0xff]
    %v61 = vld [vmem:[#allocation4 + $0xd8] sm:$0xff]
    %v62 = vld [vmem:[#allocation4 + $0xe0] sm:$0xff]
    %v63 = vld [vmem:[#allocation4 + $0xe8] sm:$0xff]
    %v64 = vld [vmem:[#allocation4 + $0xf0] sm:$0xff]
    %v65 = vld [vmem:[#allocation4 + $0xf8] sm:$0xff]
    %v66 = vld [vmem:[#allocation2] sm:$0xf]
    %v67 = vld [vmem:[#allocation3] sm:$0xff]
    %v68 = vld [vmem:[%s0] sm:$0xff]
    %v69 = vld [vmem:[%s0 + $0x8] sm:$0xff]
    %v70 = vunpack.c.l.bf16 %v68
    %v71 = vunpack.c.h.bf16 %v68
    %v72 = vunpack.c.l.bf16 %v69
    %v73 = vunpack.c.h.bf16 %v69
    %v106 = vunpack.c.l.b16 %v34
    %v107 = vunpack.c.h.b16 %v34
    %v108 = vunpack.c.l.b16 %v35
    %v109 = vunpack.c.h.b16 %v35
    %v110 = vunpack.c.l.b16 %v36
    %v111 = vunpack.c.h.b16 %v36
    %v112 = vunpack.c.l.b16 %v37
    %v113 = vunpack.c.h.b16 %v37
    %v114 = vunpack.c.l.b16 %v38
    %v115 = vunpack.c.h.b16 %v38
    %v116 = vunpack.c.l.b16 %v39
    %v117 = vunpack.c.h.b16 %v39
    %v118 = vunpack.c.l.b16 %v40
    %v119 = vunpack.c.h.b16 %v40
    %v120 = vunpack.c.l.b16 %v41
    %v121 = vunpack.c.h.b16 %v41
    %v122 = vunpack.c.l.b16 %v42
    %v123 = vunpack.c.h.b16 %v42
    %v124 = vunpack.c.l.b16 %v43
    %v125 = vunpack.c.h.b16 %v43
    %v126 = vunpack.c.l.b16 %v44
    %v127 = vunpack.c.h.b16 %v44
    %v128 = vunpack.c.l.b16 %v45
    %v129 = vunpack.c.h.b16 %v45
    %v130 = vunpack.c.l.b16 %v46
    %v131 = vunpack.c.h.b16 %v46
    %v132 = vunpack.c.l.b16 %v47
    %v133 = vunpack.c.h.b16 %v47
    %v134 = vunpack.c.l.b16 %v48
    %v135 = vunpack.c.h.b16 %v48
    %v136 = vunpack.c.l.b16 %v49
    %v137 = vunpack.c.h.b16 %v49
    %v138 = vunpack.c.l.b16 %v50
    %v139 = vunpack.c.h.b16 %v50
    %v140 = vunpack.c.l.b16 %v51
    %v141 = vunpack.c.h.b16 %v51
    %v142 = vunpack.c.l.b16 %v52
    %v143 = vunpack.c.h.b16 %v52
    %v144 = vunpack.c.l.b16 %v53
    %v145 = vunpack.c.h.b16 %v53
    %v146 = vunpack.c.l.b16 %v54
    %v147 = vunpack.c.h.b16 %v54
    %v148 = vunpack.c.l.b16 %v55
    %v149 = vunpack.c.h.b16 %v55
    %v150 = vunpack.c.l.b16 %v56
    %v151 = vunpack.c.h.b16 %v56
    %v152 = vunpack.c.l.b16 %v57
    %v153 = vunpack.c.h.b16 %v57
    %v154 = vunpack.c.l.b16 %v58
    %v155 = vunpack.c.h.b16 %v58
    %v156 = vunpack.c.l.b16 %v59
    %v157 = vunpack.c.h.b16 %v59
    %v158 = vunpack.c.l.b16 %v60
    %v159 = vunpack.c.h.b16 %v60
    %v160 = vunpack.c.l.b16 %v61
    %v161 = vunpack.c.h.b16 %v61
    %v162 = vunpack.c.l.b16 %v62
    %v163 = vunpack.c.h.b16 %v62
    %v164 = vunpack.c.l.b16 %v63
    %v165 = vunpack.c.h.b16 %v63
    %v166 = vunpack.c.l.b16 %v64
    %v167 = vunpack.c.h.b16 %v64
    %v168 = vunpack.c.l.b16 %v65
    %v169 = vunpack.c.h.b16 %v65
    %v170 = vpack.c.b16 %v110, %v106
    %v171 = vpack.c.b16 %v111, %v107
    %v172 = vpack.c.b16 %v112, %v108
    %v173 = vpack.c.b16 %v113, %v109
    %v174 = vpack.c.b16 %v118, %v114
    %v175 = vpack.c.b16 %v119, %v115
    %v176 = vpack.c.b16 %v120, %v116
    %v177 = vpack.c.b16 %v121, %v117
    %v178 = vpack.c.b16 %v126, %v122
    %v179 = vpack.c.b16 %v127, %v123
    %v180 = vpack.c.b16 %v128, %v124
    %v181 = vpack.c.b16 %v129, %v125
    %v182 = vpack.c.b16 %v134, %v130
    %v183 = vpack.c.b16 %v135, %v131
    %v184 = vpack.c.b16 %v136, %v132
    %v185 = vpack.c.b16 %v137, %v133
    %v186 = vpack.c.b16 %v142, %v138
    %v187 = vpack.c.b16 %v143, %v139
    %v188 = vpack.c.b16 %v144, %v140
    %v189 = vpack.c.b16 %v145, %v141
    %v190 = vpack.c.b16 %v150, %v146
    %v191 = vpack.c.b16 %v151, %v147
    %v192 = vpack.c.b16 %v152, %v148
    %v193 = vpack.c.b16 %v153, %v149
    %v194 = vpack.c.b16 %v158, %v154
    %v195 = vpack.c.b16 %v159, %v155
    %v196 = vpack.c.b16 %v160, %v156
    %v197 = vpack.c.b16 %v161, %v157
    %v198 = vpack.c.b16 %v166, %v162
    %v199 = vpack.c.b16 %v167, %v163
    %v200 = vpack.c.b16 %v168, %v164
    %v201 = vpack.c.b16 %v169, %v165
    %234 = vmatpush.bf16.msra.mxu0 %v198
    %235 = vmatpush.bf16.msra.mxu0 %v194
    %236 = vmatpush.bf16.msra.mxu0 %v190
    %237 = vmatpush.bf16.msra.mxu0 %v186
    %238 = vmatpush.bf16.msra.mxu0 %v182
    %239 = vmatpush.bf16.msra.mxu0 %v178
    %240 = vmatpush.bf16.msra.mxu0 %v174
    %241 = vmatpush.bf16.msra.mxu0 %v170
    %242 = vmatmul.bf16.gmra.mxu0 %v66
    %v243 = vpop.f32.mrf.mxu0
    %v244 = vadd.f32 %v70, %v243
    %v245 = vpop.f32.mrf.mxu0
    %246 = vdwg.mxu0
    %247 = vmatpush.bf16.msra.mxu0 %v199
    %248 = vmatpush.bf16.msra.mxu0 %v195
    %249 = vmatpush.bf16.msra.mxu0 %v191
    %250 = vmatpush.bf16.msra.mxu0 %v187
    %251 = vmatpush.bf16.msra.mxu0 %v183
    %252 = vmatpush.bf16.msra.mxu0 %v179
    %253 = vmatpush.bf16.msra.mxu0 %v175
    %254 = vmatpush.bf16.msra.mxu0 %v171
    %255 = vmatmul.bf16.gmra.mxu0 %v66
    %v256 = vpop.f32.mrf.mxu0
    %v257 = vadd.f32 %v71, %v256
    %v258 = vpop.f32.mrf.mxu0
    %259 = vdwg.mxu0
    %260 = vmatpush.bf16.msra.mxu0 %v200
    %261 = vmatpush.bf16.msra.mxu0 %v196
    %262 = vmatpush.bf16.msra.mxu0 %v192
    %263 = vmatpush.bf16.msra.mxu0 %v188
    %264 = vmatpush.bf16.msra.mxu0 %v184
    %265 = vmatpush.bf16.msra.mxu0 %v180
    %266 = vmatpush.bf16.msra.mxu0 %v176
    %267 = vmatpush.bf16.msra.mxu0 %v172
    %268 = vmatmul.bf16.gmra.mxu0 %v66
    %v269 = vpop.f32.mrf.mxu0
    %v270 = vadd.f32 %v72, %v269
    %v271 = vpop.f32.mrf.mxu0
    %272 = vdwg.mxu0
    %273 = vmatpush.bf16.msra.mxu0 %v201
    %274 = vmatpush.bf16.msra.mxu0 %v197
    %275 = vmatpush.bf16.msra.mxu0 %v193
    %276 = vmatpush.bf16.msra.mxu0 %v189
    %277 = vmatpush.bf16.msra.mxu0 %v185
    %278 = vmatpush.bf16.msra.mxu0 %v181
    %279 = vmatpush.bf16.msra.mxu0 %v177
    %280 = vmatpush.bf16.msra.mxu0 %v173
    %281 = vmatmul.bf16.gmra.mxu0 %v66
    %v282 = vpop.f32.mrf.mxu0
    %v283 = vadd.f32 %v73, %v282
    %v284 = vpop.f32.mrf.mxu0
    %285 = vdwg.mxu0
    %v286 = vmul.f32 %v244, 0.5
    %v287 = vtanh.pop %v286
    %v288 = vmul.f32 %v287, 0.5
    %v289 = vadd.f32 %v288, 0.5
    %v290 = vmul.f32 %v257, 0.5
    %v291 = vtanh.pop %v290
    %v292 = vmul.f32 %v291, 0.5
    %v293 = vadd.f32 %v292, 0.5
    %v294 = vtanh.pop %v270
    %v295 = vmul.f32 %v283, 0.5
    %v296 = vtanh.pop %v295
    %v297 = vmul.f32 %v296, 0.5
    %v298 = vadd.f32 %v297, 0.5
    %v299 = vmul.f32 %v293, %v67
    %v300 = vmul.f32 %v289, %v294
    %v301 = vadd.f32 %v299, %v300
    %v302 = vtanh.pop %v301
    %v303 = vmul.f32 %v298, %v302
    %v304 = vpack.c.bf16 %v303, %v303
    %305 = vst [vmem:[%s2] sm:$0xf] %v304
    %s306 = scalar_lea.vmem %s0, 16
    %v307 = vld [vmem:[%s306] sm:$0xff]
    %v308 = vld [vmem:[%s306 + $0x8] sm:$0xff]
    %v309 = vunpack.c.l.bf16 %v307
    %v310 = vunpack.c.h.bf16 %v307
    %v311 = vunpack.c.l.bf16 %v308
    %v312 = vunpack.c.h.bf16 %v308
    %313 = vmatpush.bf16.msra.mxu0 %v198
    %314 = vmatpush.bf16.msra.mxu0 %v194
    %315 = vmatpush.bf16.msra.mxu0 %v190
    %316 = vmatpush.bf16.msra.mxu0 %v186
    %317 = vmatpush.bf16.msra.mxu0 %v182
    %318 = vmatpush.bf16.msra.mxu0 %v178
    %319 = vmatpush.bf16.msra.mxu0 %v174
    %320 = vmatpush.bf16.msra.mxu0 %v170
    %321 = vmatmul.bf16.gmra.mxu0 %v304
    %v322 = vpop.f32.mrf.mxu0
    %v323 = vadd.f32 %v309, %v322
    %v324 = vpop.f32.mrf.mxu0
    %325 = vdwg.mxu0
    %326 = vmatpush.bf16.msra.mxu0 %v199
    %327 = vmatpush.bf16.msra.mxu0 %v195
    %328 = vmatpush.bf16.msra.mxu0 %v191
    %329 = vmatpush.bf16.msra.mxu0 %v187
    %330 = vmatpush.bf16.msra.mxu0 %v183
    %331 = vmatpush.bf16.msra.mxu0 %v179
    %332 = vmatpush.bf16.msra.mxu0 %v175
    %333 = vmatpush.bf16.msra.mxu0 %v171
    %334 = vmatmul.bf16.gmra.mxu0 %v304
    %v335 = vpop.f32.mrf.mxu0
    %v336 = vadd.f32 %v310, %v335
    %v337 = vpop.f32.mrf.mxu0
    %338 = vdwg.mxu0
    %339 = vmatpush.bf16.msra.mxu0 %v200
    %340 = vmatpush.bf16.msra.mxu0 %v196
    %341 = vmatpush.bf16.msra.mxu0 %v192
    %342 = vmatpush.bf16.msra.mxu0 %v188
    %343 = vmatpush.bf16.msra.mxu0 %v184
    %344 = vmatpush.bf16.msra.mxu0 %v180
    %345 = vmatpush.bf16.msra.mxu0 %v176
    %346 = vmatpush.bf16.msra.mxu0 %v172
    %347 = vmatmul.bf16.gmra.mxu0 %v304
    %v348 = vpop.f32.mrf.mxu0
    %v349 = vadd.f32 %v311, %v348
    %v350 = vpop.f32.mrf.mxu0
    %351 = vdwg.mxu0
    %352 = vmatpush.bf16.msra.mxu0 %v201
    %353 = vmatpush.bf16.msra.mxu0 %v197
    %354 = vmatpush.bf16.msra.mxu0 %v193
    %355 = vmatpush.bf16.msra.mxu0 %v189
    %356 = vmatpush.bf16.msra.mxu0 %v185
    %357 = vmatpush.bf16.msra.mxu0 %v181
    %358 = vmatpush.bf16.msra.mxu0 %v177
    %359 = vmatpush.bf16.msra.mxu0 %v173
    %360 = vmatmul.bf16.gmra.mxu0 %v304
    %v361 = vpop.f32.mrf.mxu0
    %v362 = vadd.f32 %v312, %v361
    %v363 = vpop.f32.mrf.mxu0
    %364 = vdwg.mxu0
    %v365 = vmul.f32 %v323, 0.5
    %v366 = vtanh.pop %v365
    %v367 = vmul.f32 %v366, 0.5
    %v368 = vadd.f32 %v367, 0.5
    %v369 = vmul.f32 %v336, 0.5
    %v370 = vtanh.pop %v369
    %v371 = vmul.f32 %v370, 0.5
    %v372 = vadd.f32 %v371, 0.5
    %v373 = vtanh.pop %v349
    %v374 = vmul.f32 %v362, 0.5
    %v375 = vtanh.pop %v374
    %v376 = vmul.f32 %v375, 0.5
    %v377 = vadd.f32 %v376, 0.5
    %v378 = vmul.f32 %v372, %v301
    %v379 = vmul.f32 %v368, %v373
    %v380 = vadd.f32 %v378, %v379
    %v381 = vtanh.pop %v380
    %v382 = vmul.f32 %v377, %v381
    %v383 = vpack.c.bf16 %v382, %v382
    %s384 = scalar_lea.vmem %s2, 4
    %385 = vst [vmem:[%s384] sm:$0xf] %v383
    %s386 = scalar_lea.vmem %s0, 32
    %v387 = vld [vmem:[%s386] sm:$0xff]
    %v388 = vld [vmem:[%s386 + $0x8] sm:$0xff]
    %v389 = vunpack.c.l.bf16 %v387
    %v390 = vunpack.c.h.bf16 %v387
    %v391 = vunpack.c.l.bf16 %v388
    %v392 = vunpack.c.h.bf16 %v388
    %393 = vmatpush.bf16.msra.mxu0 %v198
    %394 = vmatpush.bf16.msra.mxu0 %v194
    %395 = vmatpush.bf16.msra.mxu0 %v190
    %396 = vmatpush.bf16.msra.mxu0 %v186
    %397 = vmatpush.bf16.msra.mxu0 %v182
    %398 = vmatpush.bf16.msra.mxu0 %v178
    %399 = vmatpush.bf16.msra.mxu0 %v174
    %400 = vmatpush.bf16.msra.mxu0 %v170
    %401 = vmatmul.bf16.gmra.mxu0 %v383
    %v402 = vpop.f32.mrf.mxu0
    %v403 = vadd.f32 %v389, %v402
    %v404 = vpop.f32.mrf.mxu0
    %405 = vdwg.mxu0
    %406 = vmatpush.bf16.msra.mxu0 %v199
    %407 = vmatpush.bf16.msra.mxu0 %v195
    %408 = vmatpush.bf16.msra.mxu0 %v191
    %409 = vmatpush.bf16.msra.mxu0 %v187
    %410 = vmatpush.bf16.msra.mxu0 %v183
    %411 = vmatpush.bf16.msra.mxu0 %v179
    %412 = vmatpush.bf16.msra.mxu0 %v175
    %413 = vmatpush.bf16.msra.mxu0 %v171
    %414 = vmatmul.bf16.gmra.mxu0 %v383
    %v415 = vpop.f32.mrf.mxu0
    %v416 = vadd.f32 %v390, %v415
    %v417 = vpop.f32.mrf.mxu0
    %418 = vdwg.mxu0
    %419 = vmatpush.bf16.msra.mxu0 %v200
    %420 = vmatpush.bf16.msra.mxu0 %v196
    %421 = vmatpush.bf16.msra.mxu0 %v192
    %422 = vmatpush.bf16.msra.mxu0 %v188
    %423 = vmatpush.bf16.msra.mxu0 %v184
    %424 = vmatpush.bf16.msra.mxu0 %v180
    %425 = vmatpush.bf16.msra.mxu0 %v176
    %426 = vmatpush.bf16.msra.mxu0 %v172
    %427 = vmatmul.bf16.gmra.mxu0 %v383
    %v428 = vpop.f32.mrf.mxu0
    %v429 = vadd.f32 %v391, %v428
    %v430 = vpop.f32.mrf.mxu0
    %431 = vdwg.mxu0
    %432 = vmatpush.bf16.msra.mxu0 %v201
    %433 = vmatpush.bf16.msra.mxu0 %v197
    %434 = vmatpush.bf16.msra.mxu0 %v193
    %435 = vmatpush.bf16.msra.mxu0 %v189
    %436 = vmatpush.bf16.msra.mxu0 %v185
    %437 = vmatpush.bf16.msra.mxu0 %v181
    %438 = vmatpush.bf16.msra.mxu0 %v177
    %439 = vmatpush.bf16.msra.mxu0 %v173
    %440 = vmatmul.bf16.gmra.mxu0 %v383
    %v441 = vpop.f32.mrf.mxu0
    %v442 = vadd.f32 %v392, %v441
    %v443 = vpop.f32.mrf.mxu0
    %444 = vdwg.mxu0
    %v445 = vmul.f32 %v403, 0.5
    %v446 = vtanh.pop %v445
    %v447 = vmul.f32 %v446, 0.5
    %v448 = vadd.f32 %v447, 0.5
    %v449 = vmul.f32 %v416, 0.5
    %v450 = vtanh.pop %v449
    %v451 = vmul.f32 %v450, 0.5
    %v452 = vadd.f32 %v451, 0.5
    %v453 = vtanh.pop %v429
    %v454 = vmul.f32 %v442, 0.5
    %v455 = vtanh.pop %v454
    %v456 = vmul.f32 %v455, 0.5
    %v457 = vadd.f32 %v456, 0.5
    %v458 = vmul.f32 %v452, %v380
    %v459 = vmul.f32 %v448, %v453
    %v460 = vadd.f32 %v458, %v459
    %v461 = vtanh.pop %v460
    %v462 = vmul.f32 %v457, %v461
    %v463 = vpack.c.bf16 %v462, %v462
    %s464 = scalar_lea.vmem %s2, 8
    %465 = vst [vmem:[%s464] sm:$0xf] %v463
    %s466 = scalar_lea.vmem %s0, 48
    %v467 = vld [vmem:[%s466] sm:$0xff]
    %v468 = vld [vmem:[%s466 + $0x8] sm:$0xff]
    %v469 = vunpack.c.l.bf16 %v467
    %v470 = vunpack.c.h.bf16 %v467
    %v471 = vunpack.c.l.bf16 %v468
    %v472 = vunpack.c.h.bf16 %v468
    %473 = vmatpush.bf16.msra.mxu0 %v198
    %474 = vmatpush.bf16.msra.mxu0 %v194
    %475 = vmatpush.bf16.msra.mxu0 %v190
    %476 = vmatpush.bf16.msra.mxu0 %v186
    %477 = vmatpush.bf16.msra.mxu0 %v182
    %478 = vmatpush.bf16.msra.mxu0 %v178
    %479 = vmatpush.bf16.msra.mxu0 %v174
    %480 = vmatpush.bf16.msra.mxu0 %v170
    %481 = vmatmul.bf16.gmra.mxu0 %v463
    %v482 = vpop.f32.mrf.mxu0
    %v483 = vadd.f32 %v469, %v482
    %v484 = vpop.f32.mrf.mxu0
    %485 = vdwg.mxu0
    %486 = vmatpush.bf16.msra.mxu0 %v199
    %487 = vmatpush.bf16.msra.mxu0 %v195
    %488 = vmatpush.bf16.msra.mxu0 %v191
    %489 = vmatpush.bf16.msra.mxu0 %v187
    %490 = vmatpush.bf16.msra.mxu0 %v183
    %491 = vmatpush.bf16.msra.mxu0 %v179
    %492 = vmatpush.bf16.msra.mxu0 %v175
    %493 = vmatpush.bf16.msra.mxu0 %v171
    %494 = vmatmul.bf16.gmra.mxu0 %v463
    %v495 = vpop.f32.mrf.mxu0
    %v496 = vadd.f32 %v470, %v495
    %v497 = vpop.f32.mrf.mxu0
    %498 = vdwg.mxu0
    %499 = vmatpush.bf16.msra.mxu0 %v200
    %500 = vmatpush.bf16.msra.mxu0 %v196
    %501 = vmatpush.bf16.msra.mxu0 %v192
    %502 = vmatpush.bf16.msra.mxu0 %v188
    %503 = vmatpush.bf16.msra.mxu0 %v184
    %504 = vmatpush.bf16.msra.mxu0 %v180
    %505 = vmatpush.bf16.msra.mxu0 %v176
    %506 = vmatpush.bf16.msra.mxu0 %v172
    %507 = vmatmul.bf16.gmra.mxu0 %v463
    %v508 = vpop.f32.mrf.mxu0
    %v509 = vadd.f32 %v471, %v508
    %v510 = vpop.f32.mrf.mxu0
    %511 = vdwg.mxu0
    %512 = vmatpush.bf16.msra.mxu0 %v201
    %513 = vmatpush.bf16.msra.mxu0 %v197
    %514 = vmatpush.bf16.msra.mxu0 %v193
    %515 = vmatpush.bf16.msra.mxu0 %v189
    %516 = vmatpush.bf16.msra.mxu0 %v185
    %517 = vmatpush.bf16.msra.mxu0 %v181
    %518 = vmatpush.bf16.msra.mxu0 %v177
    %519 = vmatpush.bf16.msra.mxu0 %v173
    %520 = vmatmul.bf16.gmra.mxu0 %v463
    %v521 = vpop.f32.mrf.mxu0
    %v522 = vadd.f32 %v472, %v521
    %v523 = vpop.f32.mrf.mxu0
    %524 = vdwg.mxu0
    %v525 = vmul.f32 %v483, 0.5
    %v526 = vtanh.pop %v525
    %v527 = vmul.f32 %v526, 0.5
    %v528 = vadd.f32 %v527, 0.5
    %v529 = vmul.f32 %v496, 0.5
    %v530 = vtanh.pop %v529
    %v531 = vmul.f32 %v530, 0.5
    %v532 = vadd.f32 %v531, 0.5
    %v533 = vtanh.pop %v509
    %v534 = vmul.f32 %v522, 0.5
    %v535 = vtanh.pop %v534
    %v536 = vmul.f32 %v535, 0.5
    %v537 = vadd.f32 %v536, 0.5
    %v538 = vmul.f32 %v532, %v460
    %v539 = vmul.f32 %v528, %v533
    %v540 = vadd.f32 %v538, %v539
    %v541 = vtanh.pop %v540
    %v542 = vmul.f32 %v537, %v541
    %v543 = vpack.c.bf16 %v542, %v542
    %s544 = scalar_lea.vmem %s2, 12
    %545 = vst [vmem:[%s544] sm:$0xf] %v543
    %s546 = scalar_lea.vmem %s0, 64
    %v547 = vld [vmem:[%s546] sm:$0xff]
    %v548 = vld [vmem:[%s546 + $0x8] sm:$0xff]
    %v549 = vunpack.c.l.bf16 %v547
    %v550 = vunpack.c.h.bf16 %v547
    %v551 = vunpack.c.l.bf16 %v548
    %v552 = vunpack.c.h.bf16 %v548
    %553 = vmatpush.bf16.msra.mxu0 %v198
    %554 = vmatpush.bf16.msra.mxu0 %v194
    %555 = vmatpush.bf16.msra.mxu0 %v190
    %556 = vmatpush.bf16.msra.mxu0 %v186
    %557 = vmatpush.bf16.msra.mxu0 %v182
    %558 = vmatpush.bf16.msra.mxu0 %v178
    %559 = vmatpush.bf16.msra.mxu0 %v174
    %560 = vmatpush.bf16.msra.mxu0 %v170
    %561 = vmatmul.bf16.gmra.mxu0 %v543
    %v562 = vpop.f32.mrf.mxu0
    %v563 = vadd.f32 %v549, %v562
    %v564 = vpop.f32.mrf.mxu0
    %565 = vdwg.mxu0
    %566 = vmatpush.bf16.msra.mxu0 %v199
    %567 = vmatpush.bf16.msra.mxu0 %v195
    %568 = vmatpush.bf16.msra.mxu0 %v191
    %569 = vmatpush.bf16.msra.mxu0 %v187
    %570 = vmatpush.bf16.msra.mxu0 %v183
    %571 = vmatpush.bf16.msra.mxu0 %v179
    %572 = vmatpush.bf16.msra.mxu0 %v175
    %573 = vmatpush.bf16.msra.mxu0 %v171
    %574 = vmatmul.bf16.gmra.mxu0 %v543
    %v575 = vpop.f32.mrf.mxu0
    %v576 = vadd.f32 %v550, %v575
    %v577 = vpop.f32.mrf.mxu0
    %578 = vdwg.mxu0
    %579 = vmatpush.bf16.msra.mxu0 %v200
    %580 = vmatpush.bf16.msra.mxu0 %v196
    %581 = vmatpush.bf16.msra.mxu0 %v192
    %582 = vmatpush.bf16.msra.mxu0 %v188
    %583 = vmatpush.bf16.msra.mxu0 %v184
    %584 = vmatpush.bf16.msra.mxu0 %v180
    %585 = vmatpush.bf16.msra.mxu0 %v176
    %586 = vmatpush.bf16.msra.mxu0 %v172
    %587 = vmatmul.bf16.gmra.mxu0 %v543
    %v588 = vpop.f32.mrf.mxu0
    %v589 = vadd.f32 %v551, %v588
    %v590 = vpop.f32.mrf.mxu0
    %591 = vdwg.mxu0
    %592 = vmatpush.bf16.msra.mxu0 %v201
    %593 = vmatpush.bf16.msra.mxu0 %v197
    %594 = vmatpush.bf16.msra.mxu0 %v193
    %595 = vmatpush.bf16.msra.mxu0 %v189
    %596 = vmatpush.bf16.msra.mxu0 %v185
    %597 = vmatpush.bf16.msra.mxu0 %v181
    %598 = vmatpush.bf16.msra.mxu0 %v177
    %599 = vmatpush.bf16.msra.mxu0 %v173
    %600 = vmatmul.bf16.gmra.mxu0 %v543
    %v601 = vpop.f32.mrf.mxu0
    %v602 = vadd.f32 %v552, %v601
    %v603 = vpop.f32.mrf.mxu0
    %604 = vdwg.mxu0
    %v605 = vmul.f32 %v563, 0.5
    %v606 = vtanh.pop %v605
    %v607 = vmul.f32 %v606, 0.5
    %v608 = vadd.f32 %v607, 0.5
    %v609 = vmul.f32 %v576, 0.5
    %v610 = vtanh.pop %v609
    %v611 = vmul.f32 %v610, 0.5
    %v612 = vadd.f32 %v611, 0.5
    %v613 = vtanh.pop %v589
    %v614 = vmul.f32 %v602, 0.5
    %v615 = vtanh.pop %v614
    %v616 = vmul.f32 %v615, 0.5
    %v617 = vadd.f32 %v616, 0.5
    %v618 = vmul.f32 %v612, %v540
    %v619 = vmul.f32 %v608, %v613
    %v620 = vadd.f32 %v618, %v619
    %v621 = vtanh.pop %v620
    %v622 = vmul.f32 %v617, %v621
    %v623 = vpack.c.bf16 %v622, %v622
    %s624 = scalar_lea.vmem %s2, 16
    %625 = vst [vmem:[%s624] sm:$0xf] %v623
    %s626 = scalar_lea.vmem %s0, 80
    %v627 = vld [vmem:[%s626] sm:$0xff]
    %v628 = vld [vmem:[%s626 + $0x8] sm:$0xff]
    %v629 = vunpack.c.l.bf16 %v627
    %v630 = vunpack.c.h.bf16 %v627
    %v631 = vunpack.c.l.bf16 %v628
    %v632 = vunpack.c.h.bf16 %v628
    %633 = vmatpush.bf16.msra.mxu0 %v198
    %634 = vmatpush.bf16.msra.mxu0 %v194
    %635 = vmatpush.bf16.msra.mxu0 %v190
    %636 = vmatpush.bf16.msra.mxu0 %v186
    %637 = vmatpush.bf16.msra.mxu0 %v182
    %638 = vmatpush.bf16.msra.mxu0 %v178
    %639 = vmatpush.bf16.msra.mxu0 %v174
    %640 = vmatpush.bf16.msra.mxu0 %v170
    %641 = vmatmul.bf16.gmra.mxu0 %v623
    %v642 = vpop.f32.mrf.mxu0
    %v643 = vadd.f32 %v629, %v642
    %v644 = vpop.f32.mrf.mxu0
    %645 = vdwg.mxu0
    %646 = vmatpush.bf16.msra.mxu0 %v199
    %647 = vmatpush.bf16.msra.mxu0 %v195
    %648 = vmatpush.bf16.msra.mxu0 %v191
    %649 = vmatpush.bf16.msra.mxu0 %v187
    %650 = vmatpush.bf16.msra.mxu0 %v183
    %651 = vmatpush.bf16.msra.mxu0 %v179
    %652 = vmatpush.bf16.msra.mxu0 %v175
    %653 = vmatpush.bf16.msra.mxu0 %v171
    %654 = vmatmul.bf16.gmra.mxu0 %v623
    %v655 = vpop.f32.mrf.mxu0
    %v656 = vadd.f32 %v630, %v655
    %v657 = vpop.f32.mrf.mxu0
    %658 = vdwg.mxu0
    %659 = vmatpush.bf16.msra.mxu0 %v200
    %660 = vmatpush.bf16.msra.mxu0 %v196
    %661 = vmatpush.bf16.msra.mxu0 %v192
    %662 = vmatpush.bf16.msra.mxu0 %v188
    %663 = vmatpush.bf16.msra.mxu0 %v184
    %664 = vmatpush.bf16.msra.mxu0 %v180
    %665 = vmatpush.bf16.msra.mxu0 %v176
    %666 = vmatpush.bf16.msra.mxu0 %v172
    %667 = vmatmul.bf16.gmra.mxu0 %v623
    %v668 = vpop.f32.mrf.mxu0
    %v669 = vadd.f32 %v631, %v668
    %v670 = vpop.f32.mrf.mxu0
    %671 = vdwg.mxu0
    %672 = vmatpush.bf16.msra.mxu0 %v201
    %673 = vmatpush.bf16.msra.mxu0 %v197
    %674 = vmatpush.bf16.msra.mxu0 %v193
    %675 = vmatpush.bf16.msra.mxu0 %v189
    %676 = vmatpush.bf16.msra.mxu0 %v185
    %677 = vmatpush.bf16.msra.mxu0 %v181
    %678 = vmatpush.bf16.msra.mxu0 %v177
    %679 = vmatpush.bf16.msra.mxu0 %v173
    %680 = vmatmul.bf16.gmra.mxu0 %v623
    %v681 = vpop.f32.mrf.mxu0
    %v682 = vadd.f32 %v632, %v681
    %v683 = vpop.f32.mrf.mxu0
    %684 = vdwg.mxu0
    %v685 = vmul.f32 %v643, 0.5
    %v686 = vtanh.pop %v685
    %v687 = vmul.f32 %v686, 0.5
    %v688 = vadd.f32 %v687, 0.5
    %v689 = vmul.f32 %v656, 0.5
    %v690 = vtanh.pop %v689
    %v691 = vmul.f32 %v690, 0.5
    %v692 = vadd.f32 %v691, 0.5
    %v693 = vtanh.pop %v669
    %v694 = vmul.f32 %v682, 0.5
    %v695 = vtanh.pop %v694
    %v696 = vmul.f32 %v695, 0.5
    %v697 = vadd.f32 %v696, 0.5
    %v698 = vmul.f32 %v692, %v620
    %v699 = vmul.f32 %v688, %v693
    %v700 = vadd.f32 %v698, %v699
    %v701 = vtanh.pop %v700
    %v702 = vmul.f32 %v697, %v701
    %v703 = vpack.c.bf16 %v702, %v702
    %s704 = scalar_lea.vmem %s2, 20
    %705 = vst [vmem:[%s704] sm:$0xf] %v703
    %s706 = scalar_lea.vmem %s0, 96
    %v707 = vld [vmem:[%s706] sm:$0xff]
    %v708 = vld [vmem:[%s706 + $0x8] sm:$0xff]
    %v709 = vunpack.c.l.bf16 %v707
    %v710 = vunpack.c.h.bf16 %v707
    %v711 = vunpack.c.l.bf16 %v708
    %v712 = vunpack.c.h.bf16 %v708
    %713 = vmatpush.bf16.msra.mxu0 %v198
    %714 = vmatpush.bf16.msra.mxu0 %v194
    %715 = vmatpush.bf16.msra.mxu0 %v190
    %716 = vmatpush.bf16.msra.mxu0 %v186
    %717 = vmatpush.bf16.msra.mxu0 %v182
    %718 = vmatpush.bf16.msra.mxu0 %v178
    %719 = vmatpush.bf16.msra.mxu0 %v174
    %720 = vmatpush.bf16.msra.mxu0 %v170
    %721 = vmatmul.bf16.gmra.mxu0 %v703
    %v722 = vpop.f32.mrf.mxu0
    %v723 = vadd.f32 %v709, %v722
    %v724 = vpop.f32.mrf.mxu0
    %725 = vdwg.mxu0
    %726 = vmatpush.bf16.msra.mxu0 %v199
    %727 = vmatpush.bf16.msra.mxu0 %v195
    %728 = vmatpush.bf16.msra.mxu0 %v191
    %729 = vmatpush.bf16.msra.mxu0 %v187
    %730 = vmatpush.bf16.msra.mxu0 %v183
    %731 = vmatpush.bf16.msra.mxu0 %v179
    %732 = vmatpush.bf16.msra.mxu0 %v175
    %733 = vmatpush.bf16.msra.mxu0 %v171
    %734 = vmatmul.bf16.gmra.mxu0 %v703
    %v735 = vpop.f32.mrf.mxu0
    %v736 = vadd.f32 %v710, %v735
    %v737 = vpop.f32.mrf.mxu0
    %738 = vdwg.mxu0
    %739 = vmatpush.bf16.msra.mxu0 %v200
    %740 = vmatpush.bf16.msra.mxu0 %v196
    %741 = vmatpush.bf16.msra.mxu0 %v192
    %742 = vmatpush.bf16.msra.mxu0 %v188
    %743 = vmatpush.bf16.msra.mxu0 %v184
    %744 = vmatpush.bf16.msra.mxu0 %v180
    %745 = vmatpush.bf16.msra.mxu0 %v176
    %746 = vmatpush.bf16.msra.mxu0 %v172
    %747 = vmatmul.bf16.gmra.mxu0 %v703
    %v748 = vpop.f32.mrf.mxu0
    %v749 = vadd.f32 %v711, %v748
    %v750 = vpop.f32.mrf.mxu0
    %751 = vdwg.mxu0
    %752 = vmatpush.bf16.msra.mxu0 %v201
    %753 = vmatpush.bf16.msra.mxu0 %v197
    %754 = vmatpush.bf16.msra.mxu0 %v193
    %755 = vmatpush.bf16.msra.mxu0 %v189
    %756 = vmatpush.bf16.msra.mxu0 %v185
    %757 = vmatpush.bf16.msra.mxu0 %v181
    %758 = vmatpush.bf16.msra.mxu0 %v177
    %759 = vmatpush.bf16.msra.mxu0 %v173
    %760 = vmatmul.bf16.gmra.mxu0 %v703
    %v761 = vpop.f32.mrf.mxu0
    %v762 = vadd.f32 %v712, %v761
    %v763 = vpop.f32.mrf.mxu0
    %764 = vdwg.mxu0
    %v765 = vmul.f32 %v723, 0.5
    %v766 = vtanh.pop %v765
    %v767 = vmul.f32 %v766, 0.5
    %v768 = vadd.f32 %v767, 0.5
    %v769 = vmul.f32 %v736, 0.5
    %v770 = vtanh.pop %v769
    %v771 = vmul.f32 %v770, 0.5
    %v772 = vadd.f32 %v771, 0.5
    %v773 = vtanh.pop %v749
    %v774 = vmul.f32 %v762, 0.5
    %v775 = vtanh.pop %v774
    %v776 = vmul.f32 %v775, 0.5
    %v777 = vadd.f32 %v776, 0.5
    %v778 = vmul.f32 %v772, %v700
    %v779 = vmul.f32 %v768, %v773
    %v780 = vadd.f32 %v778, %v779
    %v781 = vtanh.pop %v780
    %v782 = vmul.f32 %v777, %v781
    %v783 = vpack.c.bf16 %v782, %v782
    %s784 = scalar_lea.vmem %s2, 24
    %785 = vst [vmem:[%s784] sm:$0xf] %v783
    %s786 = scalar_lea.vmem %s0, 112
    %v787 = vld [vmem:[%s786] sm:$0xff]
    %v788 = vld [vmem:[%s786 + $0x8] sm:$0xff]
    %v789 = vunpack.c.l.bf16 %v787
    %v790 = vunpack.c.h.bf16 %v787
    %v791 = vunpack.c.l.bf16 %v788
    %v792 = vunpack.c.h.bf16 %v788
    %793 = vmatpush.bf16.msra.mxu0 %v198
    %794 = vmatpush.bf16.msra.mxu0 %v194
    %795 = vmatpush.bf16.msra.mxu0 %v190
    %796 = vmatpush.bf16.msra.mxu0 %v186
    %797 = vmatpush.bf16.msra.mxu0 %v182
    %798 = vmatpush.bf16.msra.mxu0 %v178
    %799 = vmatpush.bf16.msra.mxu0 %v174
    %800 = vmatpush.bf16.msra.mxu0 %v170
    %801 = vmatmul.bf16.gmra.mxu0 %v783
    %v802 = vpop.f32.mrf.mxu0
    %v803 = vadd.f32 %v789, %v802
    %v804 = vpop.f32.mrf.mxu0
    %805 = vdwg.mxu0
    %806 = vmatpush.bf16.msra.mxu0 %v199
    %807 = vmatpush.bf16.msra.mxu0 %v195
    %808 = vmatpush.bf16.msra.mxu0 %v191
    %809 = vmatpush.bf16.msra.mxu0 %v187
    %810 = vmatpush.bf16.msra.mxu0 %v183
    %811 = vmatpush.bf16.msra.mxu0 %v179
    %812 = vmatpush.bf16.msra.mxu0 %v175
    %813 = vmatpush.bf16.msra.mxu0 %v171
    %814 = vmatmul.bf16.gmra.mxu0 %v783
    %v815 = vpop.f32.mrf.mxu0
    %v816 = vadd.f32 %v790, %v815
    %v817 = vpop.f32.mrf.mxu0
    %818 = vdwg.mxu0
    %819 = vmatpush.bf16.msra.mxu0 %v200
    %820 = vmatpush.bf16.msra.mxu0 %v196
    %821 = vmatpush.bf16.msra.mxu0 %v192
    %822 = vmatpush.bf16.msra.mxu0 %v188
    %823 = vmatpush.bf16.msra.mxu0 %v184
    %824 = vmatpush.bf16.msra.mxu0 %v180
    %825 = vmatpush.bf16.msra.mxu0 %v176
    %826 = vmatpush.bf16.msra.mxu0 %v172
    %827 = vmatmul.bf16.gmra.mxu0 %v783
    %v828 = vpop.f32.mrf.mxu0
    %v829 = vadd.f32 %v791, %v828
    %v830 = vpop.f32.mrf.mxu0
    %831 = vdwg.mxu0
    %832 = vmatpush.bf16.msra.mxu0 %v201
    %833 = vmatpush.bf16.msra.mxu0 %v197
    %834 = vmatpush.bf16.msra.mxu0 %v193
    %835 = vmatpush.bf16.msra.mxu0 %v189
    %836 = vmatpush.bf16.msra.mxu0 %v185
    %837 = vmatpush.bf16.msra.mxu0 %v181
    %838 = vmatpush.bf16.msra.mxu0 %v177
    %839 = vmatpush.bf16.msra.mxu0 %v173
    %840 = vmatmul.bf16.gmra.mxu0 %v783
    %v841 = vpop.f32.mrf.mxu0
    %v842 = vadd.f32 %v792, %v841
    %v843 = vpop.f32.mrf.mxu0
    %844 = vdwg.mxu0
    %v845 = vmul.f32 %v803, 0.5
    %v846 = vtanh.pop %v845
    %v847 = vmul.f32 %v846, 0.5
    %v848 = vadd.f32 %v847, 0.5
    %v849 = vmul.f32 %v816, 0.5
    %v850 = vtanh.pop %v849
    %v851 = vmul.f32 %v850, 0.5
    %v852 = vadd.f32 %v851, 0.5
    %v853 = vtanh.pop %v829
    %v854 = vmul.f32 %v842, 0.5
    %v855 = vtanh.pop %v854
    %v856 = vmul.f32 %v855, 0.5
    %v857 = vadd.f32 %v856, 0.5
    %v858 = vmul.f32 %v852, %v780
    %v859 = vmul.f32 %v848, %v853
    %v860 = vadd.f32 %v858, %v859
    %v861 = vtanh.pop %v860
    %v862 = vmul.f32 %v857, %v861
    %v863 = vpack.c.bf16 %v862, %v862
    %s864 = scalar_lea.vmem %s2, 28
    %865 = vst [vmem:[%s864] sm:$0xf] %v863
    %866 = vst [vmem:[#allocation2] sm:$0xf] %v863
    %867 = vst [vmem:[#allocation3] sm:$0xff] %v860
    // Predicated region
    $region18: #{rnn_forward.2} parent=1 // pred_check
      _
    $region19: #{rnn_forward.2} parent=1 // pred_check_branch
      %869 = sbr.rel (0) target = $region21
    $region20: #{rnn_forward.2} parent=1 // pred_region
      _
    $region21: #{rnn_forward.2} parent=1 // pred_fallthru
      _
    // Predicated region
    $region22: #{rnn_forward.2} parent=1 // pred_check
      _
    $region23: #{rnn_forward.2} parent=1 // pred_check_branch
      %871 = sbr.rel (0) target = $region25
    $region24: #{rnn_forward.2} parent=1 // pred_region
      _
    $region25: #{rnn_forward.2} parent=1 // pred_fallthru
      _
    %872 = vsyncpa [#allocation5], 1

// kernel: rnn_forward.3
$region0: #{rnn_forward.3}
  #allocation0 [shape = 'u32[]', space=smem, size = 0x4, offset = 0x4, fixed_abs, tag = 'smem constant byte address 0x4 - core index']
  #allocation1 [shape = 'u32[72,128]{1,0:T(1,128)}', space=vmem, size = 0x9000, scoped, tag = 'internal scratch']
  #allocation2 [shape = 'bf16[8,128]{1,0:T(8,128)(2,1)}', space=vmem, size = 0x800, scoped, tag = 'scratch operand']
  #allocation3 [shape = 'f32[8,128]{1,0:T(8,128)}', space=vmem, size = 0x1000, scoped, tag = 'scratch operand']
  %s0 = inlined_call_operand.vmem [shape: bf16[8,8,512], index: 0, kind: input, shape index: {}]
  %s1 = inlined_call_operand.vmem [shape: bf16[128,512], index: 1, kind: input, shape index: {}]
  %s2 = inlined_call_operand.vmem [shape: bf16[128,128], index: 2, kind: input, shape index: {}]
  %s3 = inlined_call_operand.vmem [shape: f32[1,128], index: 3, kind: input, shape index: {}]
  %s4 = inlined_call_operand.vmem [shape: f32[8,128], index: 4, kind: output, shape index: {}]
  %s5 = sld [smem:[#allocation0]]
  $region34: #{rnn_forward.3} parent=0
    _
  %s7 = ssub.s32 1, %s5
  %s8 = scalar_select 0, %s7, %s5
  // Predicated region
  $region2: #{rnn_forward.3} parent=0 // pred_check
    _
  $region3: #{rnn_forward.3} parent=0 // pred_check_branch
    %10 = sbr.rel (0) target = $region5
  $region4: #{rnn_forward.3} parent=0 // pred_region
    _
  $region5: #{rnn_forward.3} parent=0 // pred_fallthru
    _
  // Predicated region
  $region6: #{rnn_forward.3} parent=0 // pred_check
    _
  $region7: #{rnn_forward.3} parent=0 // pred_check_branch
    %12 = sbr.rel (0) target = $region9
  $region8: #{rnn_forward.3} parent=0 // pred_region
    _
  $region9: #{rnn_forward.3} parent=0 // pred_fallthru
    _
  // Predicated region
  $region10: #{rnn_forward.3} parent=0 // pred_check
    _
  $region11: #{rnn_forward.3} parent=0 // pred_check_branch
    %14 = sbr.rel (0) target = $region13
  $region12: #{rnn_forward.3} parent=0 // pred_region
    _
  $region13: #{rnn_forward.3} parent=0 // pred_fallthru
    _
  // Predicated region
  $region14: #{rnn_forward.3} parent=0 // pred_check
    _
  $region15: #{rnn_forward.3} parent=0 // pred_check_branch
    %16 = sbr.rel (0) target = $region17
  $region16: #{rnn_forward.3} parent=0 // pred_region
    _
  $region17: #{rnn_forward.3} parent=0 // pred_fallthru
    _
  %p18 = scmp.eq.s32.totalorder 0, 0
  // Predicated region
  $region18: #{rnn_forward.3} parent=0 // pred_check
    %p19 = pneg %p18
  $region19: #{rnn_forward.3} parent=0 // pred_check_branch
    %21 = sbr.rel (%p19) target = $region21
  $region20: #{rnn_forward.3} parent=0 // pred_region
    %22 = vst [vmem:[#allocation2] sm:$0xf] 0
    %23 = vst [vmem:[#allocation3] sm:$0xff] 0.0
  $region21: #{rnn_forward.3} parent=0 // pred_fallthru
    _
  %v24 = vld [vmem:[%s1] sm:$0xff]
  %v25 = vld [vmem:[%s1 + $0x8] sm:$0xff]
  %v26 = vld [vmem:[%s1 + $0x10] sm:$0xff]
  %v27 = vld [vmem:[%s1 + $0x18] sm:$0xff]
  %v28 = vld [vmem:[%s1 + $0x20] sm:$0xff]
  %v29 = vld [vmem:[%s1 + $0x28] sm:$0xff]
  %v30 = vld [vmem:[%s1 + $0x30] sm:$0xff]
  %v31 = vld [vmem:[%s1 + $0x38] sm:$0xff]
  %v32 = vld [vmem:[%s1 + $0x40] sm:$0xff]
  %v33 = vld [vmem:[%s1 + $0x48] sm:$0xff]
  %v34 = vld [vmem:[%s1 + $0x50] sm:$0xff]
  %v35 = vld [vmem:[%s1 + $0x58] sm:$0xff]
  %v36 = vld [vmem:[%s1 + $0x60] sm:$0xff]
  %v37 = vld [vmem:[%s1 + $0x68] sm:$0xff]
  %v38 = vld [vmem:[%s1 + $0x70] sm:$0xff]
  %v39 = vld [vmem:[%s1 + $0x78] sm:$0xff]
  %v40 = vld [vmem:[%s1 + $0x80] sm:$0xff]
  %v41 = vld [vmem:[%s1 + $0x88] sm:$0xff]
  %v42 = vld [vmem:[%s1 + $0x90] sm:$0xff]
  %v43 = vld [vmem:[%s1 + $0x98] sm:$0xff]
  %v44 = vld [vmem:[%s1 + $0xa0] sm:$0xff]
  %v45 = vld [vmem:[%s1 + $0xa8] sm:$0xff]
  %v46 = vld [vmem:[%s1 + $0xb0] sm:$0xff]
  %v47 = vld [vmem:[%s1 + $0xb8] sm:$0xff]
  %v48 = vld [vmem:[%s1 + $0xc0] sm:$0xff]
  %v49 = vld [vmem:[%s1 + $0xc8] sm:$0xff]
  %v50 = vld [vmem:[%s1 + $0xd0] sm:$0xff]
  %v51 = vld [vmem:[%s1 + $0xd8] sm:$0xff]
  %v52 = vld [vmem:[%s1 + $0xe0] sm:$0xff]
  %v53 = vld [vmem:[%s1 + $0xe8] sm:$0xff]
  %v54 = vld [vmem:[%s1 + $0xf0] sm:$0xff]
  %v55 = vld [vmem:[%s1 + $0xf8] sm:$0xff]
  %v56 = vld [vmem:[#allocation2] sm:$0xf]
  %v57 = vld [vmem:[#allocation3] sm:$0xff]
  %v58 = vld [vmem:[%s0] sm:$0xff]
  %v59 = vld [vmem:[%s0 + $0x8] sm:$0xff]
  %v60 = vunpack.c.l.bf16 %v58
  %v61 = vunpack.c.h.bf16 %v58
  %v62 = vunpack.c.l.bf16 %v59
  %v63 = vunpack.c.h.bf16 %v59
  %v96 = vunpack.c.l.b16 %v24
  %v97 = vunpack.c.h.b16 %v24
  %v98 = vunpack.c.l.b16 %v25
  %v99 = vunpack.c.h.b16 %v25
  %v100 = vunpack.c.l.b16 %v26
  %v101 = vunpack.c.h.b16 %v26
  %v102 = vunpack.c.l.b16 %v27
  %v103 = vunpack.c.h.b16 %v27
  %v104 = vunpack.c.l.b16 %v28
  %v105 = vunpack.c.h.b16 %v28
  %v106 = vunpack.c.l.b16 %v29
  %v107 = vunpack.c.h.b16 %v29
  %v108 = vunpack.c.l.b16 %v30
  %v109 = vunpack.c.h.b16 %v30
  %v110 = vunpack.c.l.b16 %v31
  %v111 = vunpack.c.h.b16 %v31
  %v112 = vunpack.c.l.b16 %v32
  %v113 = vunpack.c.h.b16 %v32
  %v114 = vunpack.c.l.b16 %v33
  %v115 = vunpack.c.h.b16 %v33
  %v116 = vunpack.c.l.b16 %v34
  %v117 = vunpack.c.h.b16 %v34
  %v118 = vunpack.c.l.b16 %v35
  %v119 = vunpack.c.h.b16 %v35
  %v120 = vunpack.c.l.b16 %v36
  %v121 = vunpack.c.h.b16 %v36
  %v122 = vunpack.c.l.b16 %v37
  %v123 = vunpack.c.h.b16 %v37
  %v124 = vunpack.c.l.b16 %v38
  %v125 = vunpack.c.h.b16 %v38
  %v126 = vunpack.c.l.b16 %v39
  %v127 = vunpack.c.h.b16 %v39
  %v128 = vunpack.c.l.b16 %v40
  %v129 = vunpack.c.h.b16 %v40
  %v130 = vunpack.c.l.b16 %v41
  %v131 = vunpack.c.h.b16 %v41
  %v132 = vunpack.c.l.b16 %v42
  %v133 = vunpack.c.h.b16 %v42
  %v134 = vunpack.c.l.b16 %v43
  %v135 = vunpack.c.h.b16 %v43
  %v136 = vunpack.c.l.b16 %v44
  %v137 = vunpack.c.h.b16 %v44
  %v138 = vunpack.c.l.b16 %v45
  %v139 = vunpack.c.h.b16 %v45
  %v140 = vunpack.c.l.b16 %v46
  %v141 = vunpack.c.h.b16 %v46
  %v142 = vunpack.c.l.b16 %v47
  %v143 = vunpack.c.h.b16 %v47
  %v144 = vunpack.c.l.b16 %v48
  %v145 = vunpack.c.h.b16 %v48
  %v146 = vunpack.c.l.b16 %v49
  %v147 = vunpack.c.h.b16 %v49
  %v148 = vunpack.c.l.b16 %v50
  %v149 = vunpack.c.h.b16 %v50
  %v150 = vunpack.c.l.b16 %v51
  %v151 = vunpack.c.h.b16 %v51
  %v152 = vunpack.c.l.b16 %v52
  %v153 = vunpack.c.h.b16 %v52
  %v154 = vunpack.c.l.b16 %v53
  %v155 = vunpack.c.h.b16 %v53
  %v156 = vunpack.c.l.b16 %v54
  %v157 = vunpack.c.h.b16 %v54
  %v158 = vunpack.c.l.b16 %v55
  %v159 = vunpack.c.h.b16 %v55
  %v160 = vpack.c.b16 %v100, %v96
  %v161 = vpack.c.b16 %v101, %v97
  %v162 = vpack.c.b16 %v102, %v98
  %v163 = vpack.c.b16 %v103, %v99
  %v164 = vpack.c.b16 %v108, %v104
  %v165 = vpack.c.b16 %v109, %v105
  %v166 = vpack.c.b16 %v110, %v106
  %v167 = vpack.c.b16 %v111, %v107
  %v168 = vpack.c.b16 %v116, %v112
  %v169 = vpack.c.b16 %v117, %v113
  %v170 = vpack.c.b16 %v118, %v114
  %v171 = vpack.c.b16 %v119, %v115
  %v172 = vpack.c.b16 %v124, %v120
  %v173 = vpack.c.b16 %v125, %v121
  %v174 = vpack.c.b16 %v126, %v122
  %v175 = vpack.c.b16 %v127, %v123
  %v176 = vpack.c.b16 %v132, %v128
  %v177 = vpack.c.b16 %v133, %v129
  %v178 = vpack.c.b16 %v134, %v130
  %v179 = vpack.c.b16 %v135, %v131
  %v180 = vpack.c.b16 %v140, %v136
  %v181 = vpack.c.b16 %v141, %v137
  %v182 = vpack.c.b16 %v142, %v138
  %v183 = vpack.c.b16 %v143, %v139
  %v184 = vpack.c.b16 %v148, %v144
  %v185 = vpack.c.b16 %v149, %v145
  %v186 = vpack.c.b16 %v150, %v146
  %v187 = vpack.c.b16 %v151, %v147
  %v188 = vpack.c.b16 %v156, %v152
  %v189 = vpack.c.b16 %v157, %v153
  %v190 = vpack.c.b16 %v158, %v154
  %v191 = vpack.c.b16 %v159, %v155
  %224 = vmatpush.bf16.msra.mxu0 %v188
  %225 = vmatpush.bf16.msra.mxu0 %v184
  %226 = vmatpush.bf16.msra.mxu0 %v180
  %227 = vmatpush.bf16.msra.mxu0 %v176
  %228 = vmatpush.bf16.msra.mxu0 %v172
  %229 = vmatpush.bf16.msra.mxu0 %v168
  %230 = vmatpush.bf16.msra.mxu0 %v164
  %231 = vmatpush.bf16.msra.mxu0 %v160
  %232 = vmatmul.bf16.gmra.mxu0 %v56
  %v233 = vpop.f32.mrf.mxu0
  %v234 = vadd.f32 %v60, %v233
  %v235 = vpop.f32.mrf.mxu0
  %236 = vdwg.mxu0
  %237 = vmatpush.bf16.msra.mxu0 %v189
  %238 = vmatpush.bf16.msra.mxu0 %v185
  %239 = vmatpush.bf16.msra.mxu0 %v181
  %240 = vmatpush.bf16.msra.mxu0 %v177
  %241 = vmatpush.bf16.msra.mxu0 %v173
  %242 = vmatpush.bf16.msra.mxu0 %v169
  %243 = vmatpush.bf16.msra.mxu0 %v165
  %244 = vmatpush.bf16.msra.mxu0 %v161
  %245 = vmatmul.bf16.gmra.mxu0 %v56
  %v246 = vpop.f32.mrf.mxu0
  %v247 = vadd.f32 %v61, %v246
  %v248 = vpop.f32.mrf.mxu0
  %249 = vdwg.mxu0
  %250 = vmatpush.bf16.msra.mxu0 %v190
  %251 = vmatpush.bf16.msra.mxu0 %v186
  %252 = vmatpush.bf16.msra.mxu0 %v182
  %253 = vmatpush.bf16.msra.mxu0 %v178
  %254 = vmatpush.bf16.msra.mxu0 %v174
  %255 = vmatpush.bf16.msra.mxu0 %v170
  %256 = vmatpush.bf16.msra.mxu0 %v166
  %257 = vmatpush.bf16.msra.mxu0 %v162
  %258 = vmatmul.bf16.gmra.mxu0 %v56
  %v259 = vpop.f32.mrf.mxu0
  %v260 = vadd.f32 %v62, %v259
  %v261 = vpop.f32.mrf.mxu0
  %262 = vdwg.mxu0
  %263 = vmatpush.bf16.msra.mxu0 %v191
  %264 = vmatpush.bf16.msra.mxu0 %v187
  %265 = vmatpush.bf16.msra.mxu0 %v183
  %266 = vmatpush.bf16.msra.mxu0 %v179
  %267 = vmatpush.bf16.msra.mxu0 %v175
  %268 = vmatpush.bf16.msra.mxu0 %v171
  %269 = vmatpush.bf16.msra.mxu0 %v167
  %270 = vmatpush.bf16.msra.mxu0 %v163
  %271 = vmatmul.bf16.gmra.mxu0 %v56
  %v272 = vpop.f32.mrf.mxu0
  %v273 = vadd.f32 %v63, %v272
  %v274 = vpop.f32.mrf.mxu0
  %275 = vdwg.mxu0
  %v276 = vmul.f32 %v234, 0.5
  %v277 = vtanh.pop %v276
  %v278 = vmul.f32 %v277, 0.5
  %v279 = vadd.f32 %v278, 0.5
  %v280 = vmul.f32 %v247, 0.5
  %v281 = vtanh.pop %v280
  %v282 = vmul.f32 %v281, 0.5
  %v283 = vadd.f32 %v282, 0.5
  %v284 = vtanh.pop %v260
  %v285 = vmul.f32 %v273, 0.5
  %v286 = vtanh.pop %v285
  %v287 = vmul.f32 %v286, 0.5
  %v288 = vadd.f32 %v287, 0.5
  %v289 = vmul.f32 %v283, %v57
  %v290 = vmul.f32 %v279, %v284
  %v291 = vadd.f32 %v289, %v290
  %v292 = vtanh.pop %v291
  %v293 = vmul.f32 %v288, %v292
  %v294 = vpack.c.bf16 %v293, %v293
  %s295 = scalar_lea.vmem %s0, 16
  %v296 = vld [vmem:[%s295] sm:$0xff]
  %v297 = vld [vmem:[%s295 + $0x8] sm:$0xff]
  %v298 = vunpack.c.l.bf16 %v296
  %v299 = vunpack.c.h.bf16 %v296
  %v300 = vunpack.c.l.bf16 %v297
  %v301 = vunpack.c.h.bf16 %v297
  %302 = vmatpush.bf16.msra.mxu0 %v188
  %303 = vmatpush.bf16.msra.mxu0 %v184
  %304 = vmatpush.bf16.msra.mxu0 %v180
  %305 = vmatpush.bf16.msra.mxu0 %v176
  %306 = vmatpush.bf16.msra.mxu0 %v172
  %307 = vmatpush.bf16.msra.mxu0 %v168
  %308 = vmatpush.bf16.msra.mxu0 %v164
  %309 = vmatpush.bf16.msra.mxu0 %v160
  %310 = vmatmul.bf16.gmra.mxu0 %v294
  %v311 = vpop.f32.mrf.mxu0
  %v312 = vadd.f32 %v298, %v311
  %v313 = vpop.f32.mrf.mxu0
  %314 = vdwg.mxu0
  %315 = vmatpush.bf16.msra.mxu0 %v189
  %316 = vmatpush.bf16.msra.mxu0 %v185
  %317 = vmatpush.bf16.msra.mxu0 %v181
  %318 = vmatpush.bf16.msra.mxu0 %v177
  %319 = vmatpush.bf16.msra.mxu0 %v173
  %320 = vmatpush.bf16.msra.mxu0 %v169
  %321 = vmatpush.bf16.msra.mxu0 %v165
  %322 = vmatpush.bf16.msra.mxu0 %v161
  %323 = vmatmul.bf16.gmra.mxu0 %v294
  %v324 = vpop.f32.mrf.mxu0
  %v325 = vadd.f32 %v299, %v324
  %v326 = vpop.f32.mrf.mxu0
  %327 = vdwg.mxu0
  %328 = vmatpush.bf16.msra.mxu0 %v190
  %329 = vmatpush.bf16.msra.mxu0 %v186
  %330 = vmatpush.bf16.msra.mxu0 %v182
  %331 = vmatpush.bf16.msra.mxu0 %v178
  %332 = vmatpush.bf16.msra.mxu0 %v174
  %333 = vmatpush.bf16.msra.mxu0 %v170
  %334 = vmatpush.bf16.msra.mxu0 %v166
  %335 = vmatpush.bf16.msra.mxu0 %v162
  %336 = vmatmul.bf16.gmra.mxu0 %v294
  %v337 = vpop.f32.mrf.mxu0
  %v338 = vadd.f32 %v300, %v337
  %v339 = vpop.f32.mrf.mxu0
  %340 = vdwg.mxu0
  %341 = vmatpush.bf16.msra.mxu0 %v191
  %342 = vmatpush.bf16.msra.mxu0 %v187
  %343 = vmatpush.bf16.msra.mxu0 %v183
  %344 = vmatpush.bf16.msra.mxu0 %v179
  %345 = vmatpush.bf16.msra.mxu0 %v175
  %346 = vmatpush.bf16.msra.mxu0 %v171
  %347 = vmatpush.bf16.msra.mxu0 %v167
  %348 = vmatpush.bf16.msra.mxu0 %v163
  %349 = vmatmul.bf16.gmra.mxu0 %v294
  %v350 = vpop.f32.mrf.mxu0
  %v351 = vadd.f32 %v301, %v350
  %v352 = vpop.f32.mrf.mxu0
  %353 = vdwg.mxu0
  %v354 = vmul.f32 %v312, 0.5
  %v355 = vtanh.pop %v354
  %v356 = vmul.f32 %v355, 0.5
  %v357 = vadd.f32 %v356, 0.5
  %v358 = vmul.f32 %v325, 0.5
  %v359 = vtanh.pop %v358
  %v360 = vmul.f32 %v359, 0.5
  %v361 = vadd.f32 %v360, 0.5
  %v362 = vtanh.pop %v338
  %v363 = vmul.f32 %v351, 0.5
  %v364 = vtanh.pop %v363
  %v365 = vmul.f32 %v364, 0.5
  %v366 = vadd.f32 %v365, 0.5
  %v367 = vmul.f32 %v361, %v291
  %v368 = vmul.f32 %v357, %v362
  %v369 = vadd.f32 %v367, %v368
  %v370 = vtanh.pop %v369
  %v371 = vmul.f32 %v366, %v370
  %v372 = vpack.c.bf16 %v371, %v371
  %s373 = scalar_lea.vmem %s0, 32
  %v374 = vld [vmem:[%s373] sm:$0xff]
  %v375 = vld [vmem:[%s373 + $0x8] sm:$0xff]
  %v376 = vunpack.c.l.bf16 %v374
  %v377 = vunpack.c.h.bf16 %v374
  %v378 = vunpack.c.l.bf16 %v375
  %v379 = vunpack.c.h.bf16 %v375
  %380 = vmatpush.bf16.msra.mxu0 %v188
  %381 = vmatpush.bf16.msra.mxu0 %v184
  %382 = vmatpush.bf16.msra.mxu0 %v180
  %383 = vmatpush.bf16.msra.mxu0 %v176
  %384 = vmatpush.bf16.msra.mxu0 %v172
  %385 = vmatpush.bf16.msra.mxu0 %v168
  %386 = vmatpush.bf16.msra.mxu0 %v164
  %387 = vmatpush.bf16.msra.mxu0 %v160
  %388 = vmatmul.bf16.gmra.mxu0 %v372
  %v389 = vpop.f32.mrf.mxu0
  %v390 = vadd.f32 %v376, %v389
  %v391 = vpop.f32.mrf.mxu0
  %392 = vdwg.mxu0
  %393 = vmatpush.bf16.msra.mxu0 %v189
  %394 = vmatpush.bf16.msra.mxu0 %v185
  %395 = vmatpush.bf16.msra.mxu0 %v181
  %396 = vmatpush.bf16.msra.mxu0 %v177
  %397 = vmatpush.bf16.msra.mxu0 %v173
  %398 = vmatpush.bf16.msra.mxu0 %v169
  %399 = vmatpush.bf16.msra.mxu0 %v165
  %400 = vmatpush.bf16.msra.mxu0 %v161
  %401 = vmatmul.bf16.gmra.mxu0 %v372
  %v402 = vpop.f32.mrf.mxu0
  %v403 = vadd.f32 %v377, %v402
  %v404 = vpop.f32.mrf.mxu0
  %405 = vdwg.mxu0
  %406 = vmatpush.bf16.msra.mxu0 %v190
  %407 = vmatpush.bf16.msra.mxu0 %v186
  %408 = vmatpush.bf16.msra.mxu0 %v182
  %409 = vmatpush.bf16.msra.mxu0 %v178
  %410 = vmatpush.bf16.msra.mxu0 %v174
  %411 = vmatpush.bf16.msra.mxu0 %v170
  %412 = vmatpush.bf16.msra.mxu0 %v166
  %413 = vmatpush.bf16.msra.mxu0 %v162
  %414 = vmatmul.bf16.gmra.mxu0 %v372
  %v415 = vpop.f32.mrf.mxu0
  %v416 = vadd.f32 %v378, %v415
  %v417 = vpop.f32.mrf.mxu0
  %418 = vdwg.mxu0
  %419 = vmatpush.bf16.msra.mxu0 %v191
  %420 = vmatpush.bf16.msra.mxu0 %v187
  %421 = vmatpush.bf16.msra.mxu0 %v183
  %422 = vmatpush.bf16.msra.mxu0 %v179
  %423 = vmatpush.bf16.msra.mxu0 %v175
  %424 = vmatpush.bf16.msra.mxu0 %v171
  %425 = vmatpush.bf16.msra.mxu0 %v167
  %426 = vmatpush.bf16.msra.mxu0 %v163
  %427 = vmatmul.bf16.gmra.mxu0 %v372
  %v428 = vpop.f32.mrf.mxu0
  %v429 = vadd.f32 %v379, %v428
  %v430 = vpop.f32.mrf.mxu0
  %431 = vdwg.mxu0
  %v432 = vmul.f32 %v390, 0.5
  %v433 = vtanh.pop %v432
  %v434 = vmul.f32 %v433, 0.5
  %v435 = vadd.f32 %v434, 0.5
  %v436 = vmul.f32 %v403, 0.5
  %v437 = vtanh.pop %v436
  %v438 = vmul.f32 %v437, 0.5
  %v439 = vadd.f32 %v438, 0.5
  %v440 = vtanh.pop %v416
  %v441 = vmul.f32 %v429, 0.5
  %v442 = vtanh.pop %v441
  %v443 = vmul.f32 %v442, 0.5
  %v444 = vadd.f32 %v443, 0.5
  %v445 = vmul.f32 %v439, %v369
  %v446 = vmul.f32 %v435, %v440
  %v447 = vadd.f32 %v445, %v446
  %v448 = vtanh.pop %v447
  %v449 = vmul.f32 %v444, %v448
  %v450 = vpack.c.bf16 %v449, %v449
  %s451 = scalar_lea.vmem %s0, 48
  %v452 = vld [vmem:[%s451] sm:$0xff]
  %v453 = vld [vmem:[%s451 + $0x8] sm:$0xff]
  %v454 = vunpack.c.l.bf16 %v452
  %v455 = vunpack.c.h.bf16 %v452
  %v456 = vunpack.c.l.bf16 %v453
  %v457 = vunpack.c.h.bf16 %v453
  %458 = vmatpush.bf16.msra.mxu0 %v188
  %459 = vmatpush.bf16.msra.mxu0 %v184
  %460 = vmatpush.bf16.msra.mxu0 %v180
  %461 = vmatpush.bf16.msra.mxu0 %v176
  %462 = vmatpush.bf16.msra.mxu0 %v172
  %463 = vmatpush.bf16.msra.mxu0 %v168
  %464 = vmatpush.bf16.msra.mxu0 %v164
  %465 = vmatpush.bf16.msra.mxu0 %v160
  %466 = vmatmul.bf16.gmra.mxu0 %v450
  %v467 = vpop.f32.mrf.mxu0
  %v468 = vadd.f32 %v454, %v467
  %v469 = vpop.f32.mrf.mxu0
  %470 = vdwg.mxu0
  %471 = vmatpush.bf16.msra.mxu0 %v189
  %472 = vmatpush.bf16.msra.mxu0 %v185
  %473 = vmatpush.bf16.msra.mxu0 %v181
  %474 = vmatpush.bf16.msra.mxu0 %v177
  %475 = vmatpush.bf16.msra.mxu0 %v173
  %476 = vmatpush.bf16.msra.mxu0 %v169
  %477 = vmatpush.bf16.msra.mxu0 %v165
  %478 = vmatpush.bf16.msra.mxu0 %v161
  %479 = vmatmul.bf16.gmra.mxu0 %v450
  %v480 = vpop.f32.mrf.mxu0
  %v481 = vadd.f32 %v455, %v480
  %v482 = vpop.f32.mrf.mxu0
  %483 = vdwg.mxu0
  %484 = vmatpush.bf16.msra.mxu0 %v190
  %485 = vmatpush.bf16.msra.mxu0 %v186
  %486 = vmatpush.bf16.msra.mxu0 %v182
  %487 = vmatpush.bf16.msra.mxu0 %v178
  %488 = vmatpush.bf16.msra.mxu0 %v174
  %489 = vmatpush.bf16.msra.mxu0 %v170
  %490 = vmatpush.bf16.msra.mxu0 %v166
  %491 = vmatpush.bf16.msra.mxu0 %v162
  %492 = vmatmul.bf16.gmra.mxu0 %v450
  %v493 = vpop.f32.mrf.mxu0
  %v494 = vadd.f32 %v456, %v493
  %v495 = vpop.f32.mrf.mxu0
  %496 = vdwg.mxu0
  %497 = vmatpush.bf16.msra.mxu0 %v191
  %498 = vmatpush.bf16.msra.mxu0 %v187
  %499 = vmatpush.bf16.msra.mxu0 %v183
  %500 = vmatpush.bf16.msra.mxu0 %v179
  %501 = vmatpush.bf16.msra.mxu0 %v175
  %502 = vmatpush.bf16.msra.mxu0 %v171
  %503 = vmatpush.bf16.msra.mxu0 %v167
  %504 = vmatpush.bf16.msra.mxu0 %v163
  %505 = vmatmul.bf16.gmra.mxu0 %v450
  %v506 = vpop.f32.mrf.mxu0
  %v507 = vadd.f32 %v457, %v506
  %v508 = vpop.f32.mrf.mxu0
  %509 = vdwg.mxu0
  %v510 = vmul.f32 %v468, 0.5
  %v511 = vtanh.pop %v510
  %v512 = vmul.f32 %v511, 0.5
  %v513 = vadd.f32 %v512, 0.5
  %v514 = vmul.f32 %v481, 0.5
  %v515 = vtanh.pop %v514
  %v516 = vmul.f32 %v515, 0.5
  %v517 = vadd.f32 %v516, 0.5
  %v518 = vtanh.pop %v494
  %v519 = vmul.f32 %v507, 0.5
  %v520 = vtanh.pop %v519
  %v521 = vmul.f32 %v520, 0.5
  %v522 = vadd.f32 %v521, 0.5
  %v523 = vmul.f32 %v517, %v447
  %v524 = vmul.f32 %v513, %v518
  %v525 = vadd.f32 %v523, %v524
  %v526 = vtanh.pop %v525
  %v527 = vmul.f32 %v522, %v526
  %v528 = vpack.c.bf16 %v527, %v527
  %s529 = scalar_lea.vmem %s0, 64
  %v530 = vld [vmem:[%s529] sm:$0xff]
  %v531 = vld [vmem:[%s529 + $0x8] sm:$0xff]
  %v532 = vunpack.c.l.bf16 %v530
  %v533 = vunpack.c.h.bf16 %v530
  %v534 = vunpack.c.l.bf16 %v531
  %v535 = vunpack.c.h.bf16 %v531
  %536 = vmatpush.bf16.msra.mxu0 %v188
  %537 = vmatpush.bf16.msra.mxu0 %v184
  %538 = vmatpush.bf16.msra.mxu0 %v180
  %539 = vmatpush.bf16.msra.mxu0 %v176
  %540 = vmatpush.bf16.msra.mxu0 %v172
  %541 = vmatpush.bf16.msra.mxu0 %v168
  %542 = vmatpush.bf16.msra.mxu0 %v164
  %543 = vmatpush.bf16.msra.mxu0 %v160
  %544 = vmatmul.bf16.gmra.mxu0 %v528
  %v545 = vpop.f32.mrf.mxu0
  %v546 = vadd.f32 %v532, %v545
  %v547 = vpop.f32.mrf.mxu0
  %548 = vdwg.mxu0
  %549 = vmatpush.bf16.msra.mxu0 %v189
  %550 = vmatpush.bf16.msra.mxu0 %v185
  %551 = vmatpush.bf16.msra.mxu0 %v181
  %552 = vmatpush.bf16.msra.mxu0 %v177
  %553 = vmatpush.bf16.msra.mxu0 %v173
  %554 = vmatpush.bf16.msra.mxu0 %v169
  %555 = vmatpush.bf16.msra.mxu0 %v165
  %556 = vmatpush.bf16.msra.mxu0 %v161
  %557 = vmatmul.bf16.gmra.mxu0 %v528
  %v558 = vpop.f32.mrf.mxu0
  %v559 = vadd.f32 %v533, %v558
  %v560 = vpop.f32.mrf.mxu0
  %561 = vdwg.mxu0
  %562 = vmatpush.bf16.msra.mxu0 %v190
  %563 = vmatpush.bf16.msra.mxu0 %v186
  %564 = vmatpush.bf16.msra.mxu0 %v182
  %565 = vmatpush.bf16.msra.mxu0 %v178
  %566 = vmatpush.bf16.msra.mxu0 %v174
  %567 = vmatpush.bf16.msra.mxu0 %v170
  %568 = vmatpush.bf16.msra.mxu0 %v166
  %569 = vmatpush.bf16.msra.mxu0 %v162
  %570 = vmatmul.bf16.gmra.mxu0 %v528
  %v571 = vpop.f32.mrf.mxu0
  %v572 = vadd.f32 %v534, %v571
  %v573 = vpop.f32.mrf.mxu0
  %574 = vdwg.mxu0
  %575 = vmatpush.bf16.msra.mxu0 %v191
  %576 = vmatpush.bf16.msra.mxu0 %v187
  %577 = vmatpush.bf16.msra.mxu0 %v183
  %578 = vmatpush.bf16.msra.mxu0 %v179
  %579 = vmatpush.bf16.msra.mxu0 %v175
  %580 = vmatpush.bf16.msra.mxu0 %v171
  %581 = vmatpush.bf16.msra.mxu0 %v167
  %582 = vmatpush.bf16.msra.mxu0 %v163
  %583 = vmatmul.bf16.gmra.mxu0 %v528
  %v584 = vpop.f32.mrf.mxu0
  %v585 = vadd.f32 %v535, %v584
  %v586 = vpop.f32.mrf.mxu0
  %587 = vdwg.mxu0
  %v588 = vmul.f32 %v546, 0.5
  %v589 = vtanh.pop %v588
  %v590 = vmul.f32 %v589, 0.5
  %v591 = vadd.f32 %v590, 0.5
  %v592 = vmul.f32 %v559, 0.5
  %v593 = vtanh.pop %v592
  %v594 = vmul.f32 %v593, 0.5
  %v595 = vadd.f32 %v594, 0.5
  %v596 = vtanh.pop %v572
  %v597 = vmul.f32 %v585, 0.5
  %v598 = vtanh.pop %v597
  %v599 = vmul.f32 %v598, 0.5
  %v600 = vadd.f32 %v599, 0.5
  %v601 = vmul.f32 %v595, %v525
  %v602 = vmul.f32 %v591, %v596
  %v603 = vadd.f32 %v601, %v602
  %v604 = vtanh.pop %v603
  %v605 = vmul.f32 %v600, %v604
  %v606 = vpack.c.bf16 %v605, %v605
  %s607 = scalar_lea.vmem %s0, 80
  %v608 = vld [vmem:[%s607] sm:$0xff]
  %v609 = vld [vmem:[%s607 + $0x8] sm:$0xff]
  %v610 = vunpack.c.l.bf16 %v608
  %v611 = vunpack.c.h.bf16 %v608
  %v612 = vunpack.c.l.bf16 %v609
  %v613 = vunpack.c.h.bf16 %v609
  %614 = vmatpush.bf16.msra.mxu0 %v188
  %615 = vmatpush.bf16.msra.mxu0 %v184
  %616 = vmatpush.bf16.msra.mxu0 %v180
  %617 = vmatpush.bf16.msra.mxu0 %v176
  %618 = vmatpush.bf16.msra.mxu0 %v172
  %619 = vmatpush.bf16.msra.mxu0 %v168
  %620 = vmatpush.bf16.msra.mxu0 %v164
  %621 = vmatpush.bf16.msra.mxu0 %v160
  %622 = vmatmul.bf16.gmra.mxu0 %v606
  %v623 = vpop.f32.mrf.mxu0
  %v624 = vadd.f32 %v610, %v623
  %v625 = vpop.f32.mrf.mxu0
  %626 = vdwg.mxu0
  %627 = vmatpush.bf16.msra.mxu0 %v189
  %628 = vmatpush.bf16.msra.mxu0 %v185
  %629 = vmatpush.bf16.msra.mxu0 %v181
  %630 = vmatpush.bf16.msra.mxu0 %v177
  %631 = vmatpush.bf16.msra.mxu0 %v173
  %632 = vmatpush.bf16.msra.mxu0 %v169
  %633 = vmatpush.bf16.msra.mxu0 %v165
  %634 = vmatpush.bf16.msra.mxu0 %v161
  %635 = vmatmul.bf16.gmra.mxu0 %v606
  %v636 = vpop.f32.mrf.mxu0
  %v637 = vadd.f32 %v611, %v636
  %v638 = vpop.f32.mrf.mxu0
  %639 = vdwg.mxu0
  %640 = vmatpush.bf16.msra.mxu0 %v190
  %641 = vmatpush.bf16.msra.mxu0 %v186
  %642 = vmatpush.bf16.msra.mxu0 %v182
  %643 = vmatpush.bf16.msra.mxu0 %v178
  %644 = vmatpush.bf16.msra.mxu0 %v174
  %645 = vmatpush.bf16.msra.mxu0 %v170
  %646 = vmatpush.bf16.msra.mxu0 %v166
  %647 = vmatpush.bf16.msra.mxu0 %v162
  %648 = vmatmul.bf16.gmra.mxu0 %v606
  %v649 = vpop.f32.mrf.mxu0
  %v650 = vadd.f32 %v612, %v649
  %v651 = vpop.f32.mrf.mxu0
  %652 = vdwg.mxu0
  %653 = vmatpush.bf16.msra.mxu0 %v191
  %654 = vmatpush.bf16.msra.mxu0 %v187
  %655 = vmatpush.bf16.msra.mxu0 %v183
  %656 = vmatpush.bf16.msra.mxu0 %v179
  %657 = vmatpush.bf16.msra.mxu0 %v175
  %658 = vmatpush.bf16.msra.mxu0 %v171
  %659 = vmatpush.bf16.msra.mxu0 %v167
  %660 = vmatpush.bf16.msra.mxu0 %v163
  %661 = vmatmul.bf16.gmra.mxu0 %v606
  %v662 = vpop.f32.mrf.mxu0
  %v663 = vadd.f32 %v613, %v662
  %v664 = vpop.f32.mrf.mxu0
  %665 = vdwg.mxu0
  %v666 = vmul.f32 %v624, 0.5
  %v667 = vtanh.pop %v666
  %v668 = vmul.f32 %v667, 0.5
  %v669 = vadd.f32 %v668, 0.5
  %v670 = vmul.f32 %v637, 0.5
  %v671 = vtanh.pop %v670
  %v672 = vmul.f32 %v671, 0.5
  %v673 = vadd.f32 %v672, 0.5
  %v674 = vtanh.pop %v650
  %v675 = vmul.f32 %v663, 0.5
  %v676 = vtanh.pop %v675
  %v677 = vmul.f32 %v676, 0.5
  %v678 = vadd.f32 %v677, 0.5
  %v679 = vmul.f32 %v673, %v603
  %v680 = vmul.f32 %v669, %v674
  %v681 = vadd.f32 %v679, %v680
  %v682 = vtanh.pop %v681
  %v683 = vmul.f32 %v678, %v682
  %v684 = vpack.c.bf16 %v683, %v683
  %s685 = scalar_lea.vmem %s0, 96
  %v686 = vld [vmem:[%s685] sm:$0xff]
  %v687 = vld [vmem:[%s685 + $0x8] sm:$0xff]
  %v688 = vunpack.c.l.bf16 %v686
  %v689 = vunpack.c.h.bf16 %v686
  %v690 = vunpack.c.l.bf16 %v687
  %v691 = vunpack.c.h.bf16 %v687
  %692 = vmatpush.bf16.msra.mxu0 %v188
  %693 = vmatpush.bf16.msra.mxu0 %v184
  %694 = vmatpush.bf16.msra.mxu0 %v180
  %695 = vmatpush.bf16.msra.mxu0 %v176
  %696 = vmatpush.bf16.msra.mxu0 %v172
  %697 = vmatpush.bf16.msra.mxu0 %v168
  %698 = vmatpush.bf16.msra.mxu0 %v164
  %699 = vmatpush.bf16.msra.mxu0 %v160
  %700 = vmatmul.bf16.gmra.mxu0 %v684
  %v701 = vpop.f32.mrf.mxu0
  %v702 = vadd.f32 %v688, %v701
  %v703 = vpop.f32.mrf.mxu0
  %704 = vdwg.mxu0
  %705 = vmatpush.bf16.msra.mxu0 %v189
  %706 = vmatpush.bf16.msra.mxu0 %v185
  %707 = vmatpush.bf16.msra.mxu0 %v181
  %708 = vmatpush.bf16.msra.mxu0 %v177
  %709 = vmatpush.bf16.msra.mxu0 %v173
  %710 = vmatpush.bf16.msra.mxu0 %v169
  %711 = vmatpush.bf16.msra.mxu0 %v165
  %712 = vmatpush.bf16.msra.mxu0 %v161
  %713 = vmatmul.bf16.gmra.mxu0 %v684
  %v714 = vpop.f32.mrf.mxu0
  %v715 = vadd.f32 %v689, %v714
  %v716 = vpop.f32.mrf.mxu0
  %717 = vdwg.mxu0
  %718 = vmatpush.bf16.msra.mxu0 %v190
  %719 = vmatpush.bf16.msra.mxu0 %v186
  %720 = vmatpush.bf16.msra.mxu0 %v182
  %721 = vmatpush.bf16.msra.mxu0 %v178
  %722 = vmatpush.bf16.msra.mxu0 %v174
  %723 = vmatpush.bf16.msra.mxu0 %v170
  %724 = vmatpush.bf16.msra.mxu0 %v166
  %725 = vmatpush.bf16.msra.mxu0 %v162
  %726 = vmatmul.bf16.gmra.mxu0 %v684
  %v727 = vpop.f32.mrf.mxu0
  %v728 = vadd.f32 %v690, %v727
  %v729 = vpop.f32.mrf.mxu0
  %730 = vdwg.mxu0
  %731 = vmatpush.bf16.msra.mxu0 %v191
  %732 = vmatpush.bf16.msra.mxu0 %v187
  %733 = vmatpush.bf16.msra.mxu0 %v183
  %734 = vmatpush.bf16.msra.mxu0 %v179
  %735 = vmatpush.bf16.msra.mxu0 %v175
  %736 = vmatpush.bf16.msra.mxu0 %v171
  %737 = vmatpush.bf16.msra.mxu0 %v167
  %738 = vmatpush.bf16.msra.mxu0 %v163
  %739 = vmatmul.bf16.gmra.mxu0 %v684
  %v740 = vpop.f32.mrf.mxu0
  %v741 = vadd.f32 %v691, %v740
  %v742 = vpop.f32.mrf.mxu0
  %743 = vdwg.mxu0
  %v744 = vmul.f32 %v702, 0.5
  %v745 = vtanh.pop %v744
  %v746 = vmul.f32 %v745, 0.5
  %v747 = vadd.f32 %v746, 0.5
  %v748 = vmul.f32 %v715, 0.5
  %v749 = vtanh.pop %v748
  %v750 = vmul.f32 %v749, 0.5
  %v751 = vadd.f32 %v750, 0.5
  %v752 = vtanh.pop %v728
  %v753 = vmul.f32 %v741, 0.5
  %v754 = vtanh.pop %v753
  %v755 = vmul.f32 %v754, 0.5
  %v756 = vadd.f32 %v755, 0.5
  %v757 = vmul.f32 %v751, %v681
  %v758 = vmul.f32 %v747, %v752
  %v759 = vadd.f32 %v757, %v758
  %v760 = vtanh.pop %v759
  %v761 = vmul.f32 %v756, %v760
  %v762 = vpack.c.bf16 %v761, %v761
  %s763 = scalar_lea.vmem %s0, 112
  %v764 = vld [vmem:[%s763] sm:$0xff]
  %v765 = vld [vmem:[%s763 + $0x8] sm:$0xff]
  %v766 = vunpack.c.l.bf16 %v764
  %v767 = vunpack.c.h.bf16 %v764
  %v768 = vunpack.c.l.bf16 %v765
  %v769 = vunpack.c.h.bf16 %v765
  %770 = vmatpush.bf16.msra.mxu0 %v188
  %771 = vmatpush.bf16.msra.mxu0 %v184
  %772 = vmatpush.bf16.msra.mxu0 %v180
  %773 = vmatpush.bf16.msra.mxu0 %v176
  %774 = vmatpush.bf16.msra.mxu0 %v172
  %775 = vmatpush.bf16.msra.mxu0 %v168
  %776 = vmatpush.bf16.msra.mxu0 %v164
  %777 = vmatpush.bf16.msra.mxu0 %v160
  %778 = vmatmul.bf16.gmra.mxu0 %v762
  %v779 = vpop.f32.mrf.mxu0
  %v780 = vadd.f32 %v766, %v779
  %v781 = vpop.f32.mrf.mxu0
  %782 = vdwg.mxu0
  %783 = vmatpush.bf16.msra.mxu0 %v189
  %784 = vmatpush.bf16.msra.mxu0 %v185
  %785 = vmatpush.bf16.msra.mxu0 %v181
  %786 = vmatpush.bf16.msra.mxu0 %v177
  %787 = vmatpush.bf16.msra.mxu0 %v173
  %788 = vmatpush.bf16.msra.mxu0 %v169
  %789 = vmatpush.bf16.msra.mxu0 %v165
  %790 = vmatpush.bf16.msra.mxu0 %v161
  %791 = vmatmul.bf16.gmra.mxu0 %v762
  %v792 = vpop.f32.mrf.mxu0
  %v793 = vadd.f32 %v767, %v792
  %v794 = vpop.f32.mrf.mxu0
  %795 = vdwg.mxu0
  %796 = vmatpush.bf16.msra.mxu0 %v190
  %797 = vmatpush.bf16.msra.mxu0 %v186
  %798 = vmatpush.bf16.msra.mxu0 %v182
  %799 = vmatpush.bf16.msra.mxu0 %v178
  %800 = vmatpush.bf16.msra.mxu0 %v174
  %801 = vmatpush.bf16.msra.mxu0 %v170
  %802 = vmatpush.bf16.msra.mxu0 %v166
  %803 = vmatpush.bf16.msra.mxu0 %v162
  %804 = vmatmul.bf16.gmra.mxu0 %v762
  %v805 = vpop.f32.mrf.mxu0
  %v806 = vadd.f32 %v768, %v805
  %v807 = vpop.f32.mrf.mxu0
  %808 = vdwg.mxu0
  %809 = vmatpush.bf16.msra.mxu0 %v191
  %810 = vmatpush.bf16.msra.mxu0 %v187
  %811 = vmatpush.bf16.msra.mxu0 %v183
  %812 = vmatpush.bf16.msra.mxu0 %v179
  %813 = vmatpush.bf16.msra.mxu0 %v175
  %814 = vmatpush.bf16.msra.mxu0 %v171
  %815 = vmatpush.bf16.msra.mxu0 %v167
  %816 = vmatpush.bf16.msra.mxu0 %v163
  %817 = vmatmul.bf16.gmra.mxu0 %v762
  %v818 = vpop.f32.mrf.mxu0
  %v819 = vadd.f32 %v769, %v818
  %v820 = vpop.f32.mrf.mxu0
  %821 = vdwg.mxu0
  %v822 = vmul.f32 %v780, 0.5
  %v823 = vtanh.pop %v822
  %v824 = vmul.f32 %v823, 0.5
  %v825 = vadd.f32 %v824, 0.5
  %v826 = vmul.f32 %v793, 0.5
  %v827 = vtanh.pop %v826
  %v828 = vmul.f32 %v827, 0.5
  %v829 = vadd.f32 %v828, 0.5
  %v830 = vtanh.pop %v806
  %v831 = vmul.f32 %v819, 0.5
  %v832 = vtanh.pop %v831
  %v833 = vmul.f32 %v832, 0.5
  %v834 = vadd.f32 %v833, 0.5
  %v835 = vmul.f32 %v829, %v759
  %v836 = vmul.f32 %v825, %v830
  %v837 = vadd.f32 %v835, %v836
  %v838 = vtanh.pop %v837
  %v839 = vmul.f32 %v834, %v838
  %v840 = vpack.c.bf16 %v839, %v839
  %841 = vst [vmem:[#allocation2] sm:$0xf] %v840
  %842 = vst [vmem:[#allocation3] sm:$0xff] %v837
  // Predicated region
  $region22: #{rnn_forward.3} parent=0 // pred_check
    %p843 = pneg %p18
  $region23: #{rnn_forward.3} parent=0 // pred_check_branch
    %845 = sbr.rel (%p843) target = $region25
  $region24: #{rnn_forward.3} parent=0 // pred_region
    %v846 = vld [vmem:[%s2] sm:$0xf]
    %v847 = vld [vmem:[%s2 + $0x4] sm:$0xf]
    %v848 = vld [vmem:[%s2 + $0x8] sm:$0xf]
    %v849 = vld [vmem:[%s2 + $0xc] sm:$0xf]
    %v850 = vld [vmem:[%s2 + $0x10] sm:$0xf]
    %v851 = vld [vmem:[%s2 + $0x14] sm:$0xf]
    %v852 = vld [vmem:[%s2 + $0x18] sm:$0xf]
    %v853 = vld [vmem:[%s2 + $0x1c] sm:$0xf]
    %v854 = vld [vmem:[%s2 + $0x20] sm:$0xf]
    %v855 = vld [vmem:[%s2 + $0x24] sm:$0xf]
    %v856 = vld [vmem:[%s2 + $0x28] sm:$0xf]
    %v857 = vld [vmem:[%s2 + $0x2c] sm:$0xf]
    %v858 = vld [vmem:[%s2 + $0x30] sm:$0xf]
    %v859 = vld [vmem:[%s2 + $0x34] sm:$0xf]
    %v860 = vld [vmem:[%s2 + $0x38] sm:$0xf]
    %v861 = vld [vmem:[%s2 + $0x3c] sm:$0xf]
    %v862 = vld [vmem:[%s3] sm:$0x1]
    %v864 = vperm.slane %v862, 0
    %v882 = vunpack.c.l.b16 %v846
    %v883 = vunpack.c.l.b16 %v847
    %v884 = vunpack.c.l.b16 %v848
    %v885 = vunpack.c.l.b16 %v849
    %v886 = vunpack.c.l.b16 %v850
    %v887 = vunpack.c.l.b16 %v851
    %v888 = vunpack.c.l.b16 %v852
    %v889 = vunpack.c.l.b16 %v853
    %v890 = vunpack.c.l.b16 %v854
    %v891 = vunpack.c.l.b16 %v855
    %v892 = vunpack.c.l.b16 %v856
    %v893 = vunpack.c.l.b16 %v857
    %v894 = vunpack.c.l.b16 %v858
    %v895 = vunpack.c.l.b16 %v859
    %v896 = vunpack.c.l.b16 %v860
    %v897 = vunpack.c.l.b16 %v861
    %v898 = vpack.c.b16 %v883, %v882
    %v899 = vpack.c.b16 %v885, %v884
    %v900 = vpack.c.b16 %v887, %v886
    %v901 = vpack.c.b16 %v889, %v888
    %v902 = vpack.c.b16 %v891, %v890
    %v903 = vpack.c.b16 %v893, %v892
    %v904 = vpack.c.b16 %v895, %v894
    %v905 = vpack.c.b16 %v897, %v896
    %914 = vmatpush.bf16.msra.mxu0 %v905
    %915 = vmatpush.bf16.msra.mxu0 %v904
    %916 = vmatpush.bf16.msra.mxu0 %v903
    %917 = vmatpush.bf16.msra.mxu0 %v902
    %918 = vmatpush.bf16.msra.mxu0 %v901
    %919 = vmatpush.bf16.msra.mxu0 %v900
    %920 = vmatpush.bf16.msra.mxu0 %v899
    %921 = vmatpush.bf16.msra.mxu0 %v898
    %922 = vmatmul.bf16.gmra.mxu0 %v840
    %v923 = vpop.f32.mrf.mxu0
    %v924 = vadd.f32 %v864, %v923
    %v925 = vpop.f32.mrf.mxu0
    %926 = vdwg.mxu0
    %927 = vst [vmem:[%s4] sm:$0xff] %v924
  $region25: #{rnn_forward.3} parent=0 // pred_fallthru
    _
  // Predicated region
  $region26: #{rnn_forward.3} parent=0 // pred_check
    _
  $region27: #{rnn_forward.3} parent=0 // pred_check_branch
    %929 = sbr.rel (0) target = $region29
  $region28: #{rnn_forward.3} parent=0 // pred_region
    _
  $region29: #{rnn_forward.3} parent=0 // pred_fallthru
    _
  // Predicated region
  $region30: #{rnn_forward.3} parent=0 // pred_check
    _
  $region31: #{rnn_forward.3} parent=0 // pred_check_branch
    %931 = sbr.rel (0) target = $region33
  $region32: #{rnn_forward.3} parent=0 // pred_region
    _
  $region33: #{rnn_forward.3} parent=0 // pred_fallthru
    _

</llo_original>
